<compile_context>
chip_gen: v7x
topology: tpu7x:2x2x1
jax: 0.10.0
libtpu: 0.0.40
codegen_flags: <defaults>
</compile_context>

<pallas_src>
import functools

import jax
import jax.numpy as jnp
from jax import lax
from jax.experimental import pallas as pl
from jax.experimental.pallas import tpu as pltpu

NEG_SLOPE = 0.01   # LeakyReLU default negative_slope
BN_EPS = 1e-5      # BatchNorm2d default eps


def _leaky(x):
    return jnp.where(x > 0, x, NEG_SLOPE * x)


def _round_up(n, m):
    return (n + m - 1) // m * m


def _fold_bn(gamma, beta, mean, var):
    scale = gamma / jnp.sqrt(var + BN_EPS)
    shift = beta - mean * scale
    return scale[:, None].astype(jnp.float32), shift[:, None].astype(jnp.float32)


def _full_spec(a):
    n = a.ndim
    return pl.BlockSpec(a.shape, lambda j, _n=n: (0,) * _n)


# -----------------------------------------------------------------------------
# Fused kernel: all DenseFilter layers + (optional) ConvBlock2D collapse.
#
# In-kernel layout (per lane tile): 2-D slabs (features, C*TL) where
#   column = h*TL + l,  l = flattened (batch, time) lane index,
#   TL a multiple of 128 so every H-shifted view is lane-tile aligned.
# -----------------------------------------------------------------------------
def _fused_kernel(x_ref, *refs, depth, growth, in_ch, C, TL, flen, fb, collapse):
    pad = flen // 2
    n_layer = 6 * depth
    layer_refs = refs[:n_layer]
    pos = n_layer
    if collapse:
        wc_ref, sc_ref, tc_ref = refs[pos:pos + 3]
        pos += 3
    out_ref = refs[pos]
    stack_ref, stk_ref = refs[pos + 1], refs[pos + 2]

    # Seed the VMEM-resident dense feature stack with the input feature maps.
    stack_ref[:in_ch, :] = x_ref[0].astype(jnp.float32)

    # Zero only the H-padding strips of the stacked H-conv operand, once.
    # (They are disjoint from the per-layer shifted writes and stay zero.)
    for k in range(flen):
        sh = k - pad
        r0 = k * fb
        if sh > 0:
            stk_ref[r0:r0 + fb, (C - sh) * TL:] = jnp.zeros((fb, sh * TL),
                                                            jnp.float32)
        elif sh < 0:
            stk_ref[r0:r0 + fb, :(-sh) * TL] = jnp.zeros((fb, (-sh) * TL),
                                                         jnp.float32)

    for d in range(depth):
        s1, t1, w1f, b1f, w2s, b2 = layer_refs[6 * d: 6 * d + 6]
        f_in = in_ch + growth * d

        # BatchNorm2d (eval, folded) + LeakyReLU on the current stack.
        y = _leaky(stack_ref[:f_in, :] * s1[...] + t1[...])

        # 1x1 bottleneck conv (BN2 pre-folded into w1f/b1f) + LeakyReLU.
        z = _leaky(jnp.dot(w1f[...], y, preferred_element_type=jnp.float32)
                   + b1f[...])

        # (flen, 1) conv along H as one matmul with K = flen*fb: write the
        # flen H-shifted (zero-padded) views of z into the stacked operand.
        # Every shift is a whole multiple of TL (>=128) -> lane aligned.
        for k in range(flen):
            sh = k - pad
            r0 = k * fb
            if sh == 0:
                stk_ref[r0:r0 + fb, :] = z
            elif sh > 0:
                stk_ref[r0:r0 + fb, :(C - sh) * TL] = z[:, sh * TL:]
            else:
                s = -sh
                stk_ref[r0:r0 + fb, s * TL:] = z[:, :(C - s) * TL]
        new = jnp.dot(w2s[...], stk_ref[...],
                      preferred_element_type=jnp.float32) + b2[...]

        # DenseFilter concat == append rows to the resident stack (no HBM trip).
        # Dropout2d is identity at inference.
        stack_ref[f_in:f_in + growth, :] = new

    nf = in_ch + growth * depth
    if collapse:
        # ConvBlock2D((C,1), bias=False): conv -> dropout(id) -> act -> BN.
        u = stack_ref[...]
        v = jnp.zeros((nf, TL), jnp.float32)
        for c in range(C):
            v = v + jnp.dot(wc_ref[c], u[:, c * TL:(c + 1) * TL],
                            preferred_element_type=jnp.float32)
        v = _leaky(v)
        v = v * sc_ref[...] + tc_ref[...]
        out_ref[0] = v.astype(out_ref.dtype)
    else:
        out_ref[0] = stack_ref[...].astype(out_ref.dtype)


# -----------------------------------------------------------------------------
# Wrapper: layout plumbing + parameter folding + pallas_call setup
# -----------------------------------------------------------------------------
def dense_spatial_filter_forward(x, params, collapse=True, lane_tile=512):
    """DenseSpatialFilter.forward (inference mode), fused into one pallas_call."""
    if x.ndim < 4:   # (B, samples, channels) -> unsqueeze(1).permute([0,1,3,2])
        x = jnp.transpose(x[:, None], (0, 1, 3, 2))
    B, in_ch, C, T = x.shape
    depth = len(params["dense"])
    growth = params["dense"][0]["w2"].shape[0]
    fb = params["dense"][0]["w2"].shape[1]
    flen = params["dense"][0]["w2"].shape[2]
    assert flen % 2 == 1, "even filter_len would change the output H size"
    nf = in_ch + growth * depth

    # Flatten (batch, time) into the lane axis (weights are batch-shared),
    # pad to a multiple of 128 and tile it -> lane-dense, lane-aligned blocks.
    # lane_tile bounds per-step VMEM use (v7x budget); tiles are independent.
    BT = B * T
    TL = min(_round_up(BT, 128), _round_up(lane_tile, 128))
    Lp = _round_up(BT, TL)
    n_tiles = Lp // TL
    xt = jnp.transpose(x, (1, 2, 0, 3)).reshape(in_ch, C, BT)
    xt = jnp.pad(xt, ((0, 0), (0, 0), (0, Lp - BT)))
    xt = jnp.transpose(xt.reshape(in_ch, C, n_tiles, TL),
                       (2, 0, 1, 3)).reshape(n_tiles, in_ch, C * TL)

    # Wrapper-side parameter folding (batch-shared, computed once by XLA).
    flat = []
    for p in params["dense"]:
        s1, t1 = _fold_bn(*p["bn1"])
        s2, t2 = _fold_bn(*p["bn2"])
        w1f = (s2 * p["w1"]).astype(jnp.float32)            # BN2 folded into conv
        b1f = (s2 * p["b1"][:, None] + t2).astype(jnp.float32)
        w2s = jnp.transpose(p["w2"][:, :, :, 0], (0, 2, 1)   # (growth, flen*fb)
                            ).reshape(growth, flen * fb).astype(jnp.float32)
        b2 = p["b2"][:, None].astype(jnp.float32)
        flat += [s1, t1, w1f, b1f, w2s, b2]
    if collapse:
        pc = params["collapse"]
        wc3 = jnp.transpose(pc["wc"][:, :, :, 0], (2, 0, 1)).astype(jnp.float32)
        sc, tc = _fold_bn(*pc["bn"])
        flat += [wc3, sc, tc]

    out_cols = TL if collapse else C * TL
    kern = functools.partial(_fused_kernel, depth=depth, growth=growth,
                             in_ch=in_ch, C=C, TL=TL, flen=flen, fb=fb,
                             collapse=collapse)
    out = pl.pallas_call(
        kern,
        out_shape=jax.ShapeDtypeStruct((n_tiles, nf, out_cols), x.dtype),
        grid=(n_tiles,),
        in_specs=[pl.BlockSpec((1, in_ch, C * TL), lambda j: (j, 0, 0))]
                 + [_full_spec(a) for a in flat],
        out_specs=pl.BlockSpec((1, nf, out_cols), lambda j: (j, 0, 0)),
        scratch_shapes=[pltpu.VMEM((nf, C * TL), jnp.float32),        # feature stack
                        pltpu.VMEM((flen * fb, C * TL), jnp.float32)],  # stacked H-conv operand
        compiler_params=pltpu.CompilerParams(
            dimension_semantics=("parallel",),       # lane tiles shard across TCs
            vmem_limit_bytes=32 * 1024 * 1024),
    )(xt, *flat)

    if collapse:
        o = jnp.transpose(out, (1, 0, 2)).reshape(nf, Lp)[:, :BT]
        return jnp.transpose(o.reshape(nf, B, T), (1, 0, 2))        # (B, nf, T)
    o = jnp.transpose(out.reshape(n_tiles, nf, C, TL), (1, 2, 0, 3))
    o = o.reshape(nf, C, Lp)[:, :, :BT]
    return jnp.transpose(o.reshape(nf, C, B, T), (2, 0, 1, 3))      # (B, nf, C, T)


# -----------------------------------------------------------------------------
# Deterministic parameter init (synthetic; shapes per the module's __init__)
# -----------------------------------------------------------------------------
def init_params(key, channels, growth, depth, in_ch=1, bottleneck=4, filter_len=5):
    def bn_params(k, n):
        k1, k2, k3, k4 = jax.random.split(k, 4)
        gamma = jax.random.uniform(k1, (n,), jnp.float32, 0.5, 1.5)
        beta = 0.1 * jax.random.normal(k2, (n,), jnp.float32)
        mean = 0.1 * jax.random.normal(k3, (n,), jnp.float32)
        var = jax.random.uniform(k4, (n,), jnp.float32, 0.5, 1.5)
        return gamma, beta, mean, var

    params = {"dense": []}
    for d in range(depth):
        fin = in_ch + growth * d
        fb = bottleneck * growth
        key, k0, k1, k2, k3, k4, k5 = jax.random.split(key, 7)
        params["dense"].append({
            "bn1": bn_params(k0, fin),
            "w1": 0.2 * jax.random.normal(k1, (fb, fin), jnp.float32),
            "b1": 0.1 * jax.random.normal(k2, (fb,), jnp.float32),
            "bn2": bn_params(k3, fb),
            "w2": 0.2 * jax.random.normal(k4, (growth, fb, filter_len, 1), jnp.float32),
            "b2": 0.1 * jax.random.normal(k5, (growth,), jnp.float32),
        })
    nf = in_ch + growth * depth
    key, kc, kb = jax.random.split(key, 3)
    params["collapse"] = {
        "wc": 0.2 * jax.random.normal(kc, (nf, nf, channels, 1), jnp.float32),
        "bn": bn_params(kb, nf),
    }
    return params


# -----------------------------------------------------------------------------
# Pure-JAX reference (lax.conv, full f32 precision) to verify the Pallas kernel
# -----------------------------------------------------------------------------
def _bn_eval(x, bn):
    gamma, beta, mean, var = bn
    s = gamma / jnp.sqrt(var + BN_EPS)
    return x * s[None, :, None, None] + (beta - mean * s)[None, :, None, None]


def dense_spatial_filter_reference(x, params, collapse=True):
    if x.ndim < 4:
        x = jnp.transpose(x[:, None], (0, 1, 3, 2))
    dn = ("NCHW", "OIHW", "NCHW")
    h = x
    for p in params["dense"]:
        y = _leaky(_bn_eval(h, p["bn1"]))
        z = lax.conv_general_dilated(y, p["w1"][:, :, None, None], (1, 1), "VALID",
                                     dimension_numbers=dn,
                                     precision=lax.Precision.HIGHEST)
        z = z + p["b1"][None, :, None, None]
        z = _leaky(_bn_eval(z, p["bn2"]))
        flen = p["w2"].shape[2]
        o = lax.conv_general_dilated(z, p["w2"], (1, 1),
                                     ((flen // 2, flen // 2), (0, 0)),
                                     dimension_numbers=dn,
                                     precision=lax.Precision.HIGHEST)
        o = o + p["b2"][None, :, None, None]
        h = jnp.concatenate([h, o], axis=1)
    if not collapse:
        return h
    pc = params["collapse"]
    v = lax.conv_general_dilated(h, pc["wc"], (1, 1), "VALID",
                                 dimension_numbers=dn,
                                 precision=lax.Precision.HIGHEST)
    v = _leaky(v)
    v = _bn_eval(v, pc["bn"])
    return jnp.squeeze(v, axis=2)


if __name__ == "__main__":
    # TODO(synk): training-mode Dropout2d / BatchNorm batch-stat updates are not
    # implemented; forward is inference-mode (dropout=identity, BN folded).
    B, in_ch, channels, T = 2, 1, 8, 16          # x: (B, in_ch, EEG channels, time)
    growth, depth, bottleneck = 4, 2, 4          # n_filters = in_ch + growth*depth = 9

    key = jax.random.PRNGKey(0)
    kx, kp = jax.random.split(key)
    x = jax.random.normal(kx, (B, in_ch, channels, T), jnp.float32)
    params = init_params(kp, channels, growth, depth, in_ch, bottleneck)

    out = jax.block_until_ready(dense_spatial_filter_forward(x, params))
    ref = jax.block_until_ready(dense_spatial_filter_reference(x, params))

    assert out.shape == (B, in_ch + growth * depth, T), out.shape
    err = float(jnp.max(jnp.abs(out - ref)))
    # Tolerance sized for default-precision (single-pass bf16) MXU matmuls with
    # f32 accumulation, compared against the full-f32 lax.conv reference.
    tol = 3e-2 * float(jnp.max(jnp.abs(ref))) + 1e-3
    assert err < tol, f"max abs err {err} (tol {tol})"
    print("KERNEL_OK")
</pallas_src>

<mosaic_0001>
module attributes {stable_mosaic.version = 11 : i64} {
  func.func @_fused_kernel(%arg0: i32, %arg1: memref<1x1x1024xf32, #tpu.memory_space<vmem>>, %arg2: memref<1x1xf32, #tpu.memory_space<vmem>>, %arg3: memref<1x1xf32, #tpu.memory_space<vmem>>, %arg4: memref<16x1xf32, #tpu.memory_space<vmem>>, %arg5: memref<16x1xf32, #tpu.memory_space<vmem>>, %arg6: memref<4x80xf32, #tpu.memory_space<vmem>>, %arg7: memref<4x1xf32, #tpu.memory_space<vmem>>, %arg8: memref<5x1xf32, #tpu.memory_space<vmem>>, %arg9: memref<5x1xf32, #tpu.memory_space<vmem>>, %arg10: memref<16x5xf32, #tpu.memory_space<vmem>>, %arg11: memref<16x1xf32, #tpu.memory_space<vmem>>, %arg12: memref<4x80xf32, #tpu.memory_space<vmem>>, %arg13: memref<4x1xf32, #tpu.memory_space<vmem>>, %arg14: memref<8x9x9xf32, #tpu.memory_space<vmem>>, %arg15: memref<9x1xf32, #tpu.memory_space<vmem>>, %arg16: memref<9x1xf32, #tpu.memory_space<vmem>>, %arg17: memref<1x9x128xf32, #tpu.memory_space<vmem>>, %arg18: memref<9x1024xf32, #tpu.memory_space<vmem>>, %arg19: memref<80x1024xf32, #tpu.memory_space<vmem>>) attributes {dimension_semantics = [#tpu.dimension_semantics<parallel>], iteration_bounds = array<i64: 1>, scalar_prefetch = 0 : i64, scratch_operands = 2 : i64, tpu.core_type = #tpu.core_type<tc>, window_params = [{transform_indices = @transform_0, window_bounds = array<i64: 1, 1, 1024>}, {pipeline_mode = #tpu.pipeline_mode<synchronous>, transform_indices = @transform_1, window_bounds = array<i64: 1, 1>}, {pipeline_mode = #tpu.pipeline_mode<synchronous>, transform_indices = @transform_2, window_bounds = array<i64: 1, 1>}, {pipeline_mode = #tpu.pipeline_mode<synchronous>, transform_indices = @transform_3, window_bounds = array<i64: 16, 1>}, {pipeline_mode = #tpu.pipeline_mode<synchronous>, transform_indices = @transform_4, window_bounds = array<i64: 16, 1>}, {pipeline_mode = #tpu.pipeline_mode<synchronous>, transform_indices = @transform_5, window_bounds = array<i64: 4, 80>}, {pipeline_mode = #tpu.pipeline_mode<synchronous>, transform_indices = @transform_6, window_bounds = array<i64: 4, 1>}, {pipeline_mode = #tpu.pipeline_mode<synchronous>, transform_indices = @transform_7, window_bounds = array<i64: 5, 1>}, {pipeline_mode = #tpu.pipeline_mode<synchronous>, transform_indices = @transform_8, window_bounds = array<i64: 5, 1>}, {pipeline_mode = #tpu.pipeline_mode<synchronous>, transform_indices = @transform_9, window_bounds = array<i64: 16, 5>}, {pipeline_mode = #tpu.pipeline_mode<synchronous>, transform_indices = @transform_10, window_bounds = array<i64: 16, 1>}, {pipeline_mode = #tpu.pipeline_mode<synchronous>, transform_indices = @transform_11, window_bounds = array<i64: 4, 80>}, {pipeline_mode = #tpu.pipeline_mode<synchronous>, transform_indices = @transform_12, window_bounds = array<i64: 4, 1>}, {pipeline_mode = #tpu.pipeline_mode<synchronous>, transform_indices = @transform_13, window_bounds = array<i64: 8, 9, 9>}, {pipeline_mode = #tpu.pipeline_mode<synchronous>, transform_indices = @transform_14, window_bounds = array<i64: 9, 1>}, {pipeline_mode = #tpu.pipeline_mode<synchronous>, transform_indices = @transform_15, window_bounds = array<i64: 9, 1>}, {transform_indices = @transform_16, window_bounds = array<i64: 1, 9, 128>}]} {
    %c0 = arith.constant 0 : index
    %c0_0 = arith.constant 0 : index
    %c0_1 = arith.constant 0 : index
    %0 = vector.load %arg1[%c0, %c0_0, %c0_1] : memref<1x1x1024xf32, #tpu.memory_space<vmem>>, vector<1x1x1024xf32>
    %1 = vector.shape_cast %0 : vector<1x1x1024xf32> to vector<1x1024xf32>
    %c0_2 = arith.constant 0 : index
    %c0_3 = arith.constant 0 : index
    %2 = vector.load %arg18[%c0_2, %c0_3] : memref<9x1024xf32, #tpu.memory_space<vmem>>, vector<1x1024xf32>
    tpu.vector_store %arg18[%c0_2, %c0_3], %1 {strides = array<i32>} : memref<9x1024xf32, #tpu.memory_space<vmem>>, vector<1x1024xf32>,
    %cst = arith.constant 0.000000e+00 : f32
    %3 = vector.broadcast %cst : f32 to vector<16x256xf32>
    %c0_4 = arith.constant 0 : index
    %c0_5 = arith.constant 0 : index
    %4 = vector.load %arg19[%c0_4, %c0_5] : memref<80x1024xf32, #tpu.memory_space<vmem>>, vector<16x256xf32>
    tpu.vector_store %arg19[%c0_4, %c0_5], %3 {strides = array<i32>} : memref<80x1024xf32, #tpu.memory_space<vmem>>, vector<16x256xf32>,
    %cst_6 = arith.constant 0.000000e+00 : f32
    %5 = vector.broadcast %cst_6 : f32 to vector<16x128xf32>
    %c16 = arith.constant 16 : index
    %c0_7 = arith.constant 0 : index
    %6 = vector.load %arg19[%c16, %c0_7] : memref<80x1024xf32, #tpu.memory_space<vmem>>, vector<16x128xf32>
    tpu.vector_store %arg19[%c16, %c0_7], %5 {strides = array<i32>} : memref<80x1024xf32, #tpu.memory_space<vmem>>, vector<16x128xf32>,
    %cst_8 = arith.constant 0.000000e+00 : f32
    %7 = vector.broadcast %cst_8 : f32 to vector<16x128xf32>
    %c48 = arith.constant 48 : index
    %c896 = arith.constant 896 : index
    %8 = vector.load %arg19[%c48, %c896] : memref<80x1024xf32, #tpu.memory_space<vmem>>, vector<16x128xf32>
    tpu.vector_store %arg19[%c48, %c896], %7 {strides = array<i32>} : memref<80x1024xf32, #tpu.memory_space<vmem>>, vector<16x128xf32>,
    %cst_9 = arith.constant 0.000000e+00 : f32
    %9 = vector.broadcast %cst_9 : f32 to vector<16x256xf32>
    %c64 = arith.constant 64 : index
    %c768 = arith.constant 768 : index
    %10 = vector.load %arg19[%c64, %c768] : memref<80x1024xf32, #tpu.memory_space<vmem>>, vector<16x256xf32>
    tpu.vector_store %arg19[%c64, %c768], %9 {strides = array<i32>} : memref<80x1024xf32, #tpu.memory_space<vmem>>, vector<16x256xf32>,
    %c0_10 = arith.constant 0 : index
    %c0_11 = arith.constant 0 : index
    %11 = vector.load %arg18[%c0_10, %c0_11] : memref<9x1024xf32, #tpu.memory_space<vmem>>, vector<1x1024xf32>
    %c0_12 = arith.constant 0 : index
    %c0_13 = arith.constant 0 : index
    %12 = vector.load %arg2[%c0_12, %c0_13] : memref<1x1xf32, #tpu.memory_space<vmem>>, vector<1x1xf32>
    %13 = vector.broadcast %12 : vector<1x1xf32> to vector<1x1024xf32>
    %14 = arith.mulf %11, %13 : vector<1x1024xf32>
    %c0_14 = arith.constant 0 : index
    %c0_15 = arith.constant 0 : index
    %15 = vector.load %arg3[%c0_14, %c0_15] : memref<1x1xf32, #tpu.memory_space<vmem>>, vector<1x1xf32>
    %16 = vector.broadcast %15 : vector<1x1xf32> to vector<1x1024xf32>
    %17 = arith.addf %14, %16 : vector<1x1024xf32>
    %cst_16 = arith.constant 0.000000e+00 : f32
    %18 = vector.broadcast %cst_16 : f32 to vector<1x1024xf32>
    %19 = arith.cmpf ogt, %17, %18 : vector<1x1024xf32>
    %cst_17 = arith.constant 0.00999999977 : f32
    %20 = vector.broadcast %cst_17 : f32 to vector<1x1024xf32>
    %21 = arith.mulf %20, %17 : vector<1x1024xf32>
    %22 = arith.select %19, %17, %21 : vector<1x1024xi1>, vector<1x1024xf32>
    %c0_18 = arith.constant 0 : index
    %c0_19 = arith.constant 0 : index
    %23 = vector.load %arg4[%c0_18, %c0_19] : memref<16x1xf32, #tpu.memory_space<vmem>>, vector<16x1xf32>
    %cst_20 = arith.constant dense<0.000000e+00> : vector<16x1024xf32>
    %24 = tpu.matmul %23, %22, %cst_20 {dimension_numbers = #tpu.dot_dimension_numbers<[1], [0], [0], [1], [0, 0, 1, 1], [], []>} : vector<16x1xf32>, vector<1x1024xf32>, vector<16x1024xf32> -> vector<16x1024xf32>
    %c0_21 = arith.constant 0 : index
    %c0_22 = arith.constant 0 : index
    %25 = vector.load %arg5[%c0_21, %c0_22] : memref<16x1xf32, #tpu.memory_space<vmem>>, vector<16x1xf32>
    %26 = vector.broadcast %25 : vector<16x1xf32> to vector<16x1024xf32>
    %27 = arith.addf %24, %26 : vector<16x1024xf32>
    %cst_23 = arith.constant 0.000000e+00 : f32
    %28 = vector.broadcast %cst_23 : f32 to vector<16x1024xf32>
    %29 = arith.cmpf ogt, %27, %28 : vector<16x1024xf32>
    %cst_24 = arith.constant 0.00999999977 : f32
    %30 = vector.broadcast %cst_24 : f32 to vector<16x1024xf32>
    %31 = arith.mulf %30, %27 : vector<16x1024xf32>
    %32 = arith.select %29, %27, %31 : vector<16x1024xi1>, vector<16x1024xf32>
    %33 = vector.extract_strided_slice %32 {offsets = [0, 0], sizes = [16, 768], strides = [1, 1]} : vector<16x1024xf32> to vector<16x768xf32>
    %c0_25 = arith.constant 0 : index
    %c256 = arith.constant 256 : index
    %34 = vector.load %arg19[%c0_25, %c256] : memref<80x1024xf32, #tpu.memory_space<vmem>>, vector<16x768xf32>
    tpu.vector_store %arg19[%c0_25, %c256], %33 {strides = array<i32>} : memref<80x1024xf32, #tpu.memory_space<vmem>>, vector<16x768xf32>,
    %35 = vector.extract_strided_slice %32 {offsets = [0, 0], sizes = [16, 896], strides = [1, 1]} : vector<16x1024xf32> to vector<16x896xf32>
    %c16_26 = arith.constant 16 : index
    %c128 = arith.constant 128 : index
    %36 = vector.load %arg19[%c16_26, %c128] : memref<80x1024xf32, #tpu.memory_space<vmem>>, vector<16x896xf32>
    tpu.vector_store %arg19[%c16_26, %c128], %35 {strides = array<i32>} : memref<80x1024xf32, #tpu.memory_space<vmem>>, vector<16x896xf32>,
    %c32 = arith.constant 32 : index
    %c0_27 = arith.constant 0 : index
    %37 = vector.load %arg19[%c32, %c0_27] : memref<80x1024xf32, #tpu.memory_space<vmem>>, vector<16x1024xf32>
    tpu.vector_store %arg19[%c32, %c0_27], %32 {strides = array<i32>} : memref<80x1024xf32, #tpu.memory_space<vmem>>, vector<16x1024xf32>,
    %38 = vector.extract_strided_slice %32 {offsets = [0, 128], sizes = [16, 896], strides = [1, 1]} : vector<16x1024xf32> to vector<16x896xf32>
    %c48_28 = arith.constant 48 : index
    %c0_29 = arith.constant 0 : index
    %39 = vector.load %arg19[%c48_28, %c0_29] : memref<80x1024xf32, #tpu.memory_space<vmem>>, vector<16x896xf32>
    tpu.vector_store %arg19[%c48_28, %c0_29], %38 {strides = array<i32>} : memref<80x1024xf32, #tpu.memory_space<vmem>>, vector<16x896xf32>,
    %40 = vector.extract_strided_slice %32 {offsets = [0, 256], sizes = [16, 768], strides = [1, 1]} : vector<16x1024xf32> to vector<16x768xf32>
    %c64_30 = arith.constant 64 : index
    %c0_31 = arith.constant 0 : index
    %41 = vector.load %arg19[%c64_30, %c0_31] : memref<80x1024xf32, #tpu.memory_space<vmem>>, vector<16x768xf32>
    tpu.vector_store %arg19[%c64_30, %c0_31], %40 {strides = array<i32>} : memref<80x1024xf32, #tpu.memory_space<vmem>>, vector<16x768xf32>,
    %c0_32 = arith.constant 0 : index
    %c0_33 = arith.constant 0 : index
    %42 = vector.load %arg6[%c0_32, %c0_33] : memref<4x80xf32, #tpu.memory_space<vmem>>, vector<4x80xf32>
    %c0_34 = arith.constant 0 : index
    %c0_35 = arith.constant 0 : index
    %43 = vector.load %arg19[%c0_34, %c0_35] : memref<80x1024xf32, #tpu.memory_space<vmem>>, vector<80x1024xf32>
    %cst_36 = arith.constant dense<0.000000e+00> : vector<4x1024xf32>
    %44 = tpu.matmul %42, %43, %cst_36 {dimension_numbers = #tpu.dot_dimension_numbers<[1], [0], [0], [1], [0, 0, 1, 1], [], []>} : vector<4x80xf32>, vector<80x1024xf32>, vector<4x1024xf32> -> vector<4x1024xf32>
    %c0_37 = arith.constant 0 : index
    %c0_38 = arith.constant 0 : index
    %45 = vector.load %arg7[%c0_37, %c0_38] : memref<4x1xf32, #tpu.memory_space<vmem>>, vector<4x1xf32>
    %46 = vector.broadcast %45 : vector<4x1xf32> to vector<4x1024xf32>
    %47 = arith.addf %44, %46 : vector<4x1024xf32>
    %c1 = arith.constant 1 : index
    %c0_39 = arith.constant 0 : index
    %48 = vector.load %arg18[%c1, %c0_39] : memref<9x1024xf32, #tpu.memory_space<vmem>>, vector<4x1024xf32>
    tpu.vector_store %arg18[%c1, %c0_39], %47 {strides = array<i32>} : memref<9x1024xf32, #tpu.memory_space<vmem>>, vector<4x1024xf32>,
    %c0_40 = arith.constant 0 : index
    %c0_41 = arith.constant 0 : index
    %49 = vector.load %arg18[%c0_40, %c0_41] : memref<9x1024xf32, #tpu.memory_space<vmem>>, vector<5x1024xf32>
    %c0_42 = arith.constant 0 : index
    %c0_43 = arith.constant 0 : index
    %50 = vector.load %arg8[%c0_42, %c0_43] : memref<5x1xf32, #tpu.memory_space<vmem>>, vector<5x1xf32>
    %51 = vector.broadcast %50 : vector<5x1xf32> to vector<5x1024xf32>
    %52 = arith.mulf %49, %51 : vector<5x1024xf32>
    %c0_44 = arith.constant 0 : index
    %c0_45 = arith.constant 0 : index
    %53 = vector.load %arg9[%c0_44, %c0_45] : memref<5x1xf32, #tpu.memory_space<vmem>>, vector<5x1xf32>
    %54 = vector.broadcast %53 : vector<5x1xf32> to vector<5x1024xf32>
    %55 = arith.addf %52, %54 : vector<5x1024xf32>
    %cst_46 = arith.constant 0.000000e+00 : f32
    %56 = vector.broadcast %cst_46 : f32 to vector<5x1024xf32>
    %57 = arith.cmpf ogt, %55, %56 : vector<5x1024xf32>
    %cst_47 = arith.constant 0.00999999977 : f32
    %58 = vector.broadcast %cst_47 : f32 to vector<5x1024xf32>
    %59 = arith.mulf %58, %55 : vector<5x1024xf32>
    %60 = arith.select %57, %55, %59 : vector<5x1024xi1>, vector<5x1024xf32>
    %c0_48 = arith.constant 0 : index
    %c0_49 = arith.constant 0 : index
    %61 = vector.load %arg10[%c0_48, %c0_49] : memref<16x5xf32, #tpu.memory_space<vmem>>, vector<16x5xf32>
    %cst_50 = arith.constant dense<0.000000e+00> : vector<16x1024xf32>
    %62 = tpu.matmul %61, %60, %cst_50 {dimension_numbers = #tpu.dot_dimension_numbers<[1], [0], [0], [1], [0, 0, 1, 1], [], []>} : vector<16x5xf32>, vector<5x1024xf32>, vector<16x1024xf32> -> vector<16x1024xf32>
    %c0_51 = arith.constant 0 : index
    %c0_52 = arith.constant 0 : index
    %63 = vector.load %arg11[%c0_51, %c0_52] : memref<16x1xf32, #tpu.memory_space<vmem>>, vector<16x1xf32>
    %64 = vector.broadcast %63 : vector<16x1xf32> to vector<16x1024xf32>
    %65 = arith.addf %62, %64 : vector<16x1024xf32>
    %cst_53 = arith.constant 0.000000e+00 : f32
    %66 = vector.broadcast %cst_53 : f32 to vector<16x1024xf32>
    %67 = arith.cmpf ogt, %65, %66 : vector<16x1024xf32>
    %cst_54 = arith.constant 0.00999999977 : f32
    %68 = vector.broadcast %cst_54 : f32 to vector<16x1024xf32>
    %69 = arith.mulf %68, %65 : vector<16x1024xf32>
    %70 = arith.select %67, %65, %69 : vector<16x1024xi1>, vector<16x1024xf32>
    %71 = vector.extract_strided_slice %70 {offsets = [0, 0], sizes = [16, 768], strides = [1, 1]} : vector<16x1024xf32> to vector<16x768xf32>
    %c0_55 = arith.constant 0 : index
    %c256_56 = arith.constant 256 : index
    %72 = vector.load %arg19[%c0_55, %c256_56] : memref<80x1024xf32, #tpu.memory_space<vmem>>, vector<16x768xf32>
    tpu.vector_store %arg19[%c0_55, %c256_56], %71 {strides = array<i32>} : memref<80x1024xf32, #tpu.memory_space<vmem>>, vector<16x768xf32>,
    %73 = vector.extract_strided_slice %70 {offsets = [0, 0], sizes = [16, 896], strides = [1, 1]} : vector<16x1024xf32> to vector<16x896xf32>
    %c16_57 = arith.constant 16 : index
    %c128_58 = arith.constant 128 : index
    %74 = vector.load %arg19[%c16_57, %c128_58] : memref<80x1024xf32, #tpu.memory_space<vmem>>, vector<16x896xf32>
    tpu.vector_store %arg19[%c16_57, %c128_58], %73 {strides = array<i32>} : memref<80x1024xf32, #tpu.memory_space<vmem>>, vector<16x896xf32>,
    %c32_59 = arith.constant 32 : index
    %c0_60 = arith.constant 0 : index
    %75 = vector.load %arg19[%c32_59, %c0_60] : memref<80x1024xf32, #tpu.memory_space<vmem>>, vector<16x1024xf32>
    tpu.vector_store %arg19[%c32_59, %c0_60], %70 {strides = array<i32>} : memref<80x1024xf32, #tpu.memory_space<vmem>>, vector<16x1024xf32>,
    %76 = vector.extract_strided_slice %70 {offsets = [0, 128], sizes = [16, 896], strides = [1, 1]} : vector<16x1024xf32> to vector<16x896xf32>
    %c48_61 = arith.constant 48 : index
    %c0_62 = arith.constant 0 : index
    %77 = vector.load %arg19[%c48_61, %c0_62] : memref<80x1024xf32, #tpu.memory_space<vmem>>, vector<16x896xf32>
    tpu.vector_store %arg19[%c48_61, %c0_62], %76 {strides = array<i32>} : memref<80x1024xf32, #tpu.memory_space<vmem>>, vector<16x896xf32>,
    %78 = vector.extract_strided_slice %70 {offsets = [0, 256], sizes = [16, 768], strides = [1, 1]} : vector<16x1024xf32> to vector<16x768xf32>
    %c64_63 = arith.constant 64 : index
    %c0_64 = arith.constant 0 : index
    %79 = vector.load %arg19[%c64_63, %c0_64] : memref<80x1024xf32, #tpu.memory_space<vmem>>, vector<16x768xf32>
    tpu.vector_store %arg19[%c64_63, %c0_64], %78 {strides = array<i32>} : memref<80x1024xf32, #tpu.memory_space<vmem>>, vector<16x768xf32>,
    %c0_65 = arith.constant 0 : index
    %c0_66 = arith.constant 0 : index
    %80 = vector.load %arg12[%c0_65, %c0_66] : memref<4x80xf32, #tpu.memory_space<vmem>>, vector<4x80xf32>
    %c0_67 = arith.constant 0 : index
    %c0_68 = arith.constant 0 : index
    %81 = vector.load %arg19[%c0_67, %c0_68] : memref<80x1024xf32, #tpu.memory_space<vmem>>, vector<80x1024xf32>
    %cst_69 = arith.constant dense<0.000000e+00> : vector<4x1024xf32>
    %82 = tpu.matmul %80, %81, %cst_69 {dimension_numbers = #tpu.dot_dimension_numbers<[1], [0], [0], [1], [0, 0, 1, 1], [], []>} : vector<4x80xf32>, vector<80x1024xf32>, vector<4x1024xf32> -> vector<4x1024xf32>
    %c0_70 = arith.constant 0 : index
    %c0_71 = arith.constant 0 : index
    %83 = vector.load %arg13[%c0_70, %c0_71] : memref<4x1xf32, #tpu.memory_space<vmem>>, vector<4x1xf32>
    %84 = vector.broadcast %83 : vector<4x1xf32> to vector<4x1024xf32>
    %85 = arith.addf %82, %84 : vector<4x1024xf32>
    %c5 = arith.constant 5 : index
    %c0_72 = arith.constant 0 : index
    %86 = vector.load %arg18[%c5, %c0_72] : memref<9x1024xf32, #tpu.memory_space<vmem>>, vector<4x1024xf32>
    tpu.vector_store %arg18[%c5, %c0_72], %85 {strides = array<i32>} : memref<9x1024xf32, #tpu.memory_space<vmem>>, vector<4x1024xf32>,
    %c0_73 = arith.constant 0 : index
    %c0_74 = arith.constant 0 : index
    %87 = vector.load %arg18[%c0_73, %c0_74] : memref<9x1024xf32, #tpu.memory_space<vmem>>, vector<9x1024xf32>
    %cst_75 = arith.constant 0.000000e+00 : f32
    %88 = vector.broadcast %cst_75 : f32 to vector<9x128xf32>
    %c0_76 = arith.constant 0 : index
    %c0_77 = arith.constant 0 : index
    %c0_78 = arith.constant 0 : index
    %89 = vector.load %arg14[%c0_76, %c0_77, %c0_78] : memref<8x9x9xf32, #tpu.memory_space<vmem>>, vector<1x9x9xf32>
    %90 = vector.shape_cast %89 : vector<1x9x9xf32> to vector<9x9xf32>
    %91 = vector.extract_strided_slice %87 {offsets = [0, 0], sizes = [9, 128], strides = [1, 1]} : vector<9x1024xf32> to vector<9x128xf32>
    %cst_79 = arith.constant dense<0.000000e+00> : vector<9x128xf32>
    %92 = tpu.matmul %90, %91, %cst_79 {dimension_numbers = #tpu.dot_dimension_numbers<[1], [0], [0], [1], [0, 0, 1, 1], [], []>} : vector<9x9xf32>, vector<9x128xf32>, vector<9x128xf32> -> vector<9x128xf32>
    %93 = arith.addf %88, %92 : vector<9x128xf32>
    %c1_80 = arith.constant 1 : index
    %c0_81 = arith.constant 0 : index
    %c0_82 = arith.constant 0 : index
    %94 = vector.load %arg14[%c1_80, %c0_81, %c0_82] : memref<8x9x9xf32, #tpu.memory_space<vmem>>, vector<1x9x9xf32>
    %95 = vector.shape_cast %94 : vector<1x9x9xf32> to vector<9x9xf32>
    %96 = vector.extract_strided_slice %87 {offsets = [0, 128], sizes = [9, 128], strides = [1, 1]} : vector<9x1024xf32> to vector<9x128xf32>
    %cst_83 = arith.constant dense<0.000000e+00> : vector<9x128xf32>
    %97 = tpu.matmul %95, %96, %cst_83 {dimension_numbers = #tpu.dot_dimension_numbers<[1], [0], [0], [1], [0, 0, 1, 1], [], []>} : vector<9x9xf32>, vector<9x128xf32>, vector<9x128xf32> -> vector<9x128xf32>
    %98 = arith.addf %93, %97 : vector<9x128xf32>
    %c2 = arith.constant 2 : index
    %c0_84 = arith.constant 0 : index
    %c0_85 = arith.constant 0 : index
    %99 = vector.load %arg14[%c2, %c0_84, %c0_85] : memref<8x9x9xf32, #tpu.memory_space<vmem>>, vector<1x9x9xf32>
    %100 = vector.shape_cast %99 : vector<1x9x9xf32> to vector<9x9xf32>
    %101 = vector.extract_strided_slice %87 {offsets = [0, 256], sizes = [9, 128], strides = [1, 1]} : vector<9x1024xf32> to vector<9x128xf32>
    %cst_86 = arith.constant dense<0.000000e+00> : vector<9x128xf32>
    %102 = tpu.matmul %100, %101, %cst_86 {dimension_numbers = #tpu.dot_dimension_numbers<[1], [0], [0], [1], [0, 0, 1, 1], [], []>} : vector<9x9xf32>, vector<9x128xf32>, vector<9x128xf32> -> vector<9x128xf32>
    %103 = arith.addf %98, %102 : vector<9x128xf32>
    %c3 = arith.constant 3 : index
    %c0_87 = arith.constant 0 : index
    %c0_88 = arith.constant 0 : index
    %104 = vector.load %arg14[%c3, %c0_87, %c0_88] : memref<8x9x9xf32, #tpu.memory_space<vmem>>, vector<1x9x9xf32>
    %105 = vector.shape_cast %104 : vector<1x9x9xf32> to vector<9x9xf32>
    %106 = vector.extract_strided_slice %87 {offsets = [0, 384], sizes = [9, 128], strides = [1, 1]} : vector<9x1024xf32> to vector<9x128xf32>
    %cst_89 = arith.constant dense<0.000000e+00> : vector<9x128xf32>
    %107 = tpu.matmul %105, %106, %cst_89 {dimension_numbers = #tpu.dot_dimension_numbers<[1], [0], [0], [1], [0, 0, 1, 1], [], []>} : vector<9x9xf32>, vector<9x128xf32>, vector<9x128xf32> -> vector<9x128xf32>
    %108 = arith.addf %103, %107 : vector<9x128xf32>
    %c4 = arith.constant 4 : index
    %c0_90 = arith.constant 0 : index
    %c0_91 = arith.constant 0 : index
    %109 = vector.load %arg14[%c4, %c0_90, %c0_91] : memref<8x9x9xf32, #tpu.memory_space<vmem>>, vector<1x9x9xf32>
    %110 = vector.shape_cast %109 : vector<1x9x9xf32> to vector<9x9xf32>
    %111 = vector.extract_strided_slice %87 {offsets = [0, 512], sizes = [9, 128], strides = [1, 1]} : vector<9x1024xf32> to vector<9x128xf32>
    %cst_92 = arith.constant dense<0.000000e+00> : vector<9x128xf32>
    %112 = tpu.matmul %110, %111, %cst_92 {dimension_numbers = #tpu.dot_dimension_numbers<[1], [0], [0], [1], [0, 0, 1, 1], [], []>} : vector<9x9xf32>, vector<9x128xf32>, vector<9x128xf32> -> vector<9x128xf32>
    %113 = arith.addf %108, %112 : vector<9x128xf32>
    %c5_93 = arith.constant 5 : index
    %c0_94 = arith.constant 0 : index
    %c0_95 = arith.constant 0 : index
    %114 = vector.load %arg14[%c5_93, %c0_94, %c0_95] : memref<8x9x9xf32, #tpu.memory_space<vmem>>, vector<1x9x9xf32>
    %115 = vector.shape_cast %114 : vector<1x9x9xf32> to vector<9x9xf32>
    %116 = vector.extract_strided_slice %87 {offsets = [0, 640], sizes = [9, 128], strides = [1, 1]} : vector<9x1024xf32> to vector<9x128xf32>
    %cst_96 = arith.constant dense<0.000000e+00> : vector<9x128xf32>
    %117 = tpu.matmul %115, %116, %cst_96 {dimension_numbers = #tpu.dot_dimension_numbers<[1], [0], [0], [1], [0, 0, 1, 1], [], []>} : vector<9x9xf32>, vector<9x128xf32>, vector<9x128xf32> -> vector<9x128xf32>
    %118 = arith.addf %113, %117 : vector<9x128xf32>
    %c6 = arith.constant 6 : index
    %c0_97 = arith.constant 0 : index
    %c0_98 = arith.constant 0 : index
    %119 = vector.load %arg14[%c6, %c0_97, %c0_98] : memref<8x9x9xf32, #tpu.memory_space<vmem>>, vector<1x9x9xf32>
    %120 = vector.shape_cast %119 : vector<1x9x9xf32> to vector<9x9xf32>
    %121 = vector.extract_strided_slice %87 {offsets = [0, 768], sizes = [9, 128], strides = [1, 1]} : vector<9x1024xf32> to vector<9x128xf32>
    %cst_99 = arith.constant dense<0.000000e+00> : vector<9x128xf32>
    %122 = tpu.matmul %120, %121, %cst_99 {dimension_numbers = #tpu.dot_dimension_numbers<[1], [0], [0], [1], [0, 0, 1, 1], [], []>} : vector<9x9xf32>, vector<9x128xf32>, vector<9x128xf32> -> vector<9x128xf32>
    %123 = arith.addf %118, %122 : vector<9x128xf32>
    %c7 = arith.constant 7 : index
    %c0_100 = arith.constant 0 : index
    %c0_101 = arith.constant 0 : index
    %124 = vector.load %arg14[%c7, %c0_100, %c0_101] : memref<8x9x9xf32, #tpu.memory_space<vmem>>, vector<1x9x9xf32>
    %125 = vector.shape_cast %124 : vector<1x9x9xf32> to vector<9x9xf32>
    %126 = vector.extract_strided_slice %87 {offsets = [0, 896], sizes = [9, 128], strides = [1, 1]} : vector<9x1024xf32> to vector<9x128xf32>
    %cst_102 = arith.constant dense<0.000000e+00> : vector<9x128xf32>
    %127 = tpu.matmul %125, %126, %cst_102 {dimension_numbers = #tpu.dot_dimension_numbers<[1], [0], [0], [1], [0, 0, 1, 1], [], []>} : vector<9x9xf32>, vector<9x128xf32>, vector<9x128xf32> -> vector<9x128xf32>
    %128 = arith.addf %123, %127 : vector<9x128xf32>
    %cst_103 = arith.constant 0.000000e+00 : f32
    %129 = vector.broadcast %cst_103 : f32 to vector<9x128xf32>
    %130 = arith.cmpf ogt, %128, %129 : vector<9x128xf32>
    %cst_104 = arith.constant 0.00999999977 : f32
    %131 = vector.broadcast %cst_104 : f32 to vector<9x128xf32>
    %132 = arith.mulf %131, %128 : vector<9x128xf32>
    %133 = arith.select %130, %128, %132 : vector<9x128xi1>, vector<9x128xf32>
    %c0_105 = arith.constant 0 : index
    %c0_106 = arith.constant 0 : index
    %134 = vector.load %arg15[%c0_105, %c0_106] : memref<9x1xf32, #tpu.memory_space<vmem>>, vector<9x1xf32>
    %135 = vector.broadcast %134 : vector<9x1xf32> to vector<9x128xf32>
    %136 = arith.mulf %133, %135 : vector<9x128xf32>
    %c0_107 = arith.constant 0 : index
    %c0_108 = arith.constant 0 : index
    %137 = vector.load %arg16[%c0_107, %c0_108] : memref<9x1xf32, #tpu.memory_space<vmem>>, vector<9x1xf32>
    %138 = vector.broadcast %137 : vector<9x1xf32> to vector<9x128xf32>
    %139 = arith.addf %136, %138 : vector<9x128xf32>
    %c0_109 = arith.constant 0 : index
    %c0_110 = arith.constant 0 : index
    %c0_111 = arith.constant 0 : index
    %140 = vector.load %arg17[%c0_109, %c0_110, %c0_111] : memref<1x9x128xf32, #tpu.memory_space<vmem>>, vector<1x9x128xf32>
    %141 = vector.shape_cast %140 : vector<1x9x128xf32> to vector<9x128xf32>
    %142 = vector.shape_cast %139 : vector<9x128xf32> to vector<1x9x128xf32>
    tpu.vector_store %arg17[%c0_109, %c0_110, %c0_111], %142 {strides = array<i32>} : memref<1x9x128xf32, #tpu.memory_space<vmem>>, vector<1x9x128xf32>,
    return
  }
  func.func @transform_0(%arg0: i32) -> (i32, i32, i32) {
    %c0_i32 = arith.constant 0 : i32
    %c0_i32_0 = arith.constant 0 : i32
    %c0_i32_1 = arith.constant 0 : i32
    return %arg0, %c0_i32, %c0_i32_0 : i32, i32, i32
  }
  func.func @transform_1(%arg0: i32) -> (i32, i32) {
    %c0_i32 = arith.constant 0 : i32
    %c0_i32_0 = arith.constant 0 : i32
    %c0_i32_1 = arith.constant 0 : i32
    return %c0_i32, %c0_i32_0 : i32, i32
  }
  func.func @transform_2(%arg0: i32) -> (i32, i32) {
    %c0_i32 = arith.constant 0 : i32
    %c0_i32_0 = arith.constant 0 : i32
    %c0_i32_1 = arith.constant 0 : i32
    return %c0_i32, %c0_i32_0 : i32, i32
  }
  func.func @transform_3(%arg0: i32) -> (i32, i32) {
    %c0_i32 = arith.constant 0 : i32
    %c0_i32_0 = arith.constant 0 : i32
    %c0_i32_1 = arith.constant 0 : i32
    return %c0_i32, %c0_i32_0 : i32, i32
  }
  func.func @transform_4(%arg0: i32) -> (i32, i32) {
    %c0_i32 = arith.constant 0 : i32
    %c0_i32_0 = arith.constant 0 : i32
    %c0_i32_1 = arith.constant 0 : i32
    return %c0_i32, %c0_i32_0 : i32, i32
  }
  func.func @transform_5(%arg0: i32) -> (i32, i32) {
    %c0_i32 = arith.constant 0 : i32
    %c0_i32_0 = arith.constant 0 : i32
    %c0_i32_1 = arith.constant 0 : i32
    return %c0_i32, %c0_i32_0 : i32, i32
  }
  func.func @transform_6(%arg0: i32) -> (i32, i32) {
    %c0_i32 = arith.constant 0 : i32
    %c0_i32_0 = arith.constant 0 : i32
    %c0_i32_1 = arith.constant 0 : i32
    return %c0_i32, %c0_i32_0 : i32, i32
  }
  func.func @transform_7(%arg0: i32) -> (i32, i32) {
    %c0_i32 = arith.constant 0 : i32
    %c0_i32_0 = arith.constant 0 : i32
    %c0_i32_1 = arith.constant 0 : i32
    return %c0_i32, %c0_i32_0 : i32, i32
  }
  func.func @transform_8(%arg0: i32) -> (i32, i32) {
    %c0_i32 = arith.constant 0 : i32
    %c0_i32_0 = arith.constant 0 : i32
    %c0_i32_1 = arith.constant 0 : i32
    return %c0_i32, %c0_i32_0 : i32, i32
  }
  func.func @transform_9(%arg0: i32) -> (i32, i32) {
    %c0_i32 = arith.constant 0 : i32
    %c0_i32_0 = arith.constant 0 : i32
    %c0_i32_1 = arith.constant 0 : i32
    return %c0_i32, %c0_i32_0 : i32, i32
  }
  func.func @transform_10(%arg0: i32) -> (i32, i32) {
    %c0_i32 = arith.constant 0 : i32
    %c0_i32_0 = arith.constant 0 : i32
    %c0_i32_1 = arith.constant 0 : i32
    return %c0_i32, %c0_i32_0 : i32, i32
  }
  func.func @transform_11(%arg0: i32) -> (i32, i32) {
    %c0_i32 = arith.constant 0 : i32
    %c0_i32_0 = arith.constant 0 : i32
    %c0_i32_1 = arith.constant 0 : i32
    return %c0_i32, %c0_i32_0 : i32, i32
  }
  func.func @transform_12(%arg0: i32) -> (i32, i32) {
    %c0_i32 = arith.constant 0 : i32
    %c0_i32_0 = arith.constant 0 : i32
    %c0_i32_1 = arith.constant 0 : i32
    return %c0_i32, %c0_i32_0 : i32, i32
  }
  func.func @transform_13(%arg0: i32) -> (i32, i32, i32) {
    %c0_i32 = arith.constant 0 : i32
    %c0_i32_0 = arith.constant 0 : i32
    %c0_i32_1 = arith.constant 0 : i32
    %c0_i32_2 = arith.constant 0 : i32
    return %c0_i32, %c0_i32_0, %c0_i32_1 : i32, i32, i32
  }
  func.func @transform_14(%arg0: i32) -> (i32, i32) {
    %c0_i32 = arith.constant 0 : i32
    %c0_i32_0 = arith.constant 0 : i32
    %c0_i32_1 = arith.constant 0 : i32
    return %c0_i32, %c0_i32_0 : i32, i32
  }
  func.func @transform_15(%arg0: i32) -> (i32, i32) {
    %c0_i32 = arith.constant 0 : i32
    %c0_i32_0 = arith.constant 0 : i32
    %c0_i32_1 = arith.constant 0 : i32
    return %c0_i32, %c0_i32_0 : i32, i32
  }
  func.func @transform_16(%arg0: i32) -> (i32, i32, i32) {
    %c0_i32 = arith.constant 0 : i32
    %c0_i32_0 = arith.constant 0 : i32
    %c0_i32_1 = arith.constant 0 : i32
    return %arg0, %c0_i32, %c0_i32_0 : i32, i32, i32
  }
}

</mosaic_0001>

<llo_original>
// kernel: tpu_custom_call.1
$region0: #{tpu_custom_call.1}
  #allocation0 [shape = 'u32[]', space=smem, size = 0x4, offset = 0x4, fixed_abs, tag = 'smem constant byte address 0x4 - core index']
  #allocation1 [shape = 'u32[144,128]{1,0:T(1,128)}', space=vmem, size = 0x12000, scoped, tag = 'internal scratch']
  #allocation2 [shape = 'f32[9,1024]{1,0:T(8,128)}', space=vmem, size = 0x10000, scoped, tag = 'scratch operand']
  #allocation3 [shape = 'f32[80,1024]{1,0:T(8,128)}', space=vmem, size = 0x50000, scoped, tag = 'scratch operand']
  #allocation4 [shape = 'f32[1,1]{1,0:T(1,128)S(1)}', space=vmem, size = 0x200, scoped, tag = 'scoped memory for tpu_custom_call.1']
  #allocation5 [shape = 'f32[1,1]{1,0:T(1,128)S(1)}', space=vmem, size = 0x200, scoped, tag = 'scoped memory for tpu_custom_call.1']
  %s0 = inlined_call_operand.vmem [shape: f32[1,1,1024], index: 0, kind: input, shape index: {}]
  %s1 = inlined_call_operand.<no memory space> [shape: f32[1,1], index: 1, kind: input, shape index: {}]
  %s2 = inlined_call_operand.<no memory space> [shape: f32[1,1], index: 2, kind: input, shape index: {}]
  %s3 = inlined_call_operand.vmem [shape: f32[16,1], index: 3, kind: input, shape index: {}]
  %s4 = inlined_call_operand.vmem [shape: f32[16,1], index: 4, kind: input, shape index: {}]
  %s5 = inlined_call_operand.vmem [shape: f32[4,80], index: 5, kind: input, shape index: {}]
  %s6 = inlined_call_operand.vmem [shape: f32[4,1], index: 6, kind: input, shape index: {}]
  %s7 = inlined_call_operand.vmem [shape: f32[5,1], index: 7, kind: input, shape index: {}]
  %s8 = inlined_call_operand.vmem [shape: f32[5,1], index: 8, kind: input, shape index: {}]
  %s9 = inlined_call_operand.vmem [shape: f32[16,5], index: 9, kind: input, shape index: {}]
  %s10 = inlined_call_operand.vmem [shape: f32[16,1], index: 10, kind: input, shape index: {}]
  %s11 = inlined_call_operand.vmem [shape: f32[4,80], index: 11, kind: input, shape index: {}]
  %s12 = inlined_call_operand.vmem [shape: f32[4,1], index: 12, kind: input, shape index: {}]
  %s13 = inlined_call_operand.vmem [shape: f32[8,9,9], index: 13, kind: input, shape index: {}]
  %s14 = inlined_call_operand.vmem [shape: f32[9,1], index: 14, kind: input, shape index: {}]
  %s15 = inlined_call_operand.vmem [shape: f32[9,1], index: 15, kind: input, shape index: {}]
  %s16 = inlined_call_operand.vmem [shape: f32[1,9,128], index: 16, kind: output, shape index: {}]
  %s17 = sld [smem:[#allocation0]]
  $region74: #{tpu_custom_call.1} parent=0
    _
  %s19 = ssub.s32 1, %s17
  %s20 = scalar_select 0, %s19, %s17
  %v21 = vstv %s1
  %22 = vst [vmem:[#allocation4] sm:$0x1] %v21
  %v23 = vstv %s2
  %24 = vst [vmem:[#allocation5] sm:$0x1] %v23
  // Predicated region
  $region2: #{tpu_custom_call.1} parent=0 // pred_check
    _
  $region3: #{tpu_custom_call.1} parent=0 // pred_check_branch
    %26 = sbr.rel (0) target = $region5
  $region4: #{tpu_custom_call.1} parent=0 // pred_region
    _
  $region5: #{tpu_custom_call.1} parent=0 // pred_fallthru
    _
  // Predicated region
  $region6: #{tpu_custom_call.1} parent=0 // pred_check
    _
  $region7: #{tpu_custom_call.1} parent=0 // pred_check_branch
    %28 = sbr.rel (0) target = $region9
  $region8: #{tpu_custom_call.1} parent=0 // pred_region
    _
  $region9: #{tpu_custom_call.1} parent=0 // pred_fallthru
    _
  // Predicated region
  $region10: #{tpu_custom_call.1} parent=0 // pred_check
    _
  $region11: #{tpu_custom_call.1} parent=0 // pred_check_branch
    %30 = sbr.rel (0) target = $region13
  $region12: #{tpu_custom_call.1} parent=0 // pred_region
    _
  $region13: #{tpu_custom_call.1} parent=0 // pred_fallthru
    _
  // Predicated region
  $region14: #{tpu_custom_call.1} parent=0 // pred_check
    _
  $region15: #{tpu_custom_call.1} parent=0 // pred_check_branch
    %32 = sbr.rel (0) target = $region17
  $region16: #{tpu_custom_call.1} parent=0 // pred_region
    _
  $region17: #{tpu_custom_call.1} parent=0 // pred_fallthru
    _
  // Predicated region
  $region18: #{tpu_custom_call.1} parent=0 // pred_check
    _
  $region19: #{tpu_custom_call.1} parent=0 // pred_check_branch
    %34 = sbr.rel (0) target = $region21
  $region20: #{tpu_custom_call.1} parent=0 // pred_region
    _
  $region21: #{tpu_custom_call.1} parent=0 // pred_fallthru
    _
  // Predicated region
  $region22: #{tpu_custom_call.1} parent=0 // pred_check
    _
  $region23: #{tpu_custom_call.1} parent=0 // pred_check_branch
    %36 = sbr.rel (0) target = $region25
  $region24: #{tpu_custom_call.1} parent=0 // pred_region
    _
  $region25: #{tpu_custom_call.1} parent=0 // pred_fallthru
    _
  // Predicated region
  $region26: #{tpu_custom_call.1} parent=0 // pred_check
    _
  $region27: #{tpu_custom_call.1} parent=0 // pred_check_branch
    %38 = sbr.rel (0) target = $region29
  $region28: #{tpu_custom_call.1} parent=0 // pred_region
    _
  $region29: #{tpu_custom_call.1} parent=0 // pred_fallthru
    _
  // Predicated region
  $region30: #{tpu_custom_call.1} parent=0 // pred_check
    _
  $region31: #{tpu_custom_call.1} parent=0 // pred_check_branch
    %40 = sbr.rel (0) target = $region33
  $region32: #{tpu_custom_call.1} parent=0 // pred_region
    _
  $region33: #{tpu_custom_call.1} parent=0 // pred_fallthru
    _
  // Predicated region
  $region34: #{tpu_custom_call.1} parent=0 // pred_check
    _
  $region35: #{tpu_custom_call.1} parent=0 // pred_check_branch
    %42 = sbr.rel (0) target = $region37
  $region36: #{tpu_custom_call.1} parent=0 // pred_region
    _
  $region37: #{tpu_custom_call.1} parent=0 // pred_fallthru
    _
  // Predicated region
  $region38: #{tpu_custom_call.1} parent=0 // pred_check
    _
  $region39: #{tpu_custom_call.1} parent=0 // pred_check_branch
    %44 = sbr.rel (0) target = $region41
  $region40: #{tpu_custom_call.1} parent=0 // pred_region
    _
  $region41: #{tpu_custom_call.1} parent=0 // pred_fallthru
    _
  // Predicated region
  $region42: #{tpu_custom_call.1} parent=0 // pred_check
    _
  $region43: #{tpu_custom_call.1} parent=0 // pred_check_branch
    %46 = sbr.rel (0) target = $region45
  $region44: #{tpu_custom_call.1} parent=0 // pred_region
    _
  $region45: #{tpu_custom_call.1} parent=0 // pred_fallthru
    _
  // Predicated region
  $region46: #{tpu_custom_call.1} parent=0 // pred_check
    _
  $region47: #{tpu_custom_call.1} parent=0 // pred_check_branch
    %48 = sbr.rel (0) target = $region49
  $region48: #{tpu_custom_call.1} parent=0 // pred_region
    _
  $region49: #{tpu_custom_call.1} parent=0 // pred_fallthru
    _
  // Predicated region
  $region50: #{tpu_custom_call.1} parent=0 // pred_check
    _
  $region51: #{tpu_custom_call.1} parent=0 // pred_check_branch
    %50 = sbr.rel (0) target = $region53
  $region52: #{tpu_custom_call.1} parent=0 // pred_region
    _
  $region53: #{tpu_custom_call.1} parent=0 // pred_fallthru
    _
  // Predicated region
  $region54: #{tpu_custom_call.1} parent=0 // pred_check
    _
  $region55: #{tpu_custom_call.1} parent=0 // pred_check_branch
    %52 = sbr.rel (0) target = $region57
  $region56: #{tpu_custom_call.1} parent=0 // pred_region
    _
  $region57: #{tpu_custom_call.1} parent=0 // pred_fallthru
    _
  // Predicated region
  $region58: #{tpu_custom_call.1} parent=0 // pred_check
    _
  $region59: #{tpu_custom_call.1} parent=0 // pred_check_branch
    %54 = sbr.rel (0) target = $region61
  $region60: #{tpu_custom_call.1} parent=0 // pred_region
    _
  $region61: #{tpu_custom_call.1} parent=0 // pred_fallthru
    _
  // Predicated region
  $region62: #{tpu_custom_call.1} parent=0 // pred_check
    _
  $region63: #{tpu_custom_call.1} parent=0 // pred_check_branch
    %56 = sbr.rel (0) target = $region65
  $region64: #{tpu_custom_call.1} parent=0 // pred_region
    _
  $region65: #{tpu_custom_call.1} parent=0 // pred_fallthru
    _
  %v57 = vld [vmem:[%s0] sm:$0xff]
  %58 = vst [vmem:[#allocation2] ss:$8 sm:$0xf] %v57
  %59 = vst [vmem:[#allocation2] ss:$8 sm:$0xf0] %v57
  %60 = vst [vmem:[#allocation3] sm:$0xff] 0.0
  %61 = vst [vmem:[#allocation3 + $0x8] sm:$0xff] 0.0
  %62 = vst [vmem:[#allocation3 + $0x40] sm:$0xff] 0.0
  %63 = vst [vmem:[#allocation3 + $0x48] sm:$0xff] 0.0
  %64 = vst [vmem:[#allocation3 + $0x80] sm:$0xff] 0.0
  %65 = vst [vmem:[#allocation3 + $0xc0] sm:$0xff] 0.0
  %66 = vst [vmem:[#allocation3 + $0x1b8] sm:$0xff] 0.0
  %67 = vst [vmem:[#allocation3 + $0x1f8] sm:$0xff] 0.0
  %68 = vst [vmem:[#allocation3 + $0x230] sm:$0xff] 0.0
  %69 = vst [vmem:[#allocation3 + $0x238] sm:$0xff] 0.0
  %70 = vst [vmem:[#allocation3 + $0x270] sm:$0xff] 0.0
  %71 = vst [vmem:[#allocation3 + $0x278] sm:$0xff] 0.0
  %v72 = vld [vmem:[#allocation2] ss:$8 sm:$0xf]
  %v73 = vld [vmem:[#allocation2] ss:$8 sm:$0xf0]
  %v74 = vor.u32 %v72, %v73
  %v75 = vld [vmem:[#allocation4] sm:$0x1]
  %77 = vset.pattern.permute.xlu0 0
  %78 = vperm.xlu0 %77, %v75
  %v79 = vpop.permute.xlu0 %78
  %v81 = vlaneseq
  %v82 = vshrl.u32 %v81, 7
  %v83 = vsub.s32 0, %v82
  %v84 = vrot.slane %v79, %v83
  %v85 = vmul.f32 %v74, %v84
  %v86 = vld [vmem:[#allocation5] sm:$0x1]
  %88 = vset.pattern.permute.xlu0 0
  %89 = vperm.xlu0 %88, %v86
  %v90 = vpop.permute.xlu0 %89
  %v92 = vlaneseq
  %v93 = vshrl.u32 %v92, 7
  %v94 = vsub.s32 0, %v93
  %v95 = vrot.slane %v90, %v94
  %v96 = vadd.f32 %v85, %v95
  %vm97 = vcmp.gt.f32.partialorder %v96, 0.0
  %v98 = vmul.f32 %v96, 0.01
  %v99 = vsel %vm97, %v96, %v98
  %v100 = vld [vmem:[%s3] sm:$0xff]
  %v101 = vld [vmem:[%s3 + $0x8] sm:$0xff]
  %v102 = vld [vmem:[%s4] sm:$0xff]
  %v103 = vld [vmem:[%s4 + $0x8] sm:$0xff]
  %105 = vset.pattern.permute.xlu0 0
  %106 = vperm.xlu0 %105, %v102
  %v107 = vpop.permute.xlu0 %106
  %110 = vset.pattern.permute.xlu0 0
  %111 = vperm.xlu0 %110, %v103
  %v112 = vpop.permute.xlu0 %111
  %v115 = vlaneseq
  %v116 = vshrl.u32 %v115, 7
  %v117 = vsub.s32 0, %v116
  %v118 = vrot.slane %v99, %v117
  %v119 = vlaneseq
  %v120 = vshrl.u32 %v119, 7
  %v121 = vsub.s32 1, %v120
  %v122 = vrot.slane %v99, %v121
  %v123 = vlaneseq
  %v124 = vshrl.u32 %v123, 7
  %v125 = vsub.s32 2, %v124
  %v126 = vrot.slane %v99, %v125
  %v127 = vlaneseq
  %v128 = vshrl.u32 %v127, 7
  %v129 = vsub.s32 3, %v128
  %v130 = vrot.slane %v99, %v129
  %v131 = vlaneseq
  %v132 = vshrl.u32 %v131, 7
  %v133 = vsub.s32 4, %v132
  %v134 = vrot.slane %v99, %v133
  %v135 = vlaneseq
  %v136 = vshrl.u32 %v135, 7
  %v137 = vsub.s32 5, %v136
  %v138 = vrot.slane %v99, %v137
  %v139 = vlaneseq
  %v140 = vshrl.u32 %v139, 7
  %v141 = vsub.s32 6, %v140
  %v142 = vrot.slane %v99, %v141
  %v143 = vlaneseq
  %v144 = vshrl.u32 %v143, 7
  %v145 = vsub.s32 7, %v144
  %v146 = vrot.slane %v99, %v145
  %vm147 = vcmask 7168
  %v149 = vsel %vm147, %v100, 0
  %v152 = vsel %vm147, %v101, 0
  %vm154 = vcmask 1040384
  %v155 = vsel %vm154, %v118, 0
  %v157 = vsel %vm154, %v122, 0
  %v159 = vsel %vm154, %v126, 0
  %v161 = vsel %vm154, %v130, 0
  %v163 = vsel %vm154, %v134, 0
  %v165 = vsel %vm154, %v138, 0
  %v167 = vsel %vm154, %v142, 0
  %v169 = vsel %vm154, %v146, 0
  %171 = vmatprep.subr.mxu0 %v157
  %172 = vmatpush1.msra.mxu0 %v155
  %173 = vmatprep.subr.mxu0 0.0
  %174 = vmatpush1.msra.mxu0 0.0
  %175 = vmatprep.subr.mxu0 0.0
  %176 = vmatpush1.msra.mxu0 0.0
  %177 = vmatprep.subr.mxu0 0.0
  %178 = vmatpush1.msra.mxu0 0.0
  %179 = vmatprep.subr.mxu0 0.0
  %180 = vmatpush1.msra.mxu0 0.0
  %181 = vmatprep.subr.mxu0 0.0
  %182 = vmatpush1.msra.mxu0 0.0
  %183 = vmatprep.subr.mxu0 0.0
  %184 = vmatpush1.msra.mxu0 0.0
  %185 = vmatprep.subr.mxu0 0.0
  %186 = vmatpush1.msra.mxu0 0.0
  %187 = vmatprep.subr.mxu0 0.0
  %188 = vmatpush1.msra.mxu0 0.0
  %189 = vmatprep.subr.mxu0 0.0
  %190 = vmatpush1.msra.mxu0 0.0
  %191 = vmatprep.subr.mxu0 0.0
  %192 = vmatpush1.msra.mxu0 0.0
  %193 = vmatprep.subr.mxu0 0.0
  %194 = vmatpush1.msra.mxu0 0.0
  %195 = vmatprep.subr.mxu0 0.0
  %196 = vmatpush1.msra.mxu0 0.0
  %197 = vmatprep.subr.mxu0 0.0
  %198 = vmatpush1.msra.mxu0 0.0
  %199 = vmatprep.subr.mxu0 0.0
  %200 = vmatpush1.msra.mxu0 0.0
  %201 = vmatprep.subr.mxu0 0.0
  %202 = vmatpush1.msra.mxu0 0.0
  %203 = vmatprep.subr.mxu0 0.0
  %204 = vmatpush1.msra.mxu0 0.0
  %205 = vmatprep.subr.mxu0 0.0
  %206 = vmatpush1.msra.mxu0 0.0
  %207 = vmatprep.subr.mxu0 0.0
  %208 = vmatpush1.msra.mxu0 0.0
  %209 = vmatprep.subr.mxu0 0.0
  %210 = vmatpush1.msra.mxu0 0.0
  %211 = vmatprep.subr.mxu0 0.0
  %212 = vmatpush1.msra.mxu0 0.0
  %213 = vmatprep.subr.mxu0 0.0
  %214 = vmatpush1.msra.mxu0 0.0
  %215 = vmatprep.subr.mxu0 0.0
  %216 = vmatpush1.msra.mxu0 0.0
  %217 = vmatprep.subr.mxu0 0.0
  %218 = vmatpush1.msra.mxu0 0.0
  %219 = vmatprep.subr.mxu0 0.0
  %220 = vmatpush1.msra.mxu0 0.0
  %221 = vmatprep.subr.mxu0 0.0
  %222 = vmatpush1.msra.mxu0 0.0
  %223 = vmatprep.subr.mxu0 0.0
  %224 = vmatpush1.msra.mxu0 0.0
  %225 = vmatprep.subr.mxu0 0.0
  %226 = vmatpush1.msra.mxu0 0.0
  %227 = vmatprep.subr.mxu0 0.0
  %228 = vmatpush1.msra.mxu0 0.0
  %229 = vmatprep.subr.mxu0 0.0
  %230 = vmatpush1.msra.mxu0 0.0
  %231 = vmatprep.subr.mxu0 0.0
  %232 = vmatpush1.msra.mxu0 0.0
  %233 = vmatprep.subr.mxu0 0.0
  %234 = vmatpush1.msra.mxu0 0.0
  %235 = vmatprep.mubr.f32.mxu0 0.0
  %236 = vmatmul.mubr.f32.gmra.mrb[0].mxu0 %v149
  %v237 = vpop.f32.mrb[0].mxu0
  %v238 = vadd.f32 %v107, %v237
  %v239 = vpop.f32.mrb[0].mxu0
  %v240 = vadd.f32 %v107, %v239
  %241 = vmatprep.mubr.f32.mxu0 0.0
  %242 = vmatmul.mubr.f32.gmra.mrb[0].mxu0 %v152
  %v243 = vpop.f32.mrb[0].mxu0
  %v244 = vadd.f32 %v112, %v243
  %v245 = vpop.f32.mrb[0].mxu0
  %v246 = vadd.f32 %v112, %v245
  %247 = vdwg.mxu0
  %248 = vmatprep.subr.mxu0 %v161
  %249 = vmatpush1.msra.mxu0 %v159
  %250 = vmatprep.subr.mxu0 0.0
  %251 = vmatpush1.msra.mxu0 0.0
  %252 = vmatprep.subr.mxu0 0.0
  %253 = vmatpush1.msra.mxu0 0.0
  %254 = vmatprep.subr.mxu0 0.0
  %255 = vmatpush1.msra.mxu0 0.0
  %256 = vmatprep.subr.mxu0 0.0
  %257 = vmatpush1.msra.mxu0 0.0
  %258 = vmatprep.subr.mxu0 0.0
  %259 = vmatpush1.msra.mxu0 0.0
  %260 = vmatprep.subr.mxu0 0.0
  %261 = vmatpush1.msra.mxu0 0.0
  %262 = vmatprep.subr.mxu0 0.0
  %263 = vmatpush1.msra.mxu0 0.0
  %264 = vmatprep.subr.mxu0 0.0
  %265 = vmatpush1.msra.mxu0 0.0
  %266 = vmatprep.subr.mxu0 0.0
  %267 = vmatpush1.msra.mxu0 0.0
  %268 = vmatprep.subr.mxu0 0.0
  %269 = vmatpush1.msra.mxu0 0.0
  %270 = vmatprep.subr.mxu0 0.0
  %271 = vmatpush1.msra.mxu0 0.0
  %272 = vmatprep.subr.mxu0 0.0
  %273 = vmatpush1.msra.mxu0 0.0
  %274 = vmatprep.subr.mxu0 0.0
  %275 = vmatpush1.msra.mxu0 0.0
  %276 = vmatprep.subr.mxu0 0.0
  %277 = vmatpush1.msra.mxu0 0.0
  %278 = vmatprep.subr.mxu0 0.0
  %279 = vmatpush1.msra.mxu0 0.0
  %280 = vmatprep.subr.mxu0 0.0
  %281 = vmatpush1.msra.mxu0 0.0
  %282 = vmatprep.subr.mxu0 0.0
  %283 = vmatpush1.msra.mxu0 0.0
  %284 = vmatprep.subr.mxu0 0.0
  %285 = vmatpush1.msra.mxu0 0.0
  %286 = vmatprep.subr.mxu0 0.0
  %287 = vmatpush1.msra.mxu0 0.0
  %288 = vmatprep.subr.mxu0 0.0
  %289 = vmatpush1.msra.mxu0 0.0
  %290 = vmatprep.subr.mxu0 0.0
  %291 = vmatpush1.msra.mxu0 0.0
  %292 = vmatprep.subr.mxu0 0.0
  %293 = vmatpush1.msra.mxu0 0.0
  %294 = vmatprep.subr.mxu0 0.0
  %295 = vmatpush1.msra.mxu0 0.0
  %296 = vmatprep.subr.mxu0 0.0
  %297 = vmatpush1.msra.mxu0 0.0
  %298 = vmatprep.subr.mxu0 0.0
  %299 = vmatpush1.msra.mxu0 0.0
  %300 = vmatprep.subr.mxu0 0.0
  %301 = vmatpush1.msra.mxu0 0.0
  %302 = vmatprep.subr.mxu0 0.0
  %303 = vmatpush1.msra.mxu0 0.0
  %304 = vmatprep.subr.mxu0 0.0
  %305 = vmatpush1.msra.mxu0 0.0
  %306 = vmatprep.subr.mxu0 0.0
  %307 = vmatpush1.msra.mxu0 0.0
  %308 = vmatprep.subr.mxu0 0.0
  %309 = vmatpush1.msra.mxu0 0.0
  %310 = vmatprep.subr.mxu0 0.0
  %311 = vmatpush1.msra.mxu0 0.0
  %312 = vmatprep.mubr.f32.mxu0 0.0
  %313 = vmatmul.mubr.f32.gmra.mrb[0].mxu0 %v149
  %v314 = vpop.f32.mrb[0].mxu0
  %v315 = vadd.f32 %v107, %v314
  %v316 = vpop.f32.mrb[0].mxu0
  %v317 = vadd.f32 %v107, %v316
  %318 = vmatprep.mubr.f32.mxu0 0.0
  %319 = vmatmul.mubr.f32.gmra.mrb[0].mxu0 %v152
  %v320 = vpop.f32.mrb[0].mxu0
  %v321 = vadd.f32 %v112, %v320
  %v322 = vpop.f32.mrb[0].mxu0
  %v323 = vadd.f32 %v112, %v322
  %324 = vdwg.mxu0
  %325 = vmatprep.subr.mxu0 %v165
  %326 = vmatpush1.msra.mxu0 %v163
  %327 = vmatprep.subr.mxu0 0.0
  %328 = vmatpush1.msra.mxu0 0.0
  %329 = vmatprep.subr.mxu0 0.0
  %330 = vmatpush1.msra.mxu0 0.0
  %331 = vmatprep.subr.mxu0 0.0
  %332 = vmatpush1.msra.mxu0 0.0
  %333 = vmatprep.subr.mxu0 0.0
  %334 = vmatpush1.msra.mxu0 0.0
  %335 = vmatprep.subr.mxu0 0.0
  %336 = vmatpush1.msra.mxu0 0.0
  %337 = vmatprep.subr.mxu0 0.0
  %338 = vmatpush1.msra.mxu0 0.0
  %339 = vmatprep.subr.mxu0 0.0
  %340 = vmatpush1.msra.mxu0 0.0
  %341 = vmatprep.subr.mxu0 0.0
  %342 = vmatpush1.msra.mxu0 0.0
  %343 = vmatprep.subr.mxu0 0.0
  %344 = vmatpush1.msra.mxu0 0.0
  %345 = vmatprep.subr.mxu0 0.0
  %346 = vmatpush1.msra.mxu0 0.0
  %347 = vmatprep.subr.mxu0 0.0
  %348 = vmatpush1.msra.mxu0 0.0
  %349 = vmatprep.subr.mxu0 0.0
  %350 = vmatpush1.msra.mxu0 0.0
  %351 = vmatprep.subr.mxu0 0.0
  %352 = vmatpush1.msra.mxu0 0.0
  %353 = vmatprep.subr.mxu0 0.0
  %354 = vmatpush1.msra.mxu0 0.0
  %355 = vmatprep.subr.mxu0 0.0
  %356 = vmatpush1.msra.mxu0 0.0
  %357 = vmatprep.subr.mxu0 0.0
  %358 = vmatpush1.msra.mxu0 0.0
  %359 = vmatprep.subr.mxu0 0.0
  %360 = vmatpush1.msra.mxu0 0.0
  %361 = vmatprep.subr.mxu0 0.0
  %362 = vmatpush1.msra.mxu0 0.0
  %363 = vmatprep.subr.mxu0 0.0
  %364 = vmatpush1.msra.mxu0 0.0
  %365 = vmatprep.subr.mxu0 0.0
  %366 = vmatpush1.msra.mxu0 0.0
  %367 = vmatprep.subr.mxu0 0.0
  %368 = vmatpush1.msra.mxu0 0.0
  %369 = vmatprep.subr.mxu0 0.0
  %370 = vmatpush1.msra.mxu0 0.0
  %371 = vmatprep.subr.mxu0 0.0
  %372 = vmatpush1.msra.mxu0 0.0
  %373 = vmatprep.subr.mxu0 0.0
  %374 = vmatpush1.msra.mxu0 0.0
  %375 = vmatprep.subr.mxu0 0.0
  %376 = vmatpush1.msra.mxu0 0.0
  %377 = vmatprep.subr.mxu0 0.0
  %378 = vmatpush1.msra.mxu0 0.0
  %379 = vmatprep.subr.mxu0 0.0
  %380 = vmatpush1.msra.mxu0 0.0
  %381 = vmatprep.subr.mxu0 0.0
  %382 = vmatpush1.msra.mxu0 0.0
  %383 = vmatprep.subr.mxu0 0.0
  %384 = vmatpush1.msra.mxu0 0.0
  %385 = vmatprep.subr.mxu0 0.0
  %386 = vmatpush1.msra.mxu0 0.0
  %387 = vmatprep.subr.mxu0 0.0
  %388 = vmatpush1.msra.mxu0 0.0
  %389 = vmatprep.mubr.f32.mxu0 0.0
  %390 = vmatmul.mubr.f32.gmra.mrb[0].mxu0 %v149
  %v391 = vpop.f32.mrb[0].mxu0
  %v392 = vadd.f32 %v107, %v391
  %v393 = vpop.f32.mrb[0].mxu0
  %v394 = vadd.f32 %v107, %v393
  %395 = vmatprep.mubr.f32.mxu0 0.0
  %396 = vmatmul.mubr.f32.gmra.mrb[0].mxu0 %v152
  %v397 = vpop.f32.mrb[0].mxu0
  %v398 = vadd.f32 %v112, %v397
  %v399 = vpop.f32.mrb[0].mxu0
  %v400 = vadd.f32 %v112, %v399
  %401 = vdwg.mxu0
  %402 = vmatprep.subr.mxu0 %v169
  %403 = vmatpush1.msra.mxu0 %v167
  %404 = vmatprep.subr.mxu0 0.0
  %405 = vmatpush1.msra.mxu0 0.0
  %406 = vmatprep.subr.mxu0 0.0
  %407 = vmatpush1.msra.mxu0 0.0
  %408 = vmatprep.subr.mxu0 0.0
  %409 = vmatpush1.msra.mxu0 0.0
  %410 = vmatprep.subr.mxu0 0.0
  %411 = vmatpush1.msra.mxu0 0.0
  %412 = vmatprep.subr.mxu0 0.0
  %413 = vmatpush1.msra.mxu0 0.0
  %414 = vmatprep.subr.mxu0 0.0
  %415 = vmatpush1.msra.mxu0 0.0
  %416 = vmatprep.subr.mxu0 0.0
  %417 = vmatpush1.msra.mxu0 0.0
  %418 = vmatprep.subr.mxu0 0.0
  %419 = vmatpush1.msra.mxu0 0.0
  %420 = vmatprep.subr.mxu0 0.0
  %421 = vmatpush1.msra.mxu0 0.0
  %422 = vmatprep.subr.mxu0 0.0
  %423 = vmatpush1.msra.mxu0 0.0
  %424 = vmatprep.subr.mxu0 0.0
  %425 = vmatpush1.msra.mxu0 0.0
  %426 = vmatprep.subr.mxu0 0.0
  %427 = vmatpush1.msra.mxu0 0.0
  %428 = vmatprep.subr.mxu0 0.0
  %429 = vmatpush1.msra.mxu0 0.0
  %430 = vmatprep.subr.mxu0 0.0
  %431 = vmatpush1.msra.mxu0 0.0
  %432 = vmatprep.subr.mxu0 0.0
  %433 = vmatpush1.msra.mxu0 0.0
  %434 = vmatprep.subr.mxu0 0.0
  %435 = vmatpush1.msra.mxu0 0.0
  %436 = vmatprep.subr.mxu0 0.0
  %437 = vmatpush1.msra.mxu0 0.0
  %438 = vmatprep.subr.mxu0 0.0
  %439 = vmatpush1.msra.mxu0 0.0
  %440 = vmatprep.subr.mxu0 0.0
  %441 = vmatpush1.msra.mxu0 0.0
  %442 = vmatprep.subr.mxu0 0.0
  %443 = vmatpush1.msra.mxu0 0.0
  %444 = vmatprep.subr.mxu0 0.0
  %445 = vmatpush1.msra.mxu0 0.0
  %446 = vmatprep.subr.mxu0 0.0
  %447 = vmatpush1.msra.mxu0 0.0
  %448 = vmatprep.subr.mxu0 0.0
  %449 = vmatpush1.msra.mxu0 0.0
  %450 = vmatprep.subr.mxu0 0.0
  %451 = vmatpush1.msra.mxu0 0.0
  %452 = vmatprep.subr.mxu0 0.0
  %453 = vmatpush1.msra.mxu0 0.0
  %454 = vmatprep.subr.mxu0 0.0
  %455 = vmatpush1.msra.mxu0 0.0
  %456 = vmatprep.subr.mxu0 0.0
  %457 = vmatpush1.msra.mxu0 0.0
  %458 = vmatprep.subr.mxu0 0.0
  %459 = vmatpush1.msra.mxu0 0.0
  %460 = vmatprep.subr.mxu0 0.0
  %461 = vmatpush1.msra.mxu0 0.0
  %462 = vmatprep.subr.mxu0 0.0
  %463 = vmatpush1.msra.mxu0 0.0
  %464 = vmatprep.subr.mxu0 0.0
  %465 = vmatpush1.msra.mxu0 0.0
  %466 = vmatprep.mubr.f32.mxu0 0.0
  %467 = vmatmul.mubr.f32.gmra.mrb[0].mxu0 %v149
  %v468 = vpop.f32.mrb[0].mxu0
  %v469 = vadd.f32 %v107, %v468
  %v470 = vpop.f32.mrb[0].mxu0
  %v471 = vadd.f32 %v107, %v470
  %472 = vmatprep.mubr.f32.mxu0 0.0
  %473 = vmatmul.mubr.f32.gmra.mrb[0].mxu0 %v152
  %v474 = vpop.f32.mrb[0].mxu0
  %v475 = vadd.f32 %v112, %v474
  %v476 = vpop.f32.mrb[0].mxu0
  %v477 = vadd.f32 %v112, %v476
  %478 = vdwg.mxu0
  %vm479 = vcmp.gt.f32.partialorder %v238, 0.0
  %vm480 = vcmp.gt.f32.partialorder %v240, 0.0
  %vm481 = vcmp.gt.f32.partialorder %v315, 0.0
  %vm482 = vcmp.gt.f32.partialorder %v317, 0.0
  %vm483 = vcmp.gt.f32.partialorder %v392, 0.0
  %vm484 = vcmp.gt.f32.partialorder %v394, 0.0
  %vm485 = vcmp.gt.f32.partialorder %v469, 0.0
  %vm486 = vcmp.gt.f32.partialorder %v471, 0.0
  %vm487 = vcmp.gt.f32.partialorder %v244, 0.0
  %vm488 = vcmp.gt.f32.partialorder %v246, 0.0
  %vm489 = vcmp.gt.f32.partialorder %v321, 0.0
  %vm490 = vcmp.gt.f32.partialorder %v323, 0.0
  %vm491 = vcmp.gt.f32.partialorder %v398, 0.0
  %vm492 = vcmp.gt.f32.partialorder %v400, 0.0
  %vm493 = vcmp.gt.f32.partialorder %v475, 0.0
  %vm494 = vcmp.gt.f32.partialorder %v477, 0.0
  %v495 = vmul.f32 %v238, 0.01
  %v496 = vmul.f32 %v240, 0.01
  %v497 = vmul.f32 %v315, 0.01
  %v498 = vmul.f32 %v317, 0.01
  %v499 = vmul.f32 %v392, 0.01
  %v500 = vmul.f32 %v394, 0.01
  %v501 = vmul.f32 %v469, 0.01
  %v502 = vmul.f32 %v471, 0.01
  %v503 = vmul.f32 %v244, 0.01
  %v504 = vmul.f32 %v246, 0.01
  %v505 = vmul.f32 %v321, 0.01
  %v506 = vmul.f32 %v323, 0.01
  %v507 = vmul.f32 %v398, 0.01
  %v508 = vmul.f32 %v400, 0.01
  %v509 = vmul.f32 %v475, 0.01
  %v510 = vmul.f32 %v477, 0.01
  %v511 = vsel %vm479, %v238, %v495
  %v512 = vsel %vm480, %v240, %v496
  %v513 = vsel %vm481, %v315, %v497
  %v514 = vsel %vm482, %v317, %v498
  %v515 = vsel %vm483, %v392, %v499
  %v516 = vsel %vm484, %v394, %v500
  %v517 = vsel %vm485, %v469, %v501
  %v518 = vsel %vm486, %v471, %v502
  %v519 = vsel %vm487, %v244, %v503
  %v520 = vsel %vm488, %v246, %v504
  %v521 = vsel %vm489, %v321, %v505
  %v522 = vsel %vm490, %v323, %v506
  %v523 = vsel %vm491, %v398, %v507
  %v524 = vsel %vm492, %v400, %v508
  %v525 = vsel %vm493, %v475, %v509
  %v526 = vsel %vm494, %v477, %v510
  %527 = vst [vmem:[#allocation3 + $0x10] sm:$0xff] %v511
  %528 = vst [vmem:[#allocation3 + $0x18] sm:$0xff] %v512
  %529 = vst [vmem:[#allocation3 + $0x20] sm:$0xff] %v513
  %530 = vst [vmem:[#allocation3 + $0x28] sm:$0xff] %v514
  %531 = vst [vmem:[#allocation3 + $0x30] sm:$0xff] %v515
  %532 = vst [vmem:[#allocation3 + $0x38] sm:$0xff] %v516
  %533 = vst [vmem:[#allocation3 + $0x50] sm:$0xff] %v519
  %534 = vst [vmem:[#allocation3 + $0x58] sm:$0xff] %v520
  %535 = vst [vmem:[#allocation3 + $0x60] sm:$0xff] %v521
  %536 = vst [vmem:[#allocation3 + $0x68] sm:$0xff] %v522
  %537 = vst [vmem:[#allocation3 + $0x70] sm:$0xff] %v523
  %538 = vst [vmem:[#allocation3 + $0x78] sm:$0xff] %v524
  %539 = vst [vmem:[#allocation3 + $0x88] sm:$0xff] %v511
  %540 = vst [vmem:[#allocation3 + $0x90] sm:$0xff] %v512
  %541 = vst [vmem:[#allocation3 + $0x98] sm:$0xff] %v513
  %542 = vst [vmem:[#allocation3 + $0xa0] sm:$0xff] %v514
  %543 = vst [vmem:[#allocation3 + $0xa8] sm:$0xff] %v515
  %544 = vst [vmem:[#allocation3 + $0xb0] sm:$0xff] %v516
  %545 = vst [vmem:[#allocation3 + $0xb8] sm:$0xff] %v517
  %546 = vst [vmem:[#allocation3 + $0xc8] sm:$0xff] %v519
  %547 = vst [vmem:[#allocation3 + $0xd0] sm:$0xff] %v520
  %548 = vst [vmem:[#allocation3 + $0xd8] sm:$0xff] %v521
  %549 = vst [vmem:[#allocation3 + $0xe0] sm:$0xff] %v522
  %550 = vst [vmem:[#allocation3 + $0xe8] sm:$0xff] %v523
  %551 = vst [vmem:[#allocation3 + $0xf0] sm:$0xff] %v524
  %552 = vst [vmem:[#allocation3 + $0xf8] sm:$0xff] %v525
  %553 = vst [vmem:[#allocation3 + $0x100] sm:$0xff] %v511
  %554 = vst [vmem:[#allocation3 + $0x108] sm:$0xff] %v512
  %555 = vst [vmem:[#allocation3 + $0x110] sm:$0xff] %v513
  %556 = vst [vmem:[#allocation3 + $0x118] sm:$0xff] %v514
  %557 = vst [vmem:[#allocation3 + $0x120] sm:$0xff] %v515
  %558 = vst [vmem:[#allocation3 + $0x128] sm:$0xff] %v516
  %559 = vst [vmem:[#allocation3 + $0x130] sm:$0xff] %v517
  %560 = vst [vmem:[#allocation3 + $0x138] sm:$0xff] %v518
  %561 = vst [vmem:[#allocation3 + $0x140] sm:$0xff] %v519
  %562 = vst [vmem:[#allocation3 + $0x148] sm:$0xff] %v520
  %563 = vst [vmem:[#allocation3 + $0x150] sm:$0xff] %v521
  %564 = vst [vmem:[#allocation3 + $0x158] sm:$0xff] %v522
  %565 = vst [vmem:[#allocation3 + $0x160] sm:$0xff] %v523
  %566 = vst [vmem:[#allocation3 + $0x168] sm:$0xff] %v524
  %567 = vst [vmem:[#allocation3 + $0x170] sm:$0xff] %v525
  %568 = vst [vmem:[#allocation3 + $0x178] sm:$0xff] %v526
  %569 = vst [vmem:[#allocation3 + $0x180] sm:$0xff] %v512
  %570 = vst [vmem:[#allocation3 + $0x188] sm:$0xff] %v513
  %571 = vst [vmem:[#allocation3 + $0x190] sm:$0xff] %v514
  %572 = vst [vmem:[#allocation3 + $0x198] sm:$0xff] %v515
  %573 = vst [vmem:[#allocation3 + $0x1a0] sm:$0xff] %v516
  %574 = vst [vmem:[#allocation3 + $0x1a8] sm:$0xff] %v517
  %575 = vst [vmem:[#allocation3 + $0x1b0] sm:$0xff] %v518
  %576 = vst [vmem:[#allocation3 + $0x1c0] sm:$0xff] %v520
  %577 = vst [vmem:[#allocation3 + $0x1c8] sm:$0xff] %v521
  %578 = vst [vmem:[#allocation3 + $0x1d0] sm:$0xff] %v522
  %579 = vst [vmem:[#allocation3 + $0x1d8] sm:$0xff] %v523
  %580 = vst [vmem:[#allocation3 + $0x1e0] sm:$0xff] %v524
  %581 = vst [vmem:[#allocation3 + $0x1e8] sm:$0xff] %v525
  %582 = vst [vmem:[#allocation3 + $0x1f0] sm:$0xff] %v526
  %583 = vst [vmem:[#allocation3 + $0x200] sm:$0xff] %v513
  %584 = vst [vmem:[#allocation3 + $0x208] sm:$0xff] %v514
  %585 = vst [vmem:[#allocation3 + $0x210] sm:$0xff] %v515
  %586 = vst [vmem:[#allocation3 + $0x218] sm:$0xff] %v516
  %587 = vst [vmem:[#allocation3 + $0x220] sm:$0xff] %v517
  %588 = vst [vmem:[#allocation3 + $0x228] sm:$0xff] %v518
  %589 = vst [vmem:[#allocation3 + $0x240] sm:$0xff] %v521
  %590 = vst [vmem:[#allocation3 + $0x248] sm:$0xff] %v522
  %591 = vst [vmem:[#allocation3 + $0x250] sm:$0xff] %v523
  %592 = vst [vmem:[#allocation3 + $0x258] sm:$0xff] %v524
  %593 = vst [vmem:[#allocation3 + $0x260] sm:$0xff] %v525
  %594 = vst [vmem:[#allocation3 + $0x268] sm:$0xff] %v526
  %v595 = vld [vmem:[%s5] sm:$0xf]
  %v596 = vld [vmem:[#allocation3] sm:$0xff]
  %v597 = vld [vmem:[#allocation3 + $0x8] sm:$0xff]
  %v598 = vld [vmem:[#allocation3 + $0x10] sm:$0xff]
  %v599 = vld [vmem:[#allocation3 + $0x18] sm:$0xff]
  %v600 = vld [vmem:[#allocation3 + $0x20] sm:$0xff]
  %v601 = vld [vmem:[#allocation3 + $0x28] sm:$0xff]
  %v602 = vld [vmem:[#allocation3 + $0x30] sm:$0xff]
  %v603 = vld [vmem:[#allocation3 + $0x38] sm:$0xff]
  %v604 = vld [vmem:[#allocation3 + $0x40] sm:$0xff]
  %v605 = vld [vmem:[#allocation3 + $0x48] sm:$0xff]
  %v606 = vld [vmem:[#allocation3 + $0x50] sm:$0xff]
  %v607 = vld [vmem:[#allocation3 + $0x58] sm:$0xff]
  %v608 = vld [vmem:[#allocation3 + $0x60] sm:$0xff]
  %v609 = vld [vmem:[#allocation3 + $0x68] sm:$0xff]
  %v610 = vld [vmem:[#allocation3 + $0x70] sm:$0xff]
  %v611 = vld [vmem:[#allocation3 + $0x78] sm:$0xff]
  %v612 = vld [vmem:[#allocation3 + $0x80] sm:$0xff]
  %v613 = vld [vmem:[#allocation3 + $0x88] sm:$0xff]
  %v614 = vld [vmem:[#allocation3 + $0x90] sm:$0xff]
  %v615 = vld [vmem:[#allocation3 + $0x98] sm:$0xff]
  %v616 = vld [vmem:[#allocation3 + $0xa0] sm:$0xff]
  %v617 = vld [vmem:[#allocation3 + $0xa8] sm:$0xff]
  %v618 = vld [vmem:[#allocation3 + $0xb0] sm:$0xff]
  %v619 = vld [vmem:[#allocation3 + $0xb8] sm:$0xff]
  %v620 = vld [vmem:[#allocation3 + $0xc0] sm:$0xff]
  %v621 = vld [vmem:[#allocation3 + $0xc8] sm:$0xff]
  %v622 = vld [vmem:[#allocation3 + $0xd0] sm:$0xff]
  %v623 = vld [vmem:[#allocation3 + $0xd8] sm:$0xff]
  %v624 = vld [vmem:[#allocation3 + $0xe0] sm:$0xff]
  %v625 = vld [vmem:[#allocation3 + $0xe8] sm:$0xff]
  %v626 = vld [vmem:[#allocation3 + $0xf0] sm:$0xff]
  %v627 = vld [vmem:[#allocation3 + $0xf8] sm:$0xff]
  %v628 = vld [vmem:[#allocation3 + $0x100] sm:$0xff]
  %v629 = vld [vmem:[#allocation3 + $0x108] sm:$0xff]
  %v630 = vld [vmem:[#allocation3 + $0x110] sm:$0xff]
  %v631 = vld [vmem:[#allocation3 + $0x118] sm:$0xff]
  %v632 = vld [vmem:[#allocation3 + $0x120] sm:$0xff]
  %v633 = vld [vmem:[#allocation3 + $0x128] sm:$0xff]
  %v634 = vld [vmem:[#allocation3 + $0x130] sm:$0xff]
  %v635 = vld [vmem:[#allocation3 + $0x138] sm:$0xff]
  %v636 = vld [vmem:[#allocation3 + $0x140] sm:$0xff]
  %v637 = vld [vmem:[#allocation3 + $0x148] sm:$0xff]
  %v638 = vld [vmem:[#allocation3 + $0x150] sm:$0xff]
  %v639 = vld [vmem:[#allocation3 + $0x158] sm:$0xff]
  %v640 = vld [vmem:[#allocation3 + $0x160] sm:$0xff]
  %v641 = vld [vmem:[#allocation3 + $0x168] sm:$0xff]
  %v642 = vld [vmem:[#allocation3 + $0x170] sm:$0xff]
  %v643 = vld [vmem:[#allocation3 + $0x178] sm:$0xff]
  %v644 = vld [vmem:[#allocation3 + $0x180] sm:$0xff]
  %v645 = vld [vmem:[#allocation3 + $0x188] sm:$0xff]
  %v646 = vld [vmem:[#allocation3 + $0x190] sm:$0xff]
  %v647 = vld [vmem:[#allocation3 + $0x198] sm:$0xff]
  %v648 = vld [vmem:[#allocation3 + $0x1a0] sm:$0xff]
  %v649 = vld [vmem:[#allocation3 + $0x1a8] sm:$0xff]
  %v650 = vld [vmem:[#allocation3 + $0x1b0] sm:$0xff]
  %v651 = vld [vmem:[#allocation3 + $0x1b8] sm:$0xff]
  %v652 = vld [vmem:[#allocation3 + $0x1c0] sm:$0xff]
  %v653 = vld [vmem:[#allocation3 + $0x1c8] sm:$0xff]
  %v654 = vld [vmem:[#allocation3 + $0x1d0] sm:$0xff]
  %v655 = vld [vmem:[#allocation3 + $0x1d8] sm:$0xff]
  %v656 = vld [vmem:[#allocation3 + $0x1e0] sm:$0xff]
  %v657 = vld [vmem:[#allocation3 + $0x1e8] sm:$0xff]
  %v658 = vld [vmem:[#allocation3 + $0x1f0] sm:$0xff]
  %v659 = vld [vmem:[#allocation3 + $0x1f8] sm:$0xff]
  %v660 = vld [vmem:[#allocation3 + $0x200] sm:$0xff]
  %v661 = vld [vmem:[#allocation3 + $0x208] sm:$0xff]
  %v662 = vld [vmem:[#allocation3 + $0x210] sm:$0xff]
  %v663 = vld [vmem:[#allocation3 + $0x218] sm:$0xff]
  %v664 = vld [vmem:[#allocation3 + $0x220] sm:$0xff]
  %v665 = vld [vmem:[#allocation3 + $0x228] sm:$0xff]
  %v666 = vld [vmem:[#allocation3 + $0x230] sm:$0xff]
  %v667 = vld [vmem:[#allocation3 + $0x238] sm:$0xff]
  %v668 = vld [vmem:[#allocation3 + $0x240] sm:$0xff]
  %v669 = vld [vmem:[#allocation3 + $0x248] sm:$0xff]
  %v670 = vld [vmem:[#allocation3 + $0x250] sm:$0xff]
  %v671 = vld [vmem:[#allocation3 + $0x258] sm:$0xff]
  %v672 = vld [vmem:[#allocation3 + $0x260] sm:$0xff]
  %v673 = vld [vmem:[#allocation3 + $0x268] sm:$0xff]
  %v674 = vld [vmem:[#allocation3 + $0x270] sm:$0xff]
  %v675 = vld [vmem:[#allocation3 + $0x278] sm:$0xff]
  %v676 = vld [vmem:[%s6] sm:$0xf]
  %678 = vset.pattern.permute.xlu0 0
  %679 = vperm.xlu0 %678, %v676
  %v680 = vpop.permute.xlu0 %679
  %vm682 = vcmask 654336
  %v684 = vsel %vm682, %v595, 0
  %686 = vmatprep.subr.mxu0 %v597
  %687 = vmatpush1.msra.mxu0 %v596
  %688 = vmatprep.subr.mxu0 %v605
  %689 = vmatpush1.msra.mxu0 %v604
  %690 = vmatprep.subr.mxu0 %v613
  %691 = vmatpush1.msra.mxu0 %v612
  %692 = vmatprep.subr.mxu0 %v621
  %693 = vmatpush1.msra.mxu0 %v620
  %694 = vmatprep.subr.mxu0 %v629
  %695 = vmatpush1.msra.mxu0 %v628
  %696 = vmatprep.subr.mxu0 %v637
  %697 = vmatpush1.msra.mxu0 %v636
  %698 = vmatprep.subr.mxu0 %v645
  %699 = vmatpush1.msra.mxu0 %v644
  %700 = vmatprep.subr.mxu0 %v653
  %701 = vmatpush1.msra.mxu0 %v652
  %702 = vmatprep.subr.mxu0 %v661
  %703 = vmatpush1.msra.mxu0 %v660
  %704 = vmatprep.subr.mxu0 %v669
  %705 = vmatpush1.msra.mxu0 %v668
  %706 = vmatprep.subr.mxu0 0.0
  %707 = vmatpush1.msra.mxu0 0.0
  %708 = vmatprep.subr.mxu0 0.0
  %709 = vmatpush1.msra.mxu0 0.0
  %710 = vmatprep.subr.mxu0 0.0
  %711 = vmatpush1.msra.mxu0 0.0
  %712 = vmatprep.subr.mxu0 0.0
  %713 = vmatpush1.msra.mxu0 0.0
  %714 = vmatprep.subr.mxu0 0.0
  %715 = vmatpush1.msra.mxu0 0.0
  %716 = vmatprep.subr.mxu0 0.0
  %717 = vmatpush1.msra.mxu0 0.0
  %718 = vmatprep.subr.mxu0 0.0
  %719 = vmatpush1.msra.mxu0 0.0
  %720 = vmatprep.subr.mxu0 0.0
  %721 = vmatpush1.msra.mxu0 0.0
  %722 = vmatprep.subr.mxu0 0.0
  %723 = vmatpush1.msra.mxu0 0.0
  %724 = vmatprep.subr.mxu0 0.0
  %725 = vmatpush1.msra.mxu0 0.0
  %726 = vmatprep.subr.mxu0 0.0
  %727 = vmatpush1.msra.mxu0 0.0
  %728 = vmatprep.subr.mxu0 0.0
  %729 = vmatpush1.msra.mxu0 0.0
  %730 = vmatprep.subr.mxu0 0.0
  %731 = vmatpush1.msra.mxu0 0.0
  %732 = vmatprep.subr.mxu0 0.0
  %733 = vmatpush1.msra.mxu0 0.0
  %734 = vmatprep.subr.mxu0 0.0
  %735 = vmatpush1.msra.mxu0 0.0
  %736 = vmatprep.subr.mxu0 0.0
  %737 = vmatpush1.msra.mxu0 0.0
  %738 = vmatprep.subr.mxu0 0.0
  %739 = vmatpush1.msra.mxu0 0.0
  %740 = vmatprep.subr.mxu0 0.0
  %741 = vmatpush1.msra.mxu0 0.0
  %742 = vmatprep.subr.mxu0 0.0
  %743 = vmatpush1.msra.mxu0 0.0
  %744 = vmatprep.subr.mxu0 0.0
  %745 = vmatpush1.msra.mxu0 0.0
  %746 = vmatprep.subr.mxu0 0.0
  %747 = vmatpush1.msra.mxu0 0.0
  %748 = vmatprep.subr.mxu0 0.0
  %749 = vmatpush1.msra.mxu0 0.0
  %750 = vmatprep.mubr.f32.mxu0 0.0
  %751 = vmatmul.mubr.f32.gmra.mrb[0].mxu0 %v684
  %v752 = vpop.f32.mrb[0].mxu0
  %v753 = vadd.f32 %v680, %v752
  %v754 = vpop.f32.mrb[0].mxu0
  %v755 = vadd.f32 %v680, %v754
  %756 = vdwg.mxu0
  %757 = vmatprep.subr.mxu0 %v599
  %758 = vmatpush1.msra.mxu0 %v598
  %759 = vmatprep.subr.mxu0 %v607
  %760 = vmatpush1.msra.mxu0 %v606
  %761 = vmatprep.subr.mxu0 %v615
  %762 = vmatpush1.msra.mxu0 %v614
  %763 = vmatprep.subr.mxu0 %v623
  %764 = vmatpush1.msra.mxu0 %v622
  %765 = vmatprep.subr.mxu0 %v631
  %766 = vmatpush1.msra.mxu0 %v630
  %767 = vmatprep.subr.mxu0 %v639
  %768 = vmatpush1.msra.mxu0 %v638
  %769 = vmatprep.subr.mxu0 %v647
  %770 = vmatpush1.msra.mxu0 %v646
  %771 = vmatprep.subr.mxu0 %v655
  %772 = vmatpush1.msra.mxu0 %v654
  %773 = vmatprep.subr.mxu0 %v663
  %774 = vmatpush1.msra.mxu0 %v662
  %775 = vmatprep.subr.mxu0 %v671
  %776 = vmatpush1.msra.mxu0 %v670
  %777 = vmatprep.subr.mxu0 0.0
  %778 = vmatpush1.msra.mxu0 0.0
  %779 = vmatprep.subr.mxu0 0.0
  %780 = vmatpush1.msra.mxu0 0.0
  %781 = vmatprep.subr.mxu0 0.0
  %782 = vmatpush1.msra.mxu0 0.0
  %783 = vmatprep.subr.mxu0 0.0
  %784 = vmatpush1.msra.mxu0 0.0
  %785 = vmatprep.subr.mxu0 0.0
  %786 = vmatpush1.msra.mxu0 0.0
  %787 = vmatprep.subr.mxu0 0.0
  %788 = vmatpush1.msra.mxu0 0.0
  %789 = vmatprep.subr.mxu0 0.0
  %790 = vmatpush1.msra.mxu0 0.0
  %791 = vmatprep.subr.mxu0 0.0
  %792 = vmatpush1.msra.mxu0 0.0
  %793 = vmatprep.subr.mxu0 0.0
  %794 = vmatpush1.msra.mxu0 0.0
  %795 = vmatprep.subr.mxu0 0.0
  %796 = vmatpush1.msra.mxu0 0.0
  %797 = vmatprep.subr.mxu0 0.0
  %798 = vmatpush1.msra.mxu0 0.0
  %799 = vmatprep.subr.mxu0 0.0
  %800 = vmatpush1.msra.mxu0 0.0
  %801 = vmatprep.subr.mxu0 0.0
  %802 = vmatpush1.msra.mxu0 0.0
  %803 = vmatprep.subr.mxu0 0.0
  %804 = vmatpush1.msra.mxu0 0.0
  %805 = vmatprep.subr.mxu0 0.0
  %806 = vmatpush1.msra.mxu0 0.0
  %807 = vmatprep.subr.mxu0 0.0
  %808 = vmatpush1.msra.mxu0 0.0
  %809 = vmatprep.subr.mxu0 0.0
  %810 = vmatpush1.msra.mxu0 0.0
  %811 = vmatprep.subr.mxu0 0.0
  %812 = vmatpush1.msra.mxu0 0.0
  %813 = vmatprep.subr.mxu0 0.0
  %814 = vmatpush1.msra.mxu0 0.0
  %815 = vmatprep.subr.mxu0 0.0
  %816 = vmatpush1.msra.mxu0 0.0
  %817 = vmatprep.subr.mxu0 0.0
  %818 = vmatpush1.msra.mxu0 0.0
  %819 = vmatprep.subr.mxu0 0.0
  %820 = vmatpush1.msra.mxu0 0.0
  %821 = vmatprep.mubr.f32.mxu0 0.0
  %822 = vmatmul.mubr.f32.gmra.mrb[0].mxu0 %v684
  %v823 = vpop.f32.mrb[0].mxu0
  %v824 = vadd.f32 %v680, %v823
  %v825 = vpop.f32.mrb[0].mxu0
  %v826 = vadd.f32 %v680, %v825
  %827 = vdwg.mxu0
  %828 = vmatprep.subr.mxu0 %v601
  %829 = vmatpush1.msra.mxu0 %v600
  %830 = vmatprep.subr.mxu0 %v609
  %831 = vmatpush1.msra.mxu0 %v608
  %832 = vmatprep.subr.mxu0 %v617
  %833 = vmatpush1.msra.mxu0 %v616
  %834 = vmatprep.subr.mxu0 %v625
  %835 = vmatpush1.msra.mxu0 %v624
  %836 = vmatprep.subr.mxu0 %v633
  %837 = vmatpush1.msra.mxu0 %v632
  %838 = vmatprep.subr.mxu0 %v641
  %839 = vmatpush1.msra.mxu0 %v640
  %840 = vmatprep.subr.mxu0 %v649
  %841 = vmatpush1.msra.mxu0 %v648
  %842 = vmatprep.subr.mxu0 %v657
  %843 = vmatpush1.msra.mxu0 %v656
  %844 = vmatprep.subr.mxu0 %v665
  %845 = vmatpush1.msra.mxu0 %v664
  %846 = vmatprep.subr.mxu0 %v673
  %847 = vmatpush1.msra.mxu0 %v672
  %848 = vmatprep.subr.mxu0 0.0
  %849 = vmatpush1.msra.mxu0 0.0
  %850 = vmatprep.subr.mxu0 0.0
  %851 = vmatpush1.msra.mxu0 0.0
  %852 = vmatprep.subr.mxu0 0.0
  %853 = vmatpush1.msra.mxu0 0.0
  %854 = vmatprep.subr.mxu0 0.0
  %855 = vmatpush1.msra.mxu0 0.0
  %856 = vmatprep.subr.mxu0 0.0
  %857 = vmatpush1.msra.mxu0 0.0
  %858 = vmatprep.subr.mxu0 0.0
  %859 = vmatpush1.msra.mxu0 0.0
  %860 = vmatprep.subr.mxu0 0.0
  %861 = vmatpush1.msra.mxu0 0.0
  %862 = vmatprep.subr.mxu0 0.0
  %863 = vmatpush1.msra.mxu0 0.0
  %864 = vmatprep.subr.mxu0 0.0
  %865 = vmatpush1.msra.mxu0 0.0
  %866 = vmatprep.subr.mxu0 0.0
  %867 = vmatpush1.msra.mxu0 0.0
  %868 = vmatprep.subr.mxu0 0.0
  %869 = vmatpush1.msra.mxu0 0.0
  %870 = vmatprep.subr.mxu0 0.0
  %871 = vmatpush1.msra.mxu0 0.0
  %872 = vmatprep.subr.mxu0 0.0
  %873 = vmatpush1.msra.mxu0 0.0
  %874 = vmatprep.subr.mxu0 0.0
  %875 = vmatpush1.msra.mxu0 0.0
  %876 = vmatprep.subr.mxu0 0.0
  %877 = vmatpush1.msra.mxu0 0.0
  %878 = vmatprep.subr.mxu0 0.0
  %879 = vmatpush1.msra.mxu0 0.0
  %880 = vmatprep.subr.mxu0 0.0
  %881 = vmatpush1.msra.mxu0 0.0
  %882 = vmatprep.subr.mxu0 0.0
  %883 = vmatpush1.msra.mxu0 0.0
  %884 = vmatprep.subr.mxu0 0.0
  %885 = vmatpush1.msra.mxu0 0.0
  %886 = vmatprep.subr.mxu0 0.0
  %887 = vmatpush1.msra.mxu0 0.0
  %888 = vmatprep.subr.mxu0 0.0
  %889 = vmatpush1.msra.mxu0 0.0
  %890 = vmatprep.subr.mxu0 0.0
  %891 = vmatpush1.msra.mxu0 0.0
  %892 = vmatprep.mubr.f32.mxu0 0.0
  %893 = vmatmul.mubr.f32.gmra.mrb[0].mxu0 %v684
  %v894 = vpop.f32.mrb[0].mxu0
  %v895 = vadd.f32 %v680, %v894
  %v896 = vpop.f32.mrb[0].mxu0
  %v897 = vadd.f32 %v680, %v896
  %898 = vdwg.mxu0
  %899 = vmatprep.subr.mxu0 %v603
  %900 = vmatpush1.msra.mxu0 %v602
  %901 = vmatprep.subr.mxu0 %v611
  %902 = vmatpush1.msra.mxu0 %v610
  %903 = vmatprep.subr.mxu0 %v619
  %904 = vmatpush1.msra.mxu0 %v618
  %905 = vmatprep.subr.mxu0 %v627
  %906 = vmatpush1.msra.mxu0 %v626
  %907 = vmatprep.subr.mxu0 %v635
  %908 = vmatpush1.msra.mxu0 %v634
  %909 = vmatprep.subr.mxu0 %v643
  %910 = vmatpush1.msra.mxu0 %v642
  %911 = vmatprep.subr.mxu0 %v651
  %912 = vmatpush1.msra.mxu0 %v650
  %913 = vmatprep.subr.mxu0 %v659
  %914 = vmatpush1.msra.mxu0 %v658
  %915 = vmatprep.subr.mxu0 %v667
  %916 = vmatpush1.msra.mxu0 %v666
  %917 = vmatprep.subr.mxu0 %v675
  %918 = vmatpush1.msra.mxu0 %v674
  %919 = vmatprep.subr.mxu0 0.0
  %920 = vmatpush1.msra.mxu0 0.0
  %921 = vmatprep.subr.mxu0 0.0
  %922 = vmatpush1.msra.mxu0 0.0
  %923 = vmatprep.subr.mxu0 0.0
  %924 = vmatpush1.msra.mxu0 0.0
  %925 = vmatprep.subr.mxu0 0.0
  %926 = vmatpush1.msra.mxu0 0.0
  %927 = vmatprep.subr.mxu0 0.0
  %928 = vmatpush1.msra.mxu0 0.0
  %929 = vmatprep.subr.mxu0 0.0
  %930 = vmatpush1.msra.mxu0 0.0
  %931 = vmatprep.subr.mxu0 0.0
  %932 = vmatpush1.msra.mxu0 0.0
  %933 = vmatprep.subr.mxu0 0.0
  %934 = vmatpush1.msra.mxu0 0.0
  %935 = vmatprep.subr.mxu0 0.0
  %936 = vmatpush1.msra.mxu0 0.0
  %937 = vmatprep.subr.mxu0 0.0
  %938 = vmatpush1.msra.mxu0 0.0
  %939 = vmatprep.subr.mxu0 0.0
  %940 = vmatpush1.msra.mxu0 0.0
  %941 = vmatprep.subr.mxu0 0.0
  %942 = vmatpush1.msra.mxu0 0.0
  %943 = vmatprep.subr.mxu0 0.0
  %944 = vmatpush1.msra.mxu0 0.0
  %945 = vmatprep.subr.mxu0 0.0
  %946 = vmatpush1.msra.mxu0 0.0
  %947 = vmatprep.subr.mxu0 0.0
  %948 = vmatpush1.msra.mxu0 0.0
  %949 = vmatprep.subr.mxu0 0.0
  %950 = vmatpush1.msra.mxu0 0.0
  %951 = vmatprep.subr.mxu0 0.0
  %952 = vmatpush1.msra.mxu0 0.0
  %953 = vmatprep.subr.mxu0 0.0
  %954 = vmatpush1.msra.mxu0 0.0
  %955 = vmatprep.subr.mxu0 0.0
  %956 = vmatpush1.msra.mxu0 0.0
  %957 = vmatprep.subr.mxu0 0.0
  %958 = vmatpush1.msra.mxu0 0.0
  %959 = vmatprep.subr.mxu0 0.0
  %960 = vmatpush1.msra.mxu0 0.0
  %961 = vmatprep.subr.mxu0 0.0
  %962 = vmatpush1.msra.mxu0 0.0
  %963 = vmatprep.mubr.f32.mxu0 0.0
  %964 = vmatmul.mubr.f32.gmra.mrb[0].mxu0 %v684
  %v965 = vpop.f32.mrb[0].mxu0
  %v966 = vadd.f32 %v680, %v965
  %v967 = vpop.f32.mrb[0].mxu0
  %v968 = vadd.f32 %v680, %v967
  %969 = vdwg.mxu0
  %v978 = vrot.slane %v753, 7
  %v979 = vrot.slane %v755, 7
  %v980 = vrot.slane %v824, 7
  %v981 = vrot.slane %v826, 7
  %v982 = vrot.slane %v895, 7
  %v983 = vrot.slane %v897, 7
  %v984 = vrot.slane %v966, 7
  %v985 = vrot.slane %v968, 7
  %994 = vst [vmem:[#allocation2] sm:$0x1e] %v978
  %995 = vst [vmem:[#allocation2 + $0x8] sm:$0x1e] %v979
  %996 = vst [vmem:[#allocation2 + $0x10] sm:$0x1e] %v980
  %997 = vst [vmem:[#allocation2 + $0x18] sm:$0x1e] %v981
  %998 = vst [vmem:[#allocation2 + $0x20] sm:$0x1e] %v982
  %999 = vst [vmem:[#allocation2 + $0x28] sm:$0x1e] %v983
  %1000 = vst [vmem:[#allocation2 + $0x30] sm:$0x1e] %v984
  %1001 = vst [vmem:[#allocation2 + $0x38] sm:$0x1e] %v985
  %v1002 = vld [vmem:[#allocation2] sm:$0x1f]
  %v1003 = vld [vmem:[#allocation2 + $0x8] sm:$0x1f]
  %v1004 = vld [vmem:[#allocation2 + $0x10] sm:$0x1f]
  %v1005 = vld [vmem:[#allocation2 + $0x18] sm:$0x1f]
  %v1006 = vld [vmem:[#allocation2 + $0x20] sm:$0x1f]
  %v1007 = vld [vmem:[#allocation2 + $0x28] sm:$0x1f]
  %v1008 = vld [vmem:[#allocation2 + $0x30] sm:$0x1f]
  %v1009 = vld [vmem:[#allocation2 + $0x38] sm:$0x1f]
  %v1010 = vld [vmem:[%s7] sm:$0x1f]
  %1012 = vset.pattern.permute.xlu0 0
  %1013 = vperm.xlu0 %1012, %v1010
  %v1014 = vpop.permute.xlu0 %1013
  %v1016 = vmul.f32 %v1002, %v1014
  %v1017 = vmul.f32 %v1003, %v1014
  %v1018 = vmul.f32 %v1004, %v1014
  %v1019 = vmul.f32 %v1005, %v1014
  %v1020 = vmul.f32 %v1006, %v1014
  %v1021 = vmul.f32 %v1007, %v1014
  %v1022 = vmul.f32 %v1008, %v1014
  %v1023 = vmul.f32 %v1009, %v1014
  %v1024 = vld [vmem:[%s8] sm:$0x1f]
  %1026 = vset.pattern.permute.xlu0 0
  %1027 = vperm.xlu0 %1026, %v1024
  %v1028 = vpop.permute.xlu0 %1027
  %v1030 = vadd.f32 %v1016, %v1028
  %v1031 = vadd.f32 %v1017, %v1028
  %v1032 = vadd.f32 %v1018, %v1028
  %v1033 = vadd.f32 %v1019, %v1028
  %v1034 = vadd.f32 %v1020, %v1028
  %v1035 = vadd.f32 %v1021, %v1028
  %v1036 = vadd.f32 %v1022, %v1028
  %v1037 = vadd.f32 %v1023, %v1028
  %vm1038 = vcmp.gt.f32.partialorder %v1030, 0.0
  %vm1039 = vcmp.gt.f32.partialorder %v1031, 0.0
  %vm1040 = vcmp.gt.f32.partialorder %v1032, 0.0
  %vm1041 = vcmp.gt.f32.partialorder %v1033, 0.0
  %vm1042 = vcmp.gt.f32.partialorder %v1034, 0.0
  %vm1043 = vcmp.gt.f32.partialorder %v1035, 0.0
  %vm1044 = vcmp.gt.f32.partialorder %v1036, 0.0
  %vm1045 = vcmp.gt.f32.partialorder %v1037, 0.0
  %v1046 = vmul.f32 %v1030, 0.01
  %v1047 = vmul.f32 %v1031, 0.01
  %v1048 = vmul.f32 %v1032, 0.01
  %v1049 = vmul.f32 %v1033, 0.01
  %v1050 = vmul.f32 %v1034, 0.01
  %v1051 = vmul.f32 %v1035, 0.01
  %v1052 = vmul.f32 %v1036, 0.01
  %v1053 = vmul.f32 %v1037, 0.01
  %v1054 = vsel %vm1038, %v1030, %v1046
  %v1055 = vsel %vm1039, %v1031, %v1047
  %v1056 = vsel %vm1040, %v1032, %v1048
  %v1057 = vsel %vm1041, %v1033, %v1049
  %v1058 = vsel %vm1042, %v1034, %v1050
  %v1059 = vsel %vm1043, %v1035, %v1051
  %v1060 = vsel %vm1044, %v1036, %v1052
  %v1061 = vsel %vm1045, %v1037, %v1053
  %v1062 = vld [vmem:[%s9] sm:$0xff]
  %v1063 = vld [vmem:[%s9 + $0x8] sm:$0xff]
  %v1064 = vld [vmem:[%s10] sm:$0xff]
  %v1065 = vld [vmem:[%s10 + $0x8] sm:$0xff]
  %1067 = vset.pattern.permute.xlu0 0
  %1068 = vperm.xlu0 %1067, %v1064
  %v1069 = vpop.permute.xlu0 %1068
  %1072 = vset.pattern.permute.xlu0 0
  %1073 = vperm.xlu0 %1072, %v1065
  %v1074 = vpop.permute.xlu0 %1073
  %vm1076 = vcmask 39936
  %v1078 = vsel %vm1076, %v1062, 0
  %v1081 = vsel %vm1076, %v1063, 0
  %vm1083 = vcmask 1044480
  %v1085 = vsel %vm1083, %v1054, 0
  %v1088 = vsel %vm1083, %v1055, 0
  %v1091 = vsel %vm1083, %v1056, 0
  %v1094 = vsel %vm1083, %v1057, 0
  %v1097 = vsel %vm1083, %v1058, 0
  %v1100 = vsel %vm1083, %v1059, 0
  %v1103 = vsel %vm1083, %v1060, 0
  %v1106 = vsel %vm1083, %v1061, 0
  %1108 = vmatprep.subr.mxu0 %v1088
  %1109 = vmatpush1.msra.mxu0 %v1085
  %1110 = vmatprep.subr.mxu0 0.0
  %1111 = vmatpush1.msra.mxu0 0.0
  %1112 = vmatprep.subr.mxu0 0.0
  %1113 = vmatpush1.msra.mxu0 0.0
  %1114 = vmatprep.subr.mxu0 0.0
  %1115 = vmatpush1.msra.mxu0 0.0
  %1116 = vmatprep.subr.mxu0 0.0
  %1117 = vmatpush1.msra.mxu0 0.0
  %1118 = vmatprep.subr.mxu0 0.0
  %1119 = vmatpush1.msra.mxu0 0.0
  %1120 = vmatprep.subr.mxu0 0.0
  %1121 = vmatpush1.msra.mxu0 0.0
  %1122 = vmatprep.subr.mxu0 0.0
  %1123 = vmatpush1.msra.mxu0 0.0
  %1124 = vmatprep.subr.mxu0 0.0
  %1125 = vmatpush1.msra.mxu0 0.0
  %1126 = vmatprep.subr.mxu0 0.0
  %1127 = vmatpush1.msra.mxu0 0.0
  %1128 = vmatprep.subr.mxu0 0.0
  %1129 = vmatpush1.msra.mxu0 0.0
  %1130 = vmatprep.subr.mxu0 0.0
  %1131 = vmatpush1.msra.mxu0 0.0
  %1132 = vmatprep.subr.mxu0 0.0
  %1133 = vmatpush1.msra.mxu0 0.0
  %1134 = vmatprep.subr.mxu0 0.0
  %1135 = vmatpush1.msra.mxu0 0.0
  %1136 = vmatprep.subr.mxu0 0.0
  %1137 = vmatpush1.msra.mxu0 0.0
  %1138 = vmatprep.subr.mxu0 0.0
  %1139 = vmatpush1.msra.mxu0 0.0
  %1140 = vmatprep.subr.mxu0 0.0
  %1141 = vmatpush1.msra.mxu0 0.0
  %1142 = vmatprep.subr.mxu0 0.0
  %1143 = vmatpush1.msra.mxu0 0.0
  %1144 = vmatprep.subr.mxu0 0.0
  %1145 = vmatpush1.msra.mxu0 0.0
  %1146 = vmatprep.subr.mxu0 0.0
  %1147 = vmatpush1.msra.mxu0 0.0
  %1148 = vmatprep.subr.mxu0 0.0
  %1149 = vmatpush1.msra.mxu0 0.0
  %1150 = vmatprep.subr.mxu0 0.0
  %1151 = vmatpush1.msra.mxu0 0.0
  %1152 = vmatprep.subr.mxu0 0.0
  %1153 = vmatpush1.msra.mxu0 0.0
  %1154 = vmatprep.subr.mxu0 0.0
  %1155 = vmatpush1.msra.mxu0 0.0
  %1156 = vmatprep.subr.mxu0 0.0
  %1157 = vmatpush1.msra.mxu0 0.0
  %1158 = vmatprep.subr.mxu0 0.0
  %1159 = vmatpush1.msra.mxu0 0.0
  %1160 = vmatprep.subr.mxu0 0.0
  %1161 = vmatpush1.msra.mxu0 0.0
  %1162 = vmatprep.subr.mxu0 0.0
  %1163 = vmatpush1.msra.mxu0 0.0
  %1164 = vmatprep.subr.mxu0 0.0
  %1165 = vmatpush1.msra.mxu0 0.0
  %1166 = vmatprep.subr.mxu0 0.0
  %1167 = vmatpush1.msra.mxu0 0.0
  %1168 = vmatprep.subr.mxu0 0.0
  %1169 = vmatpush1.msra.mxu0 0.0
  %1170 = vmatprep.subr.mxu0 0.0
  %1171 = vmatpush1.msra.mxu0 0.0
  %1172 = vmatprep.mubr.f32.mxu0 0.0
  %1173 = vmatmul.mubr.f32.gmra.mrb[0].mxu0 %v1078
  %v1174 = vpop.f32.mrb[0].mxu0
  %v1175 = vadd.f32 %v1069, %v1174
  %v1176 = vpop.f32.mrb[0].mxu0
  %v1177 = vadd.f32 %v1069, %v1176
  %1178 = vmatprep.mubr.f32.mxu0 0.0
  %1179 = vmatmul.mubr.f32.gmra.mrb[0].mxu0 %v1081
  %v1180 = vpop.f32.mrb[0].mxu0
  %v1181 = vadd.f32 %v1074, %v1180
  %v1182 = vpop.f32.mrb[0].mxu0
  %v1183 = vadd.f32 %v1074, %v1182
  %1184 = vdwg.mxu0
  %1185 = vmatprep.subr.mxu0 %v1094
  %1186 = vmatpush1.msra.mxu0 %v1091
  %1187 = vmatprep.subr.mxu0 0.0
  %1188 = vmatpush1.msra.mxu0 0.0
  %1189 = vmatprep.subr.mxu0 0.0
  %1190 = vmatpush1.msra.mxu0 0.0
  %1191 = vmatprep.subr.mxu0 0.0
  %1192 = vmatpush1.msra.mxu0 0.0
  %1193 = vmatprep.subr.mxu0 0.0
  %1194 = vmatpush1.msra.mxu0 0.0
  %1195 = vmatprep.subr.mxu0 0.0
  %1196 = vmatpush1.msra.mxu0 0.0
  %1197 = vmatprep.subr.mxu0 0.0
  %1198 = vmatpush1.msra.mxu0 0.0
  %1199 = vmatprep.subr.mxu0 0.0
  %1200 = vmatpush1.msra.mxu0 0.0
  %1201 = vmatprep.subr.mxu0 0.0
  %1202 = vmatpush1.msra.mxu0 0.0
  %1203 = vmatprep.subr.mxu0 0.0
  %1204 = vmatpush1.msra.mxu0 0.0
  %1205 = vmatprep.subr.mxu0 0.0
  %1206 = vmatpush1.msra.mxu0 0.0
  %1207 = vmatprep.subr.mxu0 0.0
  %1208 = vmatpush1.msra.mxu0 0.0
  %1209 = vmatprep.subr.mxu0 0.0
  %1210 = vmatpush1.msra.mxu0 0.0
  %1211 = vmatprep.subr.mxu0 0.0
  %1212 = vmatpush1.msra.mxu0 0.0
  %1213 = vmatprep.subr.mxu0 0.0
  %1214 = vmatpush1.msra.mxu0 0.0
  %1215 = vmatprep.subr.mxu0 0.0
  %1216 = vmatpush1.msra.mxu0 0.0
  %1217 = vmatprep.subr.mxu0 0.0
  %1218 = vmatpush1.msra.mxu0 0.0
  %1219 = vmatprep.subr.mxu0 0.0
  %1220 = vmatpush1.msra.mxu0 0.0
  %1221 = vmatprep.subr.mxu0 0.0
  %1222 = vmatpush1.msra.mxu0 0.0
  %1223 = vmatprep.subr.mxu0 0.0
  %1224 = vmatpush1.msra.mxu0 0.0
  %1225 = vmatprep.subr.mxu0 0.0
  %1226 = vmatpush1.msra.mxu0 0.0
  %1227 = vmatprep.subr.mxu0 0.0
  %1228 = vmatpush1.msra.mxu0 0.0
  %1229 = vmatprep.subr.mxu0 0.0
  %1230 = vmatpush1.msra.mxu0 0.0
  %1231 = vmatprep.subr.mxu0 0.0
  %1232 = vmatpush1.msra.mxu0 0.0
  %1233 = vmatprep.subr.mxu0 0.0
  %1234 = vmatpush1.msra.mxu0 0.0
  %1235 = vmatprep.subr.mxu0 0.0
  %1236 = vmatpush1.msra.mxu0 0.0
  %1237 = vmatprep.subr.mxu0 0.0
  %1238 = vmatpush1.msra.mxu0 0.0
  %1239 = vmatprep.subr.mxu0 0.0
  %1240 = vmatpush1.msra.mxu0 0.0
  %1241 = vmatprep.subr.mxu0 0.0
  %1242 = vmatpush1.msra.mxu0 0.0
  %1243 = vmatprep.subr.mxu0 0.0
  %1244 = vmatpush1.msra.mxu0 0.0
  %1245 = vmatprep.subr.mxu0 0.0
  %1246 = vmatpush1.msra.mxu0 0.0
  %1247 = vmatprep.subr.mxu0 0.0
  %1248 = vmatpush1.msra.mxu0 0.0
  %1249 = vmatprep.mubr.f32.mxu0 0.0
  %1250 = vmatmul.mubr.f32.gmra.mrb[0].mxu0 %v1078
  %v1251 = vpop.f32.mrb[0].mxu0
  %v1252 = vadd.f32 %v1069, %v1251
  %v1253 = vpop.f32.mrb[0].mxu0
  %v1254 = vadd.f32 %v1069, %v1253
  %1255 = vmatprep.mubr.f32.mxu0 0.0
  %1256 = vmatmul.mubr.f32.gmra.mrb[0].mxu0 %v1081
  %v1257 = vpop.f32.mrb[0].mxu0
  %v1258 = vadd.f32 %v1074, %v1257
  %v1259 = vpop.f32.mrb[0].mxu0
  %v1260 = vadd.f32 %v1074, %v1259
  %1261 = vdwg.mxu0
  %1262 = vmatprep.subr.mxu0 %v1100
  %1263 = vmatpush1.msra.mxu0 %v1097
  %1264 = vmatprep.subr.mxu0 0.0
  %1265 = vmatpush1.msra.mxu0 0.0
  %1266 = vmatprep.subr.mxu0 0.0
  %1267 = vmatpush1.msra.mxu0 0.0
  %1268 = vmatprep.subr.mxu0 0.0
  %1269 = vmatpush1.msra.mxu0 0.0
  %1270 = vmatprep.subr.mxu0 0.0
  %1271 = vmatpush1.msra.mxu0 0.0
  %1272 = vmatprep.subr.mxu0 0.0
  %1273 = vmatpush1.msra.mxu0 0.0
  %1274 = vmatprep.subr.mxu0 0.0
  %1275 = vmatpush1.msra.mxu0 0.0
  %1276 = vmatprep.subr.mxu0 0.0
  %1277 = vmatpush1.msra.mxu0 0.0
  %1278 = vmatprep.subr.mxu0 0.0
  %1279 = vmatpush1.msra.mxu0 0.0
  %1280 = vmatprep.subr.mxu0 0.0
  %1281 = vmatpush1.msra.mxu0 0.0
  %1282 = vmatprep.subr.mxu0 0.0
  %1283 = vmatpush1.msra.mxu0 0.0
  %1284 = vmatprep.subr.mxu0 0.0
  %1285 = vmatpush1.msra.mxu0 0.0
  %1286 = vmatprep.subr.mxu0 0.0
  %1287 = vmatpush1.msra.mxu0 0.0
  %1288 = vmatprep.subr.mxu0 0.0
  %1289 = vmatpush1.msra.mxu0 0.0
  %1290 = vmatprep.subr.mxu0 0.0
  %1291 = vmatpush1.msra.mxu0 0.0
  %1292 = vmatprep.subr.mxu0 0.0
  %1293 = vmatpush1.msra.mxu0 0.0
  %1294 = vmatprep.subr.mxu0 0.0
  %1295 = vmatpush1.msra.mxu0 0.0
  %1296 = vmatprep.subr.mxu0 0.0
  %1297 = vmatpush1.msra.mxu0 0.0
  %1298 = vmatprep.subr.mxu0 0.0
  %1299 = vmatpush1.msra.mxu0 0.0
  %1300 = vmatprep.subr.mxu0 0.0
  %1301 = vmatpush1.msra.mxu0 0.0
  %1302 = vmatprep.subr.mxu0 0.0
  %1303 = vmatpush1.msra.mxu0 0.0
  %1304 = vmatprep.subr.mxu0 0.0
  %1305 = vmatpush1.msra.mxu0 0.0
  %1306 = vmatprep.subr.mxu0 0.0
  %1307 = vmatpush1.msra.mxu0 0.0
  %1308 = vmatprep.subr.mxu0 0.0
  %1309 = vmatpush1.msra.mxu0 0.0
  %1310 = vmatprep.subr.mxu0 0.0
  %1311 = vmatpush1.msra.mxu0 0.0
  %1312 = vmatprep.subr.mxu0 0.0
  %1313 = vmatpush1.msra.mxu0 0.0
  %1314 = vmatprep.subr.mxu0 0.0
  %1315 = vmatpush1.msra.mxu0 0.0
  %1316 = vmatprep.subr.mxu0 0.0
  %1317 = vmatpush1.msra.mxu0 0.0
  %1318 = vmatprep.subr.mxu0 0.0
  %1319 = vmatpush1.msra.mxu0 0.0
  %1320 = vmatprep.subr.mxu0 0.0
  %1321 = vmatpush1.msra.mxu0 0.0
  %1322 = vmatprep.subr.mxu0 0.0
  %1323 = vmatpush1.msra.mxu0 0.0
  %1324 = vmatprep.subr.mxu0 0.0
  %1325 = vmatpush1.msra.mxu0 0.0
  %1326 = vmatprep.mubr.f32.mxu0 0.0
  %1327 = vmatmul.mubr.f32.gmra.mrb[0].mxu0 %v1078
  %v1328 = vpop.f32.mrb[0].mxu0
  %v1329 = vadd.f32 %v1069, %v1328
  %v1330 = vpop.f32.mrb[0].mxu0
  %v1331 = vadd.f32 %v1069, %v1330
  %1332 = vmatprep.mubr.f32.mxu0 0.0
  %1333 = vmatmul.mubr.f32.gmra.mrb[0].mxu0 %v1081
  %v1334 = vpop.f32.mrb[0].mxu0
  %v1335 = vadd.f32 %v1074, %v1334
  %v1336 = vpop.f32.mrb[0].mxu0
  %v1337 = vadd.f32 %v1074, %v1336
  %1338 = vdwg.mxu0
  %1339 = vmatprep.subr.mxu0 %v1106
  %1340 = vmatpush1.msra.mxu0 %v1103
  %1341 = vmatprep.subr.mxu0 0.0
  %1342 = vmatpush1.msra.mxu0 0.0
  %1343 = vmatprep.subr.mxu0 0.0
  %1344 = vmatpush1.msra.mxu0 0.0
  %1345 = vmatprep.subr.mxu0 0.0
  %1346 = vmatpush1.msra.mxu0 0.0
  %1347 = vmatprep.subr.mxu0 0.0
  %1348 = vmatpush1.msra.mxu0 0.0
  %1349 = vmatprep.subr.mxu0 0.0
  %1350 = vmatpush1.msra.mxu0 0.0
  %1351 = vmatprep.subr.mxu0 0.0
  %1352 = vmatpush1.msra.mxu0 0.0
  %1353 = vmatprep.subr.mxu0 0.0
  %1354 = vmatpush1.msra.mxu0 0.0
  %1355 = vmatprep.subr.mxu0 0.0
  %1356 = vmatpush1.msra.mxu0 0.0
  %1357 = vmatprep.subr.mxu0 0.0
  %1358 = vmatpush1.msra.mxu0 0.0
  %1359 = vmatprep.subr.mxu0 0.0
  %1360 = vmatpush1.msra.mxu0 0.0
  %1361 = vmatprep.subr.mxu0 0.0
  %1362 = vmatpush1.msra.mxu0 0.0
  %1363 = vmatprep.subr.mxu0 0.0
  %1364 = vmatpush1.msra.mxu0 0.0
  %1365 = vmatprep.subr.mxu0 0.0
  %1366 = vmatpush1.msra.mxu0 0.0
  %1367 = vmatprep.subr.mxu0 0.0
  %1368 = vmatpush1.msra.mxu0 0.0
  %1369 = vmatprep.subr.mxu0 0.0
  %1370 = vmatpush1.msra.mxu0 0.0
  %1371 = vmatprep.subr.mxu0 0.0
  %1372 = vmatpush1.msra.mxu0 0.0
  %1373 = vmatprep.subr.mxu0 0.0
  %1374 = vmatpush1.msra.mxu0 0.0
  %1375 = vmatprep.subr.mxu0 0.0
  %1376 = vmatpush1.msra.mxu0 0.0
  %1377 = vmatprep.subr.mxu0 0.0
  %1378 = vmatpush1.msra.mxu0 0.0
  %1379 = vmatprep.subr.mxu0 0.0
  %1380 = vmatpush1.msra.mxu0 0.0
  %1381 = vmatprep.subr.mxu0 0.0
  %1382 = vmatpush1.msra.mxu0 0.0
  %1383 = vmatprep.subr.mxu0 0.0
  %1384 = vmatpush1.msra.mxu0 0.0
  %1385 = vmatprep.subr.mxu0 0.0
  %1386 = vmatpush1.msra.mxu0 0.0
  %1387 = vmatprep.subr.mxu0 0.0
  %1388 = vmatpush1.msra.mxu0 0.0
  %1389 = vmatprep.subr.mxu0 0.0
  %1390 = vmatpush1.msra.mxu0 0.0
  %1391 = vmatprep.subr.mxu0 0.0
  %1392 = vmatpush1.msra.mxu0 0.0
  %1393 = vmatprep.subr.mxu0 0.0
  %1394 = vmatpush1.msra.mxu0 0.0
  %1395 = vmatprep.subr.mxu0 0.0
  %1396 = vmatpush1.msra.mxu0 0.0
  %1397 = vmatprep.subr.mxu0 0.0
  %1398 = vmatpush1.msra.mxu0 0.0
  %1399 = vmatprep.subr.mxu0 0.0
  %1400 = vmatpush1.msra.mxu0 0.0
  %1401 = vmatprep.subr.mxu0 0.0
  %1402 = vmatpush1.msra.mxu0 0.0
  %1403 = vmatprep.mubr.f32.mxu0 0.0
  %1404 = vmatmul.mubr.f32.gmra.mrb[0].mxu0 %v1078
  %v1405 = vpop.f32.mrb[0].mxu0
  %v1406 = vadd.f32 %v1069, %v1405
  %v1407 = vpop.f32.mrb[0].mxu0
  %v1408 = vadd.f32 %v1069, %v1407
  %1409 = vmatprep.mubr.f32.mxu0 0.0
  %1410 = vmatmul.mubr.f32.gmra.mrb[0].mxu0 %v1081
  %v1411 = vpop.f32.mrb[0].mxu0
  %v1412 = vadd.f32 %v1074, %v1411
  %v1413 = vpop.f32.mrb[0].mxu0
  %v1414 = vadd.f32 %v1074, %v1413
  %1415 = vdwg.mxu0
  %vm1416 = vcmp.gt.f32.partialorder %v1175, 0.0
  %vm1417 = vcmp.gt.f32.partialorder %v1177, 0.0
  %vm1418 = vcmp.gt.f32.partialorder %v1252, 0.0
  %vm1419 = vcmp.gt.f32.partialorder %v1254, 0.0
  %vm1420 = vcmp.gt.f32.partialorder %v1329, 0.0
  %vm1421 = vcmp.gt.f32.partialorder %v1331, 0.0
  %vm1422 = vcmp.gt.f32.partialorder %v1406, 0.0
  %vm1423 = vcmp.gt.f32.partialorder %v1408, 0.0
  %vm1424 = vcmp.gt.f32.partialorder %v1181, 0.0
  %vm1425 = vcmp.gt.f32.partialorder %v1183, 0.0
  %vm1426 = vcmp.gt.f32.partialorder %v1258, 0.0
  %vm1427 = vcmp.gt.f32.partialorder %v1260, 0.0
  %vm1428 = vcmp.gt.f32.partialorder %v1335, 0.0
  %vm1429 = vcmp.gt.f32.partialorder %v1337, 0.0
  %vm1430 = vcmp.gt.f32.partialorder %v1412, 0.0
  %vm1431 = vcmp.gt.f32.partialorder %v1414, 0.0
  %v1432 = vmul.f32 %v1175, 0.01
  %v1433 = vmul.f32 %v1177, 0.01
  %v1434 = vmul.f32 %v1252, 0.01
  %v1435 = vmul.f32 %v1254, 0.01
  %v1436 = vmul.f32 %v1329, 0.01
  %v1437 = vmul.f32 %v1331, 0.01
  %v1438 = vmul.f32 %v1406, 0.01
  %v1439 = vmul.f32 %v1408, 0.01
  %v1440 = vmul.f32 %v1181, 0.01
  %v1441 = vmul.f32 %v1183, 0.01
  %v1442 = vmul.f32 %v1258, 0.01
  %v1443 = vmul.f32 %v1260, 0.01
  %v1444 = vmul.f32 %v1335, 0.01
  %v1445 = vmul.f32 %v1337, 0.01
  %v1446 = vmul.f32 %v1412, 0.01
  %v1447 = vmul.f32 %v1414, 0.01
  %v1448 = vsel %vm1416, %v1175, %v1432
  %v1449 = vsel %vm1417, %v1177, %v1433
  %v1450 = vsel %vm1418, %v1252, %v1434
  %v1451 = vsel %vm1419, %v1254, %v1435
  %v1452 = vsel %vm1420, %v1329, %v1436
  %v1453 = vsel %vm1421, %v1331, %v1437
  %v1454 = vsel %vm1422, %v1406, %v1438
  %v1455 = vsel %vm1423, %v1408, %v1439
  %v1456 = vsel %vm1424, %v1181, %v1440
  %v1457 = vsel %vm1425, %v1183, %v1441
  %v1458 = vsel %vm1426, %v1258, %v1442
  %v1459 = vsel %vm1427, %v1260, %v1443
  %v1460 = vsel %vm1428, %v1335, %v1444
  %v1461 = vsel %vm1429, %v1337, %v1445
  %v1462 = vsel %vm1430, %v1412, %v1446
  %v1463 = vsel %vm1431, %v1414, %v1447
  %1464 = vst [vmem:[#allocation3 + $0x10] sm:$0xff] %v1448
  %1465 = vst [vmem:[#allocation3 + $0x18] sm:$0xff] %v1449
  %1466 = vst [vmem:[#allocation3 + $0x20] sm:$0xff] %v1450
  %1467 = vst [vmem:[#allocation3 + $0x28] sm:$0xff] %v1451
  %1468 = vst [vmem:[#allocation3 + $0x30] sm:$0xff] %v1452
  %1469 = vst [vmem:[#allocation3 + $0x38] sm:$0xff] %v1453
  %1470 = vst [vmem:[#allocation3 + $0x50] sm:$0xff] %v1456
  %1471 = vst [vmem:[#allocation3 + $0x58] sm:$0xff] %v1457
  %1472 = vst [vmem:[#allocation3 + $0x60] sm:$0xff] %v1458
  %1473 = vst [vmem:[#allocation3 + $0x68] sm:$0xff] %v1459
  %1474 = vst [vmem:[#allocation3 + $0x70] sm:$0xff] %v1460
  %1475 = vst [vmem:[#allocation3 + $0x78] sm:$0xff] %v1461
  %1476 = vst [vmem:[#allocation3 + $0x88] sm:$0xff] %v1448
  %1477 = vst [vmem:[#allocation3 + $0x90] sm:$0xff] %v1449
  %1478 = vst [vmem:[#allocation3 + $0x98] sm:$0xff] %v1450
  %1479 = vst [vmem:[#allocation3 + $0xa0] sm:$0xff] %v1451
  %1480 = vst [vmem:[#allocation3 + $0xa8] sm:$0xff] %v1452
  %1481 = vst [vmem:[#allocation3 + $0xb0] sm:$0xff] %v1453
  %1482 = vst [vmem:[#allocation3 + $0xb8] sm:$0xff] %v1454
  %1483 = vst [vmem:[#allocation3 + $0xc8] sm:$0xff] %v1456
  %1484 = vst [vmem:[#allocation3 + $0xd0] sm:$0xff] %v1457
  %1485 = vst [vmem:[#allocation3 + $0xd8] sm:$0xff] %v1458
  %1486 = vst [vmem:[#allocation3 + $0xe0] sm:$0xff] %v1459
  %1487 = vst [vmem:[#allocation3 + $0xe8] sm:$0xff] %v1460
  %1488 = vst [vmem:[#allocation3 + $0xf0] sm:$0xff] %v1461
  %1489 = vst [vmem:[#allocation3 + $0xf8] sm:$0xff] %v1462
  %1490 = vst [vmem:[#allocation3 + $0x100] sm:$0xff] %v1448
  %1491 = vst [vmem:[#allocation3 + $0x108] sm:$0xff] %v1449
  %1492 = vst [vmem:[#allocation3 + $0x110] sm:$0xff] %v1450
  %1493 = vst [vmem:[#allocation3 + $0x118] sm:$0xff] %v1451
  %1494 = vst [vmem:[#allocation3 + $0x120] sm:$0xff] %v1452
  %1495 = vst [vmem:[#allocation3 + $0x128] sm:$0xff] %v1453
  %1496 = vst [vmem:[#allocation3 + $0x130] sm:$0xff] %v1454
  %1497 = vst [vmem:[#allocation3 + $0x138] sm:$0xff] %v1455
  %1498 = vst [vmem:[#allocation3 + $0x140] sm:$0xff] %v1456
  %1499 = vst [vmem:[#allocation3 + $0x148] sm:$0xff] %v1457
  %1500 = vst [vmem:[#allocation3 + $0x150] sm:$0xff] %v1458
  %1501 = vst [vmem:[#allocation3 + $0x158] sm:$0xff] %v1459
  %1502 = vst [vmem:[#allocation3 + $0x160] sm:$0xff] %v1460
  %1503 = vst [vmem:[#allocation3 + $0x168] sm:$0xff] %v1461
  %1504 = vst [vmem:[#allocation3 + $0x170] sm:$0xff] %v1462
  %1505 = vst [vmem:[#allocation3 + $0x178] sm:$0xff] %v1463
  %1506 = vst [vmem:[#allocation3 + $0x180] sm:$0xff] %v1449
  %1507 = vst [vmem:[#allocation3 + $0x188] sm:$0xff] %v1450
  %1508 = vst [vmem:[#allocation3 + $0x190] sm:$0xff] %v1451
  %1509 = vst [vmem:[#allocation3 + $0x198] sm:$0xff] %v1452
  %1510 = vst [vmem:[#allocation3 + $0x1a0] sm:$0xff] %v1453
  %1511 = vst [vmem:[#allocation3 + $0x1a8] sm:$0xff] %v1454
  %1512 = vst [vmem:[#allocation3 + $0x1b0] sm:$0xff] %v1455
  %1513 = vst [vmem:[#allocation3 + $0x1c0] sm:$0xff] %v1457
  %1514 = vst [vmem:[#allocation3 + $0x1c8] sm:$0xff] %v1458
  %1515 = vst [vmem:[#allocation3 + $0x1d0] sm:$0xff] %v1459
  %1516 = vst [vmem:[#allocation3 + $0x1d8] sm:$0xff] %v1460
  %1517 = vst [vmem:[#allocation3 + $0x1e0] sm:$0xff] %v1461
  %1518 = vst [vmem:[#allocation3 + $0x1e8] sm:$0xff] %v1462
  %1519 = vst [vmem:[#allocation3 + $0x1f0] sm:$0xff] %v1463
  %1520 = vst [vmem:[#allocation3 + $0x200] sm:$0xff] %v1450
  %1521 = vst [vmem:[#allocation3 + $0x208] sm:$0xff] %v1451
  %1522 = vst [vmem:[#allocation3 + $0x210] sm:$0xff] %v1452
  %1523 = vst [vmem:[#allocation3 + $0x218] sm:$0xff] %v1453
  %1524 = vst [vmem:[#allocation3 + $0x220] sm:$0xff] %v1454
  %1525 = vst [vmem:[#allocation3 + $0x228] sm:$0xff] %v1455
  %1526 = vst [vmem:[#allocation3 + $0x240] sm:$0xff] %v1458
  %1527 = vst [vmem:[#allocation3 + $0x248] sm:$0xff] %v1459
  %1528 = vst [vmem:[#allocation3 + $0x250] sm:$0xff] %v1460
  %1529 = vst [vmem:[#allocation3 + $0x258] sm:$0xff] %v1461
  %1530 = vst [vmem:[#allocation3 + $0x260] sm:$0xff] %v1462
  %1531 = vst [vmem:[#allocation3 + $0x268] sm:$0xff] %v1463
  %v1532 = vld [vmem:[%s11] sm:$0xf]
  %v1533 = vld [vmem:[#allocation3] sm:$0xff]
  %v1534 = vld [vmem:[#allocation3 + $0x8] sm:$0xff]
  %v1535 = vld [vmem:[#allocation3 + $0x10] sm:$0xff]
  %v1536 = vld [vmem:[#allocation3 + $0x18] sm:$0xff]
  %v1537 = vld [vmem:[#allocation3 + $0x20] sm:$0xff]
  %v1538 = vld [vmem:[#allocation3 + $0x28] sm:$0xff]
  %v1539 = vld [vmem:[#allocation3 + $0x30] sm:$0xff]
  %v1540 = vld [vmem:[#allocation3 + $0x38] sm:$0xff]
  %v1541 = vld [vmem:[#allocation3 + $0x40] sm:$0xff]
  %v1542 = vld [vmem:[#allocation3 + $0x48] sm:$0xff]
  %v1543 = vld [vmem:[#allocation3 + $0x50] sm:$0xff]
  %v1544 = vld [vmem:[#allocation3 + $0x58] sm:$0xff]
  %v1545 = vld [vmem:[#allocation3 + $0x60] sm:$0xff]
  %v1546 = vld [vmem:[#allocation3 + $0x68] sm:$0xff]
  %v1547 = vld [vmem:[#allocation3 + $0x70] sm:$0xff]
  %v1548 = vld [vmem:[#allocation3 + $0x78] sm:$0xff]
  %v1549 = vld [vmem:[#allocation3 + $0x80] sm:$0xff]
  %v1550 = vld [vmem:[#allocation3 + $0x88] sm:$0xff]
  %v1551 = vld [vmem:[#allocation3 + $0x90] sm:$0xff]
  %v1552 = vld [vmem:[#allocation3 + $0x98] sm:$0xff]
  %v1553 = vld [vmem:[#allocation3 + $0xa0] sm:$0xff]
  %v1554 = vld [vmem:[#allocation3 + $0xa8] sm:$0xff]
  %v1555 = vld [vmem:[#allocation3 + $0xb0] sm:$0xff]
  %v1556 = vld [vmem:[#allocation3 + $0xb8] sm:$0xff]
  %v1557 = vld [vmem:[#allocation3 + $0xc0] sm:$0xff]
  %v1558 = vld [vmem:[#allocation3 + $0xc8] sm:$0xff]
  %v1559 = vld [vmem:[#allocation3 + $0xd0] sm:$0xff]
  %v1560 = vld [vmem:[#allocation3 + $0xd8] sm:$0xff]
  %v1561 = vld [vmem:[#allocation3 + $0xe0] sm:$0xff]
  %v1562 = vld [vmem:[#allocation3 + $0xe8] sm:$0xff]
  %v1563 = vld [vmem:[#allocation3 + $0xf0] sm:$0xff]
  %v1564 = vld [vmem:[#allocation3 + $0xf8] sm:$0xff]
  %v1565 = vld [vmem:[#allocation3 + $0x100] sm:$0xff]
  %v1566 = vld [vmem:[#allocation3 + $0x108] sm:$0xff]
  %v1567 = vld [vmem:[#allocation3 + $0x110] sm:$0xff]
  %v1568 = vld [vmem:[#allocation3 + $0x118] sm:$0xff]
  %v1569 = vld [vmem:[#allocation3 + $0x120] sm:$0xff]
  %v1570 = vld [vmem:[#allocation3 + $0x128] sm:$0xff]
  %v1571 = vld [vmem:[#allocation3 + $0x130] sm:$0xff]
  %v1572 = vld [vmem:[#allocation3 + $0x138] sm:$0xff]
  %v1573 = vld [vmem:[#allocation3 + $0x140] sm:$0xff]
  %v1574 = vld [vmem:[#allocation3 + $0x148] sm:$0xff]
  %v1575 = vld [vmem:[#allocation3 + $0x150] sm:$0xff]
  %v1576 = vld [vmem:[#allocation3 + $0x158] sm:$0xff]
  %v1577 = vld [vmem:[#allocation3 + $0x160] sm:$0xff]
  %v1578 = vld [vmem:[#allocation3 + $0x168] sm:$0xff]
  %v1579 = vld [vmem:[#allocation3 + $0x170] sm:$0xff]
  %v1580 = vld [vmem:[#allocation3 + $0x178] sm:$0xff]
  %v1581 = vld [vmem:[#allocation3 + $0x180] sm:$0xff]
  %v1582 = vld [vmem:[#allocation3 + $0x188] sm:$0xff]
  %v1583 = vld [vmem:[#allocation3 + $0x190] sm:$0xff]
  %v1584 = vld [vmem:[#allocation3 + $0x198] sm:$0xff]
  %v1585 = vld [vmem:[#allocation3 + $0x1a0] sm:$0xff]
  %v1586 = vld [vmem:[#allocation3 + $0x1a8] sm:$0xff]
  %v1587 = vld [vmem:[#allocation3 + $0x1b0] sm:$0xff]
  %v1588 = vld [vmem:[#allocation3 + $0x1b8] sm:$0xff]
  %v1589 = vld [vmem:[#allocation3 + $0x1c0] sm:$0xff]
  %v1590 = vld [vmem:[#allocation3 + $0x1c8] sm:$0xff]
  %v1591 = vld [vmem:[#allocation3 + $0x1d0] sm:$0xff]
  %v1592 = vld [vmem:[#allocation3 + $0x1d8] sm:$0xff]
  %v1593 = vld [vmem:[#allocation3 + $0x1e0] sm:$0xff]
  %v1594 = vld [vmem:[#allocation3 + $0x1e8] sm:$0xff]
  %v1595 = vld [vmem:[#allocation3 + $0x1f0] sm:$0xff]
  %v1596 = vld [vmem:[#allocation3 + $0x1f8] sm:$0xff]
  %v1597 = vld [vmem:[#allocation3 + $0x200] sm:$0xff]
  %v1598 = vld [vmem:[#allocation3 + $0x208] sm:$0xff]
  %v1599 = vld [vmem:[#allocation3 + $0x210] sm:$0xff]
  %v1600 = vld [vmem:[#allocation3 + $0x218] sm:$0xff]
  %v1601 = vld [vmem:[#allocation3 + $0x220] sm:$0xff]
  %v1602 = vld [vmem:[#allocation3 + $0x228] sm:$0xff]
  %v1603 = vld [vmem:[#allocation3 + $0x230] sm:$0xff]
  %v1604 = vld [vmem:[#allocation3 + $0x238] sm:$0xff]
  %v1605 = vld [vmem:[#allocation3 + $0x240] sm:$0xff]
  %v1606 = vld [vmem:[#allocation3 + $0x248] sm:$0xff]
  %v1607 = vld [vmem:[#allocation3 + $0x250] sm:$0xff]
  %v1608 = vld [vmem:[#allocation3 + $0x258] sm:$0xff]
  %v1609 = vld [vmem:[#allocation3 + $0x260] sm:$0xff]
  %v1610 = vld [vmem:[#allocation3 + $0x268] sm:$0xff]
  %v1611 = vld [vmem:[#allocation3 + $0x270] sm:$0xff]
  %v1612 = vld [vmem:[#allocation3 + $0x278] sm:$0xff]
  %v1613 = vld [vmem:[%s12] sm:$0xf]
  %1615 = vset.pattern.permute.xlu0 0
  %1616 = vperm.xlu0 %1615, %v1613
  %v1617 = vpop.permute.xlu0 %1616
  %v1620 = vsel %vm682, %v1532, 0
  %1622 = vmatprep.subr.mxu0 %v1534
  %1623 = vmatpush1.msra.mxu0 %v1533
  %1624 = vmatprep.subr.mxu0 %v1542
  %1625 = vmatpush1.msra.mxu0 %v1541
  %1626 = vmatprep.subr.mxu0 %v1550
  %1627 = vmatpush1.msra.mxu0 %v1549
  %1628 = vmatprep.subr.mxu0 %v1558
  %1629 = vmatpush1.msra.mxu0 %v1557
  %1630 = vmatprep.subr.mxu0 %v1566
  %1631 = vmatpush1.msra.mxu0 %v1565
  %1632 = vmatprep.subr.mxu0 %v1574
  %1633 = vmatpush1.msra.mxu0 %v1573
  %1634 = vmatprep.subr.mxu0 %v1582
  %1635 = vmatpush1.msra.mxu0 %v1581
  %1636 = vmatprep.subr.mxu0 %v1590
  %1637 = vmatpush1.msra.mxu0 %v1589
  %1638 = vmatprep.subr.mxu0 %v1598
  %1639 = vmatpush1.msra.mxu0 %v1597
  %1640 = vmatprep.subr.mxu0 %v1606
  %1641 = vmatpush1.msra.mxu0 %v1605
  %1642 = vmatprep.subr.mxu0 0.0
  %1643 = vmatpush1.msra.mxu0 0.0
  %1644 = vmatprep.subr.mxu0 0.0
  %1645 = vmatpush1.msra.mxu0 0.0
  %1646 = vmatprep.subr.mxu0 0.0
  %1647 = vmatpush1.msra.mxu0 0.0
  %1648 = vmatprep.subr.mxu0 0.0
  %1649 = vmatpush1.msra.mxu0 0.0
  %1650 = vmatprep.subr.mxu0 0.0
  %1651 = vmatpush1.msra.mxu0 0.0
  %1652 = vmatprep.subr.mxu0 0.0
  %1653 = vmatpush1.msra.mxu0 0.0
  %1654 = vmatprep.subr.mxu0 0.0
  %1655 = vmatpush1.msra.mxu0 0.0
  %1656 = vmatprep.subr.mxu0 0.0
  %1657 = vmatpush1.msra.mxu0 0.0
  %1658 = vmatprep.subr.mxu0 0.0
  %1659 = vmatpush1.msra.mxu0 0.0
  %1660 = vmatprep.subr.mxu0 0.0
  %1661 = vmatpush1.msra.mxu0 0.0
  %1662 = vmatprep.subr.mxu0 0.0
  %1663 = vmatpush1.msra.mxu0 0.0
  %1664 = vmatprep.subr.mxu0 0.0
  %1665 = vmatpush1.msra.mxu0 0.0
  %1666 = vmatprep.subr.mxu0 0.0
  %1667 = vmatpush1.msra.mxu0 0.0
  %1668 = vmatprep.subr.mxu0 0.0
  %1669 = vmatpush1.msra.mxu0 0.0
  %1670 = vmatprep.subr.mxu0 0.0
  %1671 = vmatpush1.msra.mxu0 0.0
  %1672 = vmatprep.subr.mxu0 0.0
  %1673 = vmatpush1.msra.mxu0 0.0
  %1674 = vmatprep.subr.mxu0 0.0
  %1675 = vmatpush1.msra.mxu0 0.0
  %1676 = vmatprep.subr.mxu0 0.0
  %1677 = vmatpush1.msra.mxu0 0.0
  %1678 = vmatprep.subr.mxu0 0.0
  %1679 = vmatpush1.msra.mxu0 0.0
  %1680 = vmatprep.subr.mxu0 0.0
  %1681 = vmatpush1.msra.mxu0 0.0
  %1682 = vmatprep.subr.mxu0 0.0
  %1683 = vmatpush1.msra.mxu0 0.0
  %1684 = vmatprep.subr.mxu0 0.0
  %1685 = vmatpush1.msra.mxu0 0.0
  %1686 = vmatprep.mubr.f32.mxu0 0.0
  %1687 = vmatmul.mubr.f32.gmra.mrb[0].mxu0 %v1620
  %v1688 = vpop.f32.mrb[0].mxu0
  %v1689 = vadd.f32 %v1617, %v1688
  %v1690 = vpop.f32.mrb[0].mxu0
  %v1691 = vadd.f32 %v1617, %v1690
  %1692 = vdwg.mxu0
  %1693 = vmatprep.subr.mxu0 %v1536
  %1694 = vmatpush1.msra.mxu0 %v1535
  %1695 = vmatprep.subr.mxu0 %v1544
  %1696 = vmatpush1.msra.mxu0 %v1543
  %1697 = vmatprep.subr.mxu0 %v1552
  %1698 = vmatpush1.msra.mxu0 %v1551
  %1699 = vmatprep.subr.mxu0 %v1560
  %1700 = vmatpush1.msra.mxu0 %v1559
  %1701 = vmatprep.subr.mxu0 %v1568
  %1702 = vmatpush1.msra.mxu0 %v1567
  %1703 = vmatprep.subr.mxu0 %v1576
  %1704 = vmatpush1.msra.mxu0 %v1575
  %1705 = vmatprep.subr.mxu0 %v1584
  %1706 = vmatpush1.msra.mxu0 %v1583
  %1707 = vmatprep.subr.mxu0 %v1592
  %1708 = vmatpush1.msra.mxu0 %v1591
  %1709 = vmatprep.subr.mxu0 %v1600
  %1710 = vmatpush1.msra.mxu0 %v1599
  %1711 = vmatprep.subr.mxu0 %v1608
  %1712 = vmatpush1.msra.mxu0 %v1607
  %1713 = vmatprep.subr.mxu0 0.0
  %1714 = vmatpush1.msra.mxu0 0.0
  %1715 = vmatprep.subr.mxu0 0.0
  %1716 = vmatpush1.msra.mxu0 0.0
  %1717 = vmatprep.subr.mxu0 0.0
  %1718 = vmatpush1.msra.mxu0 0.0
  %1719 = vmatprep.subr.mxu0 0.0
  %1720 = vmatpush1.msra.mxu0 0.0
  %1721 = vmatprep.subr.mxu0 0.0
  %1722 = vmatpush1.msra.mxu0 0.0
  %1723 = vmatprep.subr.mxu0 0.0
  %1724 = vmatpush1.msra.mxu0 0.0
  %1725 = vmatprep.subr.mxu0 0.0
  %1726 = vmatpush1.msra.mxu0 0.0
  %1727 = vmatprep.subr.mxu0 0.0
  %1728 = vmatpush1.msra.mxu0 0.0
  %1729 = vmatprep.subr.mxu0 0.0
  %1730 = vmatpush1.msra.mxu0 0.0
  %1731 = vmatprep.subr.mxu0 0.0
  %1732 = vmatpush1.msra.mxu0 0.0
  %1733 = vmatprep.subr.mxu0 0.0
  %1734 = vmatpush1.msra.mxu0 0.0
  %1735 = vmatprep.subr.mxu0 0.0
  %1736 = vmatpush1.msra.mxu0 0.0
  %1737 = vmatprep.subr.mxu0 0.0
  %1738 = vmatpush1.msra.mxu0 0.0
  %1739 = vmatprep.subr.mxu0 0.0
  %1740 = vmatpush1.msra.mxu0 0.0
  %1741 = vmatprep.subr.mxu0 0.0
  %1742 = vmatpush1.msra.mxu0 0.0
  %1743 = vmatprep.subr.mxu0 0.0
  %1744 = vmatpush1.msra.mxu0 0.0
  %1745 = vmatprep.subr.mxu0 0.0
  %1746 = vmatpush1.msra.mxu0 0.0
  %1747 = vmatprep.subr.mxu0 0.0
  %1748 = vmatpush1.msra.mxu0 0.0
  %1749 = vmatprep.subr.mxu0 0.0
  %1750 = vmatpush1.msra.mxu0 0.0
  %1751 = vmatprep.subr.mxu0 0.0
  %1752 = vmatpush1.msra.mxu0 0.0
  %1753 = vmatprep.subr.mxu0 0.0
  %1754 = vmatpush1.msra.mxu0 0.0
  %1755 = vmatprep.subr.mxu0 0.0
  %1756 = vmatpush1.msra.mxu0 0.0
  %1757 = vmatprep.mubr.f32.mxu0 0.0
  %1758 = vmatmul.mubr.f32.gmra.mrb[0].mxu0 %v1620
  %v1759 = vpop.f32.mrb[0].mxu0
  %v1760 = vadd.f32 %v1617, %v1759
  %v1761 = vpop.f32.mrb[0].mxu0
  %v1762 = vadd.f32 %v1617, %v1761
  %1763 = vdwg.mxu0
  %1764 = vmatprep.subr.mxu0 %v1538
  %1765 = vmatpush1.msra.mxu0 %v1537
  %1766 = vmatprep.subr.mxu0 %v1546
  %1767 = vmatpush1.msra.mxu0 %v1545
  %1768 = vmatprep.subr.mxu0 %v1554
  %1769 = vmatpush1.msra.mxu0 %v1553
  %1770 = vmatprep.subr.mxu0 %v1562
  %1771 = vmatpush1.msra.mxu0 %v1561
  %1772 = vmatprep.subr.mxu0 %v1570
  %1773 = vmatpush1.msra.mxu0 %v1569
  %1774 = vmatprep.subr.mxu0 %v1578
  %1775 = vmatpush1.msra.mxu0 %v1577
  %1776 = vmatprep.subr.mxu0 %v1586
  %1777 = vmatpush1.msra.mxu0 %v1585
  %1778 = vmatprep.subr.mxu0 %v1594
  %1779 = vmatpush1.msra.mxu0 %v1593
  %1780 = vmatprep.subr.mxu0 %v1602
  %1781 = vmatpush1.msra.mxu0 %v1601
  %1782 = vmatprep.subr.mxu0 %v1610
  %1783 = vmatpush1.msra.mxu0 %v1609
  %1784 = vmatprep.subr.mxu0 0.0
  %1785 = vmatpush1.msra.mxu0 0.0
  %1786 = vmatprep.subr.mxu0 0.0
  %1787 = vmatpush1.msra.mxu0 0.0
  %1788 = vmatprep.subr.mxu0 0.0
  %1789 = vmatpush1.msra.mxu0 0.0
  %1790 = vmatprep.subr.mxu0 0.0
  %1791 = vmatpush1.msra.mxu0 0.0
  %1792 = vmatprep.subr.mxu0 0.0
  %1793 = vmatpush1.msra.mxu0 0.0
  %1794 = vmatprep.subr.mxu0 0.0
  %1795 = vmatpush1.msra.mxu0 0.0
  %1796 = vmatprep.subr.mxu0 0.0
  %1797 = vmatpush1.msra.mxu0 0.0
  %1798 = vmatprep.subr.mxu0 0.0
  %1799 = vmatpush1.msra.mxu0 0.0
  %1800 = vmatprep.subr.mxu0 0.0
  %1801 = vmatpush1.msra.mxu0 0.0
  %1802 = vmatprep.subr.mxu0 0.0
  %1803 = vmatpush1.msra.mxu0 0.0
  %1804 = vmatprep.subr.mxu0 0.0
  %1805 = vmatpush1.msra.mxu0 0.0
  %1806 = vmatprep.subr.mxu0 0.0
  %1807 = vmatpush1.msra.mxu0 0.0
  %1808 = vmatprep.subr.mxu0 0.0
  %1809 = vmatpush1.msra.mxu0 0.0
  %1810 = vmatprep.subr.mxu0 0.0
  %1811 = vmatpush1.msra.mxu0 0.0
  %1812 = vmatprep.subr.mxu0 0.0
  %1813 = vmatpush1.msra.mxu0 0.0
  %1814 = vmatprep.subr.mxu0 0.0
  %1815 = vmatpush1.msra.mxu0 0.0
  %1816 = vmatprep.subr.mxu0 0.0
  %1817 = vmatpush1.msra.mxu0 0.0
  %1818 = vmatprep.subr.mxu0 0.0
  %1819 = vmatpush1.msra.mxu0 0.0
  %1820 = vmatprep.subr.mxu0 0.0
  %1821 = vmatpush1.msra.mxu0 0.0
  %1822 = vmatprep.subr.mxu0 0.0
  %1823 = vmatpush1.msra.mxu0 0.0
  %1824 = vmatprep.subr.mxu0 0.0
  %1825 = vmatpush1.msra.mxu0 0.0
  %1826 = vmatprep.subr.mxu0 0.0
  %1827 = vmatpush1.msra.mxu0 0.0
  %1828 = vmatprep.mubr.f32.mxu0 0.0
  %1829 = vmatmul.mubr.f32.gmra.mrb[0].mxu0 %v1620
  %v1830 = vpop.f32.mrb[0].mxu0
  %v1831 = vadd.f32 %v1617, %v1830
  %v1832 = vpop.f32.mrb[0].mxu0
  %v1833 = vadd.f32 %v1617, %v1832
  %1834 = vdwg.mxu0
  %1835 = vmatprep.subr.mxu0 %v1540
  %1836 = vmatpush1.msra.mxu0 %v1539
  %1837 = vmatprep.subr.mxu0 %v1548
  %1838 = vmatpush1.msra.mxu0 %v1547
  %1839 = vmatprep.subr.mxu0 %v1556
  %1840 = vmatpush1.msra.mxu0 %v1555
  %1841 = vmatprep.subr.mxu0 %v1564
  %1842 = vmatpush1.msra.mxu0 %v1563
  %1843 = vmatprep.subr.mxu0 %v1572
  %1844 = vmatpush1.msra.mxu0 %v1571
  %1845 = vmatprep.subr.mxu0 %v1580
  %1846 = vmatpush1.msra.mxu0 %v1579
  %1847 = vmatprep.subr.mxu0 %v1588
  %1848 = vmatpush1.msra.mxu0 %v1587
  %1849 = vmatprep.subr.mxu0 %v1596
  %1850 = vmatpush1.msra.mxu0 %v1595
  %1851 = vmatprep.subr.mxu0 %v1604
  %1852 = vmatpush1.msra.mxu0 %v1603
  %1853 = vmatprep.subr.mxu0 %v1612
  %1854 = vmatpush1.msra.mxu0 %v1611
  %1855 = vmatprep.subr.mxu0 0.0
  %1856 = vmatpush1.msra.mxu0 0.0
  %1857 = vmatprep.subr.mxu0 0.0
  %1858 = vmatpush1.msra.mxu0 0.0
  %1859 = vmatprep.subr.mxu0 0.0
  %1860 = vmatpush1.msra.mxu0 0.0
  %1861 = vmatprep.subr.mxu0 0.0
  %1862 = vmatpush1.msra.mxu0 0.0
  %1863 = vmatprep.subr.mxu0 0.0
  %1864 = vmatpush1.msra.mxu0 0.0
  %1865 = vmatprep.subr.mxu0 0.0
  %1866 = vmatpush1.msra.mxu0 0.0
  %1867 = vmatprep.subr.mxu0 0.0
  %1868 = vmatpush1.msra.mxu0 0.0
  %1869 = vmatprep.subr.mxu0 0.0
  %1870 = vmatpush1.msra.mxu0 0.0
  %1871 = vmatprep.subr.mxu0 0.0
  %1872 = vmatpush1.msra.mxu0 0.0
  %1873 = vmatprep.subr.mxu0 0.0
  %1874 = vmatpush1.msra.mxu0 0.0
  %1875 = vmatprep.subr.mxu0 0.0
  %1876 = vmatpush1.msra.mxu0 0.0
  %1877 = vmatprep.subr.mxu0 0.0
  %1878 = vmatpush1.msra.mxu0 0.0
  %1879 = vmatprep.subr.mxu0 0.0
  %1880 = vmatpush1.msra.mxu0 0.0
  %1881 = vmatprep.subr.mxu0 0.0
  %1882 = vmatpush1.msra.mxu0 0.0
  %1883 = vmatprep.subr.mxu0 0.0
  %1884 = vmatpush1.msra.mxu0 0.0
  %1885 = vmatprep.subr.mxu0 0.0
  %1886 = vmatpush1.msra.mxu0 0.0
  %1887 = vmatprep.subr.mxu0 0.0
  %1888 = vmatpush1.msra.mxu0 0.0
  %1889 = vmatprep.subr.mxu0 0.0
  %1890 = vmatpush1.msra.mxu0 0.0
  %1891 = vmatprep.subr.mxu0 0.0
  %1892 = vmatpush1.msra.mxu0 0.0
  %1893 = vmatprep.subr.mxu0 0.0
  %1894 = vmatpush1.msra.mxu0 0.0
  %1895 = vmatprep.subr.mxu0 0.0
  %1896 = vmatpush1.msra.mxu0 0.0
  %1897 = vmatprep.subr.mxu0 0.0
  %1898 = vmatpush1.msra.mxu0 0.0
  %1899 = vmatprep.mubr.f32.mxu0 0.0
  %1900 = vmatmul.mubr.f32.gmra.mrb[0].mxu0 %v1620
  %v1901 = vpop.f32.mrb[0].mxu0
  %v1902 = vadd.f32 %v1617, %v1901
  %v1903 = vpop.f32.mrb[0].mxu0
  %v1904 = vadd.f32 %v1617, %v1903
  %1905 = vdwg.mxu0
  %v1914 = vrot.slane %v1689, 3
  %v1915 = vrot.slane %v1691, 3
  %v1916 = vrot.slane %v1760, 3
  %v1917 = vrot.slane %v1762, 3
  %v1918 = vrot.slane %v1831, 3
  %v1919 = vrot.slane %v1833, 3
  %v1920 = vrot.slane %v1902, 3
  %v1921 = vrot.slane %v1904, 3
  %1930 = vst [vmem:[#allocation2] sm:$0xe0] %v1914
  %1931 = vst [vmem:[#allocation2 + $0x8] sm:$0xe0] %v1915
  %1932 = vst [vmem:[#allocation2 + $0x10] sm:$0xe0] %v1916
  %1933 = vst [vmem:[#allocation2 + $0x18] sm:$0xe0] %v1917
  %1934 = vst [vmem:[#allocation2 + $0x20] sm:$0xe0] %v1918
  %1935 = vst [vmem:[#allocation2 + $0x28] sm:$0xe0] %v1919
  %1936 = vst [vmem:[#allocation2 + $0x30] sm:$0xe0] %v1920
  %1937 = vst [vmem:[#allocation2 + $0x38] sm:$0xe0] %v1921
  %1938 = vst [vmem:[#allocation2 + $0x40] sm:$0x1] %v1914
  %1939 = vst [vmem:[#allocation2 + $0x48] sm:$0x1] %v1915
  %1940 = vst [vmem:[#allocation2 + $0x50] sm:$0x1] %v1916
  %1941 = vst [vmem:[#allocation2 + $0x58] sm:$0x1] %v1917
  %1942 = vst [vmem:[#allocation2 + $0x60] sm:$0x1] %v1918
  %1943 = vst [vmem:[#allocation2 + $0x68] sm:$0x1] %v1919
  %1944 = vst [vmem:[#allocation2 + $0x70] sm:$0x1] %v1920
  %1945 = vst [vmem:[#allocation2 + $0x78] sm:$0x1] %v1921
  %v1946 = vld [vmem:[#allocation2] sm:$0xff]
  %v1947 = vld [vmem:[#allocation2 + $0x8] sm:$0xff]
  %v1948 = vld [vmem:[#allocation2 + $0x10] sm:$0xff]
  %v1949 = vld [vmem:[#allocation2 + $0x18] sm:$0xff]
  %v1950 = vld [vmem:[#allocation2 + $0x20] sm:$0xff]
  %v1951 = vld [vmem:[#allocation2 + $0x28] sm:$0xff]
  %v1952 = vld [vmem:[#allocation2 + $0x30] sm:$0xff]
  %v1953 = vld [vmem:[#allocation2 + $0x38] sm:$0xff]
  %v1954 = vld [vmem:[#allocation2 + $0x40] sm:$0x1]
  %v1955 = vld [vmem:[#allocation2 + $0x48] sm:$0x1]
  %v1956 = vld [vmem:[#allocation2 + $0x50] sm:$0x1]
  %v1957 = vld [vmem:[#allocation2 + $0x58] sm:$0x1]
  %v1958 = vld [vmem:[#allocation2 + $0x60] sm:$0x1]
  %v1959 = vld [vmem:[#allocation2 + $0x68] sm:$0x1]
  %v1960 = vld [vmem:[#allocation2 + $0x70] sm:$0x1]
  %v1961 = vld [vmem:[#allocation2 + $0x78] sm:$0x1]
  %v1962 = vld [vmem:[%s13] sm:$0xff]
  %v1963 = vld [vmem:[%s13 + $0x8] sm:$0x1]
  %s1964 = scalar_lea.vmem %s13, 16
  %v1965 = vld [vmem:[%s1964] sm:$0xff]
  %v1966 = vld [vmem:[%s1964 + $0x8] sm:$0x1]
  %vm1967 = vcmask 72704
  %v1969 = vsel %vm1967, %v1965, 0
  %v1972 = vsel %vm1967, %v1966, 0
  %v1975 = vsel %vm154, %v1955, 0
  %1977 = vmatprep.subr.mxu0 0.0
  %1978 = vmatpush1.msra.mxu0 %v1947
  %1979 = vmatprep.subr.mxu0 0.0
  %1980 = vmatpush1.msra.mxu0 %v1975
  %1981 = vmatprep.subr.mxu0 0.0
  %1982 = vmatpush1.msra.mxu0 0.0
  %1983 = vmatprep.subr.mxu0 0.0
  %1984 = vmatpush1.msra.mxu0 0.0
  %1985 = vmatprep.subr.mxu0 0.0
  %1986 = vmatpush1.msra.mxu0 0.0
  %1987 = vmatprep.subr.mxu0 0.0
  %1988 = vmatpush1.msra.mxu0 0.0
  %1989 = vmatprep.subr.mxu0 0.0
  %1990 = vmatpush1.msra.mxu0 0.0
  %1991 = vmatprep.subr.mxu0 0.0
  %1992 = vmatpush1.msra.mxu0 0.0
  %1993 = vmatprep.subr.mxu0 0.0
  %1994 = vmatpush1.msra.mxu0 0.0
  %1995 = vmatprep.subr.mxu0 0.0
  %1996 = vmatpush1.msra.mxu0 0.0
  %1997 = vmatprep.subr.mxu0 0.0
  %1998 = vmatpush1.msra.mxu0 0.0
  %1999 = vmatprep.subr.mxu0 0.0
  %2000 = vmatpush1.msra.mxu0 0.0
  %2001 = vmatprep.subr.mxu0 0.0
  %2002 = vmatpush1.msra.mxu0 0.0
  %2003 = vmatprep.subr.mxu0 0.0
  %2004 = vmatpush1.msra.mxu0 0.0
  %2005 = vmatprep.subr.mxu0 0.0
  %2006 = vmatpush1.msra.mxu0 0.0
  %2007 = vmatprep.subr.mxu0 0.0
  %2008 = vmatpush1.msra.mxu0 0.0
  %2009 = vmatprep.subr.mxu0 0.0
  %2010 = vmatpush1.msra.mxu0 0.0
  %2011 = vmatprep.subr.mxu0 0.0
  %2012 = vmatpush1.msra.mxu0 0.0
  %2013 = vmatprep.subr.mxu0 0.0
  %2014 = vmatpush1.msra.mxu0 0.0
  %2015 = vmatprep.subr.mxu0 0.0
  %2016 = vmatpush1.msra.mxu0 0.0
  %2017 = vmatprep.subr.mxu0 0.0
  %2018 = vmatpush1.msra.mxu0 0.0
  %2019 = vmatprep.subr.mxu0 0.0
  %2020 = vmatpush1.msra.mxu0 0.0
  %2021 = vmatprep.subr.mxu0 0.0
  %2022 = vmatpush1.msra.mxu0 0.0
  %2023 = vmatprep.subr.mxu0 0.0
  %2024 = vmatpush1.msra.mxu0 0.0
  %2025 = vmatprep.subr.mxu0 0.0
  %2026 = vmatpush1.msra.mxu0 0.0
  %2027 = vmatprep.subr.mxu0 0.0
  %2028 = vmatpush1.msra.mxu0 0.0
  %2029 = vmatprep.subr.mxu0 0.0
  %2030 = vmatpush1.msra.mxu0 0.0
  %2031 = vmatprep.subr.mxu0 0.0
  %2032 = vmatpush1.msra.mxu0 0.0
  %2033 = vmatprep.subr.mxu0 0.0
  %2034 = vmatpush1.msra.mxu0 0.0
  %2035 = vmatprep.subr.mxu0 0.0
  %2036 = vmatpush1.msra.mxu0 0.0
  %2037 = vmatprep.subr.mxu0 0.0
  %2038 = vmatpush1.msra.mxu0 0.0
  %2039 = vmatprep.subr.mxu0 0.0
  %2040 = vmatpush1.msra.mxu0 0.0
  %2041 = vmatprep.mubr.f32.mxu0 0.0
  %2042 = vmatmul.mubr.f32.gmra.mrb[0].mxu0 %v1969
  %v2043 = vpop.f32.mrb[0].mxu0
  %v2044 = vadd.f32 0.0, %v2043
  %v2045 = vpop.f32.mrb[0].mxu0
  %2046 = vmatprep.mubr.f32.mxu0 0.0
  %2047 = vmatmul.mubr.f32.gmra.mrb[0].mxu0 %v1972
  %v2048 = vpop.f32.mrb[0].mxu0
  %v2049 = vadd.f32 0.0, %v2048
  %v2050 = vpop.f32.mrb[0].mxu0
  %2051 = vdwg.mxu0
  %v2053 = vsel %vm1967, %v1962, 0
  %v2056 = vsel %vm1967, %v1963, 0
  %v2059 = vsel %vm154, %v1954, 0
  %2061 = vmatprep.subr.mxu0 0.0
  %2062 = vmatpush1.msra.mxu0 %v1946
  %2063 = vmatprep.subr.mxu0 0.0
  %2064 = vmatpush1.msra.mxu0 %v2059
  %2065 = vmatprep.subr.mxu0 0.0
  %2066 = vmatpush1.msra.mxu0 0.0
  %2067 = vmatprep.subr.mxu0 0.0
  %2068 = vmatpush1.msra.mxu0 0.0
  %2069 = vmatprep.subr.mxu0 0.0
  %2070 = vmatpush1.msra.mxu0 0.0
  %2071 = vmatprep.subr.mxu0 0.0
  %2072 = vmatpush1.msra.mxu0 0.0
  %2073 = vmatprep.subr.mxu0 0.0
  %2074 = vmatpush1.msra.mxu0 0.0
  %2075 = vmatprep.subr.mxu0 0.0
  %2076 = vmatpush1.msra.mxu0 0.0
  %2077 = vmatprep.subr.mxu0 0.0
  %2078 = vmatpush1.msra.mxu0 0.0
  %2079 = vmatprep.subr.mxu0 0.0
  %2080 = vmatpush1.msra.mxu0 0.0
  %2081 = vmatprep.subr.mxu0 0.0
  %2082 = vmatpush1.msra.mxu0 0.0
  %2083 = vmatprep.subr.mxu0 0.0
  %2084 = vmatpush1.msra.mxu0 0.0
  %2085 = vmatprep.subr.mxu0 0.0
  %2086 = vmatpush1.msra.mxu0 0.0
  %2087 = vmatprep.subr.mxu0 0.0
  %2088 = vmatpush1.msra.mxu0 0.0
  %2089 = vmatprep.subr.mxu0 0.0
  %2090 = vmatpush1.msra.mxu0 0.0
  %2091 = vmatprep.subr.mxu0 0.0
  %2092 = vmatpush1.msra.mxu0 0.0
  %2093 = vmatprep.subr.mxu0 0.0
  %2094 = vmatpush1.msra.mxu0 0.0
  %2095 = vmatprep.subr.mxu0 0.0
  %2096 = vmatpush1.msra.mxu0 0.0
  %2097 = vmatprep.subr.mxu0 0.0
  %2098 = vmatpush1.msra.mxu0 0.0
  %2099 = vmatprep.subr.mxu0 0.0
  %2100 = vmatpush1.msra.mxu0 0.0
  %2101 = vmatprep.subr.mxu0 0.0
  %2102 = vmatpush1.msra.mxu0 0.0
  %2103 = vmatprep.subr.mxu0 0.0
  %2104 = vmatpush1.msra.mxu0 0.0
  %2105 = vmatprep.subr.mxu0 0.0
  %2106 = vmatpush1.msra.mxu0 0.0
  %2107 = vmatprep.subr.mxu0 0.0
  %2108 = vmatpush1.msra.mxu0 0.0
  %2109 = vmatprep.subr.mxu0 0.0
  %2110 = vmatpush1.msra.mxu0 0.0
  %2111 = vmatprep.subr.mxu0 0.0
  %2112 = vmatpush1.msra.mxu0 0.0
  %2113 = vmatprep.subr.mxu0 0.0
  %2114 = vmatpush1.msra.mxu0 0.0
  %2115 = vmatprep.subr.mxu0 0.0
  %2116 = vmatpush1.msra.mxu0 0.0
  %2117 = vmatprep.subr.mxu0 0.0
  %2118 = vmatpush1.msra.mxu0 0.0
  %2119 = vmatprep.subr.mxu0 0.0
  %2120 = vmatpush1.msra.mxu0 0.0
  %2121 = vmatprep.subr.mxu0 0.0
  %2122 = vmatpush1.msra.mxu0 0.0
  %2123 = vmatprep.subr.mxu0 0.0
  %2124 = vmatpush1.msra.mxu0 0.0
  %2125 = vmatprep.mubr.f32.mxu0 0.0
  %2126 = vmatmul.mubr.f32.gmra.mrb[0].mxu0 %v2053
  %v2127 = vpop.f32.mrb[0].mxu0
  %v2128 = vadd.f32 %v2044, %v2127
  %v2129 = vpop.f32.mrb[0].mxu0
  %2130 = vmatprep.mubr.f32.mxu0 0.0
  %2131 = vmatmul.mubr.f32.gmra.mrb[0].mxu0 %v2056
  %v2132 = vpop.f32.mrb[0].mxu0
  %v2133 = vadd.f32 %v2049, %v2132
  %v2134 = vpop.f32.mrb[0].mxu0
  %2135 = vdwg.mxu0
  %s2136 = scalar_lea.vmem %s13, 32
  %v2137 = vld [vmem:[%s2136] sm:$0xff]
  %v2138 = vld [vmem:[%s2136 + $0x8] sm:$0x1]
  %v2140 = vsel %vm1967, %v2137, 0
  %v2143 = vsel %vm1967, %v2138, 0
  %v2146 = vsel %vm154, %v1956, 0
  %2148 = vmatprep.subr.mxu0 0.0
  %2149 = vmatpush1.msra.mxu0 %v1948
  %2150 = vmatprep.subr.mxu0 0.0
  %2151 = vmatpush1.msra.mxu0 %v2146
  %2152 = vmatprep.subr.mxu0 0.0
  %2153 = vmatpush1.msra.mxu0 0.0
  %2154 = vmatprep.subr.mxu0 0.0
  %2155 = vmatpush1.msra.mxu0 0.0
  %2156 = vmatprep.subr.mxu0 0.0
  %2157 = vmatpush1.msra.mxu0 0.0
  %2158 = vmatprep.subr.mxu0 0.0
  %2159 = vmatpush1.msra.mxu0 0.0
  %2160 = vmatprep.subr.mxu0 0.0
  %2161 = vmatpush1.msra.mxu0 0.0
  %2162 = vmatprep.subr.mxu0 0.0
  %2163 = vmatpush1.msra.mxu0 0.0
  %2164 = vmatprep.subr.mxu0 0.0
  %2165 = vmatpush1.msra.mxu0 0.0
  %2166 = vmatprep.subr.mxu0 0.0
  %2167 = vmatpush1.msra.mxu0 0.0
  %2168 = vmatprep.subr.mxu0 0.0
  %2169 = vmatpush1.msra.mxu0 0.0
  %2170 = vmatprep.subr.mxu0 0.0
  %2171 = vmatpush1.msra.mxu0 0.0
  %2172 = vmatprep.subr.mxu0 0.0
  %2173 = vmatpush1.msra.mxu0 0.0
  %2174 = vmatprep.subr.mxu0 0.0
  %2175 = vmatpush1.msra.mxu0 0.0
  %2176 = vmatprep.subr.mxu0 0.0
  %2177 = vmatpush1.msra.mxu0 0.0
  %2178 = vmatprep.subr.mxu0 0.0
  %2179 = vmatpush1.msra.mxu0 0.0
  %2180 = vmatprep.subr.mxu0 0.0
  %2181 = vmatpush1.msra.mxu0 0.0
  %2182 = vmatprep.subr.mxu0 0.0
  %2183 = vmatpush1.msra.mxu0 0.0
  %2184 = vmatprep.subr.mxu0 0.0
  %2185 = vmatpush1.msra.mxu0 0.0
  %2186 = vmatprep.subr.mxu0 0.0
  %2187 = vmatpush1.msra.mxu0 0.0
  %2188 = vmatprep.subr.mxu0 0.0
  %2189 = vmatpush1.msra.mxu0 0.0
  %2190 = vmatprep.subr.mxu0 0.0
  %2191 = vmatpush1.msra.mxu0 0.0
  %2192 = vmatprep.subr.mxu0 0.0
  %2193 = vmatpush1.msra.mxu0 0.0
  %2194 = vmatprep.subr.mxu0 0.0
  %2195 = vmatpush1.msra.mxu0 0.0
  %2196 = vmatprep.subr.mxu0 0.0
  %2197 = vmatpush1.msra.mxu0 0.0
  %2198 = vmatprep.subr.mxu0 0.0
  %2199 = vmatpush1.msra.mxu0 0.0
  %2200 = vmatprep.subr.mxu0 0.0
  %2201 = vmatpush1.msra.mxu0 0.0
  %2202 = vmatprep.subr.mxu0 0.0
  %2203 = vmatpush1.msra.mxu0 0.0
  %2204 = vmatprep.subr.mxu0 0.0
  %2205 = vmatpush1.msra.mxu0 0.0
  %2206 = vmatprep.subr.mxu0 0.0
  %2207 = vmatpush1.msra.mxu0 0.0
  %2208 = vmatprep.subr.mxu0 0.0
  %2209 = vmatpush1.msra.mxu0 0.0
  %2210 = vmatprep.subr.mxu0 0.0
  %2211 = vmatpush1.msra.mxu0 0.0
  %2212 = vmatprep.mubr.f32.mxu0 0.0
  %2213 = vmatmul.mubr.f32.gmra.mrb[0].mxu0 %v2140
  %v2214 = vpop.f32.mrb[0].mxu0
  %v2215 = vadd.f32 0.0, %v2214
  %v2216 = vpop.f32.mrb[0].mxu0
  %2217 = vmatprep.mubr.f32.mxu0 0.0
  %2218 = vmatmul.mubr.f32.gmra.mrb[0].mxu0 %v2143
  %v2219 = vpop.f32.mrb[0].mxu0
  %v2220 = vadd.f32 0.0, %v2219
  %v2221 = vpop.f32.mrb[0].mxu0
  %2222 = vdwg.mxu0
  %v2223 = vadd.f32 %v2128, %v2215
  %v2224 = vadd.f32 %v2133, %v2220
  %s2225 = scalar_lea.vmem %s13, 48
  %v2226 = vld [vmem:[%s2225] sm:$0xff]
  %v2227 = vld [vmem:[%s2225 + $0x8] sm:$0x1]
  %v2229 = vsel %vm1967, %v2226, 0
  %v2232 = vsel %vm1967, %v2227, 0
  %v2235 = vsel %vm154, %v1957, 0
  %2237 = vmatprep.subr.mxu0 0.0
  %2238 = vmatpush1.msra.mxu0 %v1949
  %2239 = vmatprep.subr.mxu0 0.0
  %2240 = vmatpush1.msra.mxu0 %v2235
  %2241 = vmatprep.subr.mxu0 0.0
  %2242 = vmatpush1.msra.mxu0 0.0
  %2243 = vmatprep.subr.mxu0 0.0
  %2244 = vmatpush1.msra.mxu0 0.0
  %2245 = vmatprep.subr.mxu0 0.0
  %2246 = vmatpush1.msra.mxu0 0.0
  %2247 = vmatprep.subr.mxu0 0.0
  %2248 = vmatpush1.msra.mxu0 0.0
  %2249 = vmatprep.subr.mxu0 0.0
  %2250 = vmatpush1.msra.mxu0 0.0
  %2251 = vmatprep.subr.mxu0 0.0
  %2252 = vmatpush1.msra.mxu0 0.0
  %2253 = vmatprep.subr.mxu0 0.0
  %2254 = vmatpush1.msra.mxu0 0.0
  %2255 = vmatprep.subr.mxu0 0.0
  %2256 = vmatpush1.msra.mxu0 0.0
  %2257 = vmatprep.subr.mxu0 0.0
  %2258 = vmatpush1.msra.mxu0 0.0
  %2259 = vmatprep.subr.mxu0 0.0
  %2260 = vmatpush1.msra.mxu0 0.0
  %2261 = vmatprep.subr.mxu0 0.0
  %2262 = vmatpush1.msra.mxu0 0.0
  %2263 = vmatprep.subr.mxu0 0.0
  %2264 = vmatpush1.msra.mxu0 0.0
  %2265 = vmatprep.subr.mxu0 0.0
  %2266 = vmatpush1.msra.mxu0 0.0
  %2267 = vmatprep.subr.mxu0 0.0
  %2268 = vmatpush1.msra.mxu0 0.0
  %2269 = vmatprep.subr.mxu0 0.0
  %2270 = vmatpush1.msra.mxu0 0.0
  %2271 = vmatprep.subr.mxu0 0.0
  %2272 = vmatpush1.msra.mxu0 0.0
  %2273 = vmatprep.subr.mxu0 0.0
  %2274 = vmatpush1.msra.mxu0 0.0
  %2275 = vmatprep.subr.mxu0 0.0
  %2276 = vmatpush1.msra.mxu0 0.0
  %2277 = vmatprep.subr.mxu0 0.0
  %2278 = vmatpush1.msra.mxu0 0.0
  %2279 = vmatprep.subr.mxu0 0.0
  %2280 = vmatpush1.msra.mxu0 0.0
  %2281 = vmatprep.subr.mxu0 0.0
  %2282 = vmatpush1.msra.mxu0 0.0
  %2283 = vmatprep.subr.mxu0 0.0
  %2284 = vmatpush1.msra.mxu0 0.0
  %2285 = vmatprep.subr.mxu0 0.0
  %2286 = vmatpush1.msra.mxu0 0.0
  %2287 = vmatprep.subr.mxu0 0.0
  %2288 = vmatpush1.msra.mxu0 0.0
  %2289 = vmatprep.subr.mxu0 0.0
  %2290 = vmatpush1.msra.mxu0 0.0
  %2291 = vmatprep.subr.mxu0 0.0
  %2292 = vmatpush1.msra.mxu0 0.0
  %2293 = vmatprep.subr.mxu0 0.0
  %2294 = vmatpush1.msra.mxu0 0.0
  %2295 = vmatprep.subr.mxu0 0.0
  %2296 = vmatpush1.msra.mxu0 0.0
  %2297 = vmatprep.subr.mxu0 0.0
  %2298 = vmatpush1.msra.mxu0 0.0
  %2299 = vmatprep.subr.mxu0 0.0
  %2300 = vmatpush1.msra.mxu0 0.0
  %2301 = vmatprep.mubr.f32.mxu0 0.0
  %2302 = vmatmul.mubr.f32.gmra.mrb[0].mxu0 %v2229
  %v2303 = vpop.f32.mrb[0].mxu0
  %v2304 = vadd.f32 0.0, %v2303
  %v2305 = vpop.f32.mrb[0].mxu0
  %2306 = vmatprep.mubr.f32.mxu0 0.0
  %2307 = vmatmul.mubr.f32.gmra.mrb[0].mxu0 %v2232
  %v2308 = vpop.f32.mrb[0].mxu0
  %v2309 = vadd.f32 0.0, %v2308
  %v2310 = vpop.f32.mrb[0].mxu0
  %2311 = vdwg.mxu0
  %v2312 = vadd.f32 %v2223, %v2304
  %v2313 = vadd.f32 %v2224, %v2309
  %s2314 = scalar_lea.vmem %s13, 64
  %v2315 = vld [vmem:[%s2314] sm:$0xff]
  %v2316 = vld [vmem:[%s2314 + $0x8] sm:$0x1]
  %v2318 = vsel %vm1967, %v2315, 0
  %v2321 = vsel %vm1967, %v2316, 0
  %v2324 = vsel %vm154, %v1958, 0
  %2326 = vmatprep.subr.mxu0 0.0
  %2327 = vmatpush1.msra.mxu0 %v1950
  %2328 = vmatprep.subr.mxu0 0.0
  %2329 = vmatpush1.msra.mxu0 %v2324
  %2330 = vmatprep.subr.mxu0 0.0
  %2331 = vmatpush1.msra.mxu0 0.0
  %2332 = vmatprep.subr.mxu0 0.0
  %2333 = vmatpush1.msra.mxu0 0.0
  %2334 = vmatprep.subr.mxu0 0.0
  %2335 = vmatpush1.msra.mxu0 0.0
  %2336 = vmatprep.subr.mxu0 0.0
  %2337 = vmatpush1.msra.mxu0 0.0
  %2338 = vmatprep.subr.mxu0 0.0
  %2339 = vmatpush1.msra.mxu0 0.0
  %2340 = vmatprep.subr.mxu0 0.0
  %2341 = vmatpush1.msra.mxu0 0.0
  %2342 = vmatprep.subr.mxu0 0.0
  %2343 = vmatpush1.msra.mxu0 0.0
  %2344 = vmatprep.subr.mxu0 0.0
  %2345 = vmatpush1.msra.mxu0 0.0
  %2346 = vmatprep.subr.mxu0 0.0
  %2347 = vmatpush1.msra.mxu0 0.0
  %2348 = vmatprep.subr.mxu0 0.0
  %2349 = vmatpush1.msra.mxu0 0.0
  %2350 = vmatprep.subr.mxu0 0.0
  %2351 = vmatpush1.msra.mxu0 0.0
  %2352 = vmatprep.subr.mxu0 0.0
  %2353 = vmatpush1.msra.mxu0 0.0
  %2354 = vmatprep.subr.mxu0 0.0
  %2355 = vmatpush1.msra.mxu0 0.0
  %2356 = vmatprep.subr.mxu0 0.0
  %2357 = vmatpush1.msra.mxu0 0.0
  %2358 = vmatprep.subr.mxu0 0.0
  %2359 = vmatpush1.msra.mxu0 0.0
  %2360 = vmatprep.subr.mxu0 0.0
  %2361 = vmatpush1.msra.mxu0 0.0
  %2362 = vmatprep.subr.mxu0 0.0
  %2363 = vmatpush1.msra.mxu0 0.0
  %2364 = vmatprep.subr.mxu0 0.0
  %2365 = vmatpush1.msra.mxu0 0.0
  %2366 = vmatprep.subr.mxu0 0.0
  %2367 = vmatpush1.msra.mxu0 0.0
  %2368 = vmatprep.subr.mxu0 0.0
  %2369 = vmatpush1.msra.mxu0 0.0
  %2370 = vmatprep.subr.mxu0 0.0
  %2371 = vmatpush1.msra.mxu0 0.0
  %2372 = vmatprep.subr.mxu0 0.0
  %2373 = vmatpush1.msra.mxu0 0.0
  %2374 = vmatprep.subr.mxu0 0.0
  %2375 = vmatpush1.msra.mxu0 0.0
  %2376 = vmatprep.subr.mxu0 0.0
  %2377 = vmatpush1.msra.mxu0 0.0
  %2378 = vmatprep.subr.mxu0 0.0
  %2379 = vmatpush1.msra.mxu0 0.0
  %2380 = vmatprep.subr.mxu0 0.0
  %2381 = vmatpush1.msra.mxu0 0.0
  %2382 = vmatprep.subr.mxu0 0.0
  %2383 = vmatpush1.msra.mxu0 0.0
  %2384 = vmatprep.subr.mxu0 0.0
  %2385 = vmatpush1.msra.mxu0 0.0
  %2386 = vmatprep.subr.mxu0 0.0
  %2387 = vmatpush1.msra.mxu0 0.0
  %2388 = vmatprep.subr.mxu0 0.0
  %2389 = vmatpush1.msra.mxu0 0.0
  %2390 = vmatprep.mubr.f32.mxu0 0.0
  %2391 = vmatmul.mubr.f32.gmra.mrb[0].mxu0 %v2318
  %v2392 = vpop.f32.mrb[0].mxu0
  %v2393 = vadd.f32 0.0, %v2392
  %v2394 = vpop.f32.mrb[0].mxu0
  %2395 = vmatprep.mubr.f32.mxu0 0.0
  %2396 = vmatmul.mubr.f32.gmra.mrb[0].mxu0 %v2321
  %v2397 = vpop.f32.mrb[0].mxu0
  %v2398 = vadd.f32 0.0, %v2397
  %v2399 = vpop.f32.mrb[0].mxu0
  %2400 = vdwg.mxu0
  %v2401 = vadd.f32 %v2312, %v2393
  %v2402 = vadd.f32 %v2313, %v2398
  %s2403 = scalar_lea.vmem %s13, 80
  %v2404 = vld [vmem:[%s2403] sm:$0xff]
  %v2405 = vld [vmem:[%s2403 + $0x8] sm:$0x1]
  %v2407 = vsel %vm1967, %v2404, 0
  %v2410 = vsel %vm1967, %v2405, 0
  %v2413 = vsel %vm154, %v1959, 0
  %2415 = vmatprep.subr.mxu0 0.0
  %2416 = vmatpush1.msra.mxu0 %v1951
  %2417 = vmatprep.subr.mxu0 0.0
  %2418 = vmatpush1.msra.mxu0 %v2413
  %2419 = vmatprep.subr.mxu0 0.0
  %2420 = vmatpush1.msra.mxu0 0.0
  %2421 = vmatprep.subr.mxu0 0.0
  %2422 = vmatpush1.msra.mxu0 0.0
  %2423 = vmatprep.subr.mxu0 0.0
  %2424 = vmatpush1.msra.mxu0 0.0
  %2425 = vmatprep.subr.mxu0 0.0
  %2426 = vmatpush1.msra.mxu0 0.0
  %2427 = vmatprep.subr.mxu0 0.0
  %2428 = vmatpush1.msra.mxu0 0.0
  %2429 = vmatprep.subr.mxu0 0.0
  %2430 = vmatpush1.msra.mxu0 0.0
  %2431 = vmatprep.subr.mxu0 0.0
  %2432 = vmatpush1.msra.mxu0 0.0
  %2433 = vmatprep.subr.mxu0 0.0
  %2434 = vmatpush1.msra.mxu0 0.0
  %2435 = vmatprep.subr.mxu0 0.0
  %2436 = vmatpush1.msra.mxu0 0.0
  %2437 = vmatprep.subr.mxu0 0.0
  %2438 = vmatpush1.msra.mxu0 0.0
  %2439 = vmatprep.subr.mxu0 0.0
  %2440 = vmatpush1.msra.mxu0 0.0
  %2441 = vmatprep.subr.mxu0 0.0
  %2442 = vmatpush1.msra.mxu0 0.0
  %2443 = vmatprep.subr.mxu0 0.0
  %2444 = vmatpush1.msra.mxu0 0.0
  %2445 = vmatprep.subr.mxu0 0.0
  %2446 = vmatpush1.msra.mxu0 0.0
  %2447 = vmatprep.subr.mxu0 0.0
  %2448 = vmatpush1.msra.mxu0 0.0
  %2449 = vmatprep.subr.mxu0 0.0
  %2450 = vmatpush1.msra.mxu0 0.0
  %2451 = vmatprep.subr.mxu0 0.0
  %2452 = vmatpush1.msra.mxu0 0.0
  %2453 = vmatprep.subr.mxu0 0.0
  %2454 = vmatpush1.msra.mxu0 0.0
  %2455 = vmatprep.subr.mxu0 0.0
  %2456 = vmatpush1.msra.mxu0 0.0
  %2457 = vmatprep.subr.mxu0 0.0
  %2458 = vmatpush1.msra.mxu0 0.0
  %2459 = vmatprep.subr.mxu0 0.0
  %2460 = vmatpush1.msra.mxu0 0.0
  %2461 = vmatprep.subr.mxu0 0.0
  %2462 = vmatpush1.msra.mxu0 0.0
  %2463 = vmatprep.subr.mxu0 0.0
  %2464 = vmatpush1.msra.mxu0 0.0
  %2465 = vmatprep.subr.mxu0 0.0
  %2466 = vmatpush1.msra.mxu0 0.0
  %2467 = vmatprep.subr.mxu0 0.0
  %2468 = vmatpush1.msra.mxu0 0.0
  %2469 = vmatprep.subr.mxu0 0.0
  %2470 = vmatpush1.msra.mxu0 0.0
  %2471 = vmatprep.subr.mxu0 0.0
  %2472 = vmatpush1.msra.mxu0 0.0
  %2473 = vmatprep.subr.mxu0 0.0
  %2474 = vmatpush1.msra.mxu0 0.0
  %2475 = vmatprep.subr.mxu0 0.0
  %2476 = vmatpush1.msra.mxu0 0.0
  %2477 = vmatprep.subr.mxu0 0.0
  %2478 = vmatpush1.msra.mxu0 0.0
  %2479 = vmatprep.mubr.f32.mxu0 0.0
  %2480 = vmatmul.mubr.f32.gmra.mrb[0].mxu0 %v2407
  %v2481 = vpop.f32.mrb[0].mxu0
  %v2482 = vadd.f32 0.0, %v2481
  %v2483 = vpop.f32.mrb[0].mxu0
  %2484 = vmatprep.mubr.f32.mxu0 0.0
  %2485 = vmatmul.mubr.f32.gmra.mrb[0].mxu0 %v2410
  %v2486 = vpop.f32.mrb[0].mxu0
  %v2487 = vadd.f32 0.0, %v2486
  %v2488 = vpop.f32.mrb[0].mxu0
  %2489 = vdwg.mxu0
  %v2490 = vadd.f32 %v2401, %v2482
  %v2491 = vadd.f32 %v2402, %v2487
  %s2492 = scalar_lea.vmem %s13, 96
  %v2493 = vld [vmem:[%s2492] sm:$0xff]
  %v2494 = vld [vmem:[%s2492 + $0x8] sm:$0x1]
  %v2496 = vsel %vm1967, %v2493, 0
  %v2499 = vsel %vm1967, %v2494, 0
  %v2502 = vsel %vm154, %v1960, 0
  %2504 = vmatprep.subr.mxu0 0.0
  %2505 = vmatpush1.msra.mxu0 %v1952
  %2506 = vmatprep.subr.mxu0 0.0
  %2507 = vmatpush1.msra.mxu0 %v2502
  %2508 = vmatprep.subr.mxu0 0.0
  %2509 = vmatpush1.msra.mxu0 0.0
  %2510 = vmatprep.subr.mxu0 0.0
  %2511 = vmatpush1.msra.mxu0 0.0
  %2512 = vmatprep.subr.mxu0 0.0
  %2513 = vmatpush1.msra.mxu0 0.0
  %2514 = vmatprep.subr.mxu0 0.0
  %2515 = vmatpush1.msra.mxu0 0.0
  %2516 = vmatprep.subr.mxu0 0.0
  %2517 = vmatpush1.msra.mxu0 0.0
  %2518 = vmatprep.subr.mxu0 0.0
  %2519 = vmatpush1.msra.mxu0 0.0
  %2520 = vmatprep.subr.mxu0 0.0
  %2521 = vmatpush1.msra.mxu0 0.0
  %2522 = vmatprep.subr.mxu0 0.0
  %2523 = vmatpush1.msra.mxu0 0.0
  %2524 = vmatprep.subr.mxu0 0.0
  %2525 = vmatpush1.msra.mxu0 0.0
  %2526 = vmatprep.subr.mxu0 0.0
  %2527 = vmatpush1.msra.mxu0 0.0
  %2528 = vmatprep.subr.mxu0 0.0
  %2529 = vmatpush1.msra.mxu0 0.0
  %2530 = vmatprep.subr.mxu0 0.0
  %2531 = vmatpush1.msra.mxu0 0.0
  %2532 = vmatprep.subr.mxu0 0.0
  %2533 = vmatpush1.msra.mxu0 0.0
  %2534 = vmatprep.subr.mxu0 0.0
  %2535 = vmatpush1.msra.mxu0 0.0
  %2536 = vmatprep.subr.mxu0 0.0
  %2537 = vmatpush1.msra.mxu0 0.0
  %2538 = vmatprep.subr.mxu0 0.0
  %2539 = vmatpush1.msra.mxu0 0.0
  %2540 = vmatprep.subr.mxu0 0.0
  %2541 = vmatpush1.msra.mxu0 0.0
  %2542 = vmatprep.subr.mxu0 0.0
  %2543 = vmatpush1.msra.mxu0 0.0
  %2544 = vmatprep.subr.mxu0 0.0
  %2545 = vmatpush1.msra.mxu0 0.0
  %2546 = vmatprep.subr.mxu0 0.0
  %2547 = vmatpush1.msra.mxu0 0.0
  %2548 = vmatprep.subr.mxu0 0.0
  %2549 = vmatpush1.msra.mxu0 0.0
  %2550 = vmatprep.subr.mxu0 0.0
  %2551 = vmatpush1.msra.mxu0 0.0
  %2552 = vmatprep.subr.mxu0 0.0
  %2553 = vmatpush1.msra.mxu0 0.0
  %2554 = vmatprep.subr.mxu0 0.0
  %2555 = vmatpush1.msra.mxu0 0.0
  %2556 = vmatprep.subr.mxu0 0.0
  %2557 = vmatpush1.msra.mxu0 0.0
  %2558 = vmatprep.subr.mxu0 0.0
  %2559 = vmatpush1.msra.mxu0 0.0
  %2560 = vmatprep.subr.mxu0 0.0
  %2561 = vmatpush1.msra.mxu0 0.0
  %2562 = vmatprep.subr.mxu0 0.0
  %2563 = vmatpush1.msra.mxu0 0.0
  %2564 = vmatprep.subr.mxu0 0.0
  %2565 = vmatpush1.msra.mxu0 0.0
  %2566 = vmatprep.subr.mxu0 0.0
  %2567 = vmatpush1.msra.mxu0 0.0
  %2568 = vmatprep.mubr.f32.mxu0 0.0
  %2569 = vmatmul.mubr.f32.gmra.mrb[0].mxu0 %v2496
  %v2570 = vpop.f32.mrb[0].mxu0
  %v2571 = vadd.f32 0.0, %v2570
  %v2572 = vpop.f32.mrb[0].mxu0
  %2573 = vmatprep.mubr.f32.mxu0 0.0
  %2574 = vmatmul.mubr.f32.gmra.mrb[0].mxu0 %v2499
  %v2575 = vpop.f32.mrb[0].mxu0
  %v2576 = vadd.f32 0.0, %v2575
  %v2577 = vpop.f32.mrb[0].mxu0
  %2578 = vdwg.mxu0
  %v2579 = vadd.f32 %v2490, %v2571
  %v2580 = vadd.f32 %v2491, %v2576
  %s2581 = scalar_lea.vmem %s13, 112
  %v2582 = vld [vmem:[%s2581] sm:$0xff]
  %v2583 = vld [vmem:[%s2581 + $0x8] sm:$0x1]
  %v2585 = vsel %vm1967, %v2582, 0
  %v2588 = vsel %vm1967, %v2583, 0
  %v2591 = vsel %vm154, %v1961, 0
  %2593 = vmatprep.subr.mxu0 0.0
  %2594 = vmatpush1.msra.mxu0 %v1953
  %2595 = vmatprep.subr.mxu0 0.0
  %2596 = vmatpush1.msra.mxu0 %v2591
  %2597 = vmatprep.subr.mxu0 0.0
  %2598 = vmatpush1.msra.mxu0 0.0
  %2599 = vmatprep.subr.mxu0 0.0
  %2600 = vmatpush1.msra.mxu0 0.0
  %2601 = vmatprep.subr.mxu0 0.0
  %2602 = vmatpush1.msra.mxu0 0.0
  %2603 = vmatprep.subr.mxu0 0.0
  %2604 = vmatpush1.msra.mxu0 0.0
  %2605 = vmatprep.subr.mxu0 0.0
  %2606 = vmatpush1.msra.mxu0 0.0
  %2607 = vmatprep.subr.mxu0 0.0
  %2608 = vmatpush1.msra.mxu0 0.0
  %2609 = vmatprep.subr.mxu0 0.0
  %2610 = vmatpush1.msra.mxu0 0.0
  %2611 = vmatprep.subr.mxu0 0.0
  %2612 = vmatpush1.msra.mxu0 0.0
  %2613 = vmatprep.subr.mxu0 0.0
  %2614 = vmatpush1.msra.mxu0 0.0
  %2615 = vmatprep.subr.mxu0 0.0
  %2616 = vmatpush1.msra.mxu0 0.0
  %2617 = vmatprep.subr.mxu0 0.0
  %2618 = vmatpush1.msra.mxu0 0.0
  %2619 = vmatprep.subr.mxu0 0.0
  %2620 = vmatpush1.msra.mxu0 0.0
  %2621 = vmatprep.subr.mxu0 0.0
  %2622 = vmatpush1.msra.mxu0 0.0
  %2623 = vmatprep.subr.mxu0 0.0
  %2624 = vmatpush1.msra.mxu0 0.0
  %2625 = vmatprep.subr.mxu0 0.0
  %2626 = vmatpush1.msra.mxu0 0.0
  %2627 = vmatprep.subr.mxu0 0.0
  %2628 = vmatpush1.msra.mxu0 0.0
  %2629 = vmatprep.subr.mxu0 0.0
  %2630 = vmatpush1.msra.mxu0 0.0
  %2631 = vmatprep.subr.mxu0 0.0
  %2632 = vmatpush1.msra.mxu0 0.0
  %2633 = vmatprep.subr.mxu0 0.0
  %2634 = vmatpush1.msra.mxu0 0.0
  %2635 = vmatprep.subr.mxu0 0.0
  %2636 = vmatpush1.msra.mxu0 0.0
  %2637 = vmatprep.subr.mxu0 0.0
  %2638 = vmatpush1.msra.mxu0 0.0
  %2639 = vmatprep.subr.mxu0 0.0
  %2640 = vmatpush1.msra.mxu0 0.0
  %2641 = vmatprep.subr.mxu0 0.0
  %2642 = vmatpush1.msra.mxu0 0.0
  %2643 = vmatprep.subr.mxu0 0.0
  %2644 = vmatpush1.msra.mxu0 0.0
  %2645 = vmatprep.subr.mxu0 0.0
  %2646 = vmatpush1.msra.mxu0 0.0
  %2647 = vmatprep.subr.mxu0 0.0
  %2648 = vmatpush1.msra.mxu0 0.0
  %2649 = vmatprep.subr.mxu0 0.0
  %2650 = vmatpush1.msra.mxu0 0.0
  %2651 = vmatprep.subr.mxu0 0.0
  %2652 = vmatpush1.msra.mxu0 0.0
  %2653 = vmatprep.subr.mxu0 0.0
  %2654 = vmatpush1.msra.mxu0 0.0
  %2655 = vmatprep.subr.mxu0 0.0
  %2656 = vmatpush1.msra.mxu0 0.0
  %2657 = vmatprep.mubr.f32.mxu0 0.0
  %2658 = vmatmul.mubr.f32.gmra.mrb[0].mxu0 %v2585
  %v2659 = vpop.f32.mrb[0].mxu0
  %v2660 = vadd.f32 0.0, %v2659
  %v2661 = vpop.f32.mrb[0].mxu0
  %2662 = vmatprep.mubr.f32.mxu0 0.0
  %2663 = vmatmul.mubr.f32.gmra.mrb[0].mxu0 %v2588
  %v2664 = vpop.f32.mrb[0].mxu0
  %v2665 = vadd.f32 0.0, %v2664
  %v2666 = vpop.f32.mrb[0].mxu0
  %2667 = vdwg.mxu0
  %v2668 = vadd.f32 %v2579, %v2660
  %v2669 = vadd.f32 %v2580, %v2665
  %vm2670 = vcmp.gt.f32.partialorder %v2668, 0.0
  %vm2671 = vcmp.gt.f32.partialorder %v2669, 0.0
  %v2672 = vmul.f32 %v2668, 0.01
  %v2673 = vmul.f32 %v2669, 0.01
  %v2674 = vsel %vm2670, %v2668, %v2672
  %v2675 = vsel %vm2671, %v2669, %v2673
  %v2676 = vld [vmem:[%s14] sm:$0xff]
  %v2677 = vld [vmem:[%s14 + $0x8] sm:$0x1]
  %2679 = vset.pattern.permute.xlu0 0
  %2680 = vperm.xlu0 %2679, %v2676
  %v2681 = vpop.permute.xlu0 %2680
  %2684 = vset.pattern.permute.xlu0 0
  %2685 = vperm.xlu0 %2684, %v2677
  %v2686 = vpop.permute.xlu0 %2685
  %v2688 = vmul.f32 %v2674, %v2681
  %v2689 = vmul.f32 %v2675, %v2686
  %v2690 = vld [vmem:[%s15] sm:$0xff]
  %v2691 = vld [vmem:[%s15 + $0x8] sm:$0x1]
  %2693 = vset.pattern.permute.xlu0 0
  %2694 = vperm.xlu0 %2693, %v2690
  %v2695 = vpop.permute.xlu0 %2694
  %2698 = vset.pattern.permute.xlu0 0
  %2699 = vperm.xlu0 %2698, %v2691
  %v2700 = vpop.permute.xlu0 %2699
  %v2702 = vadd.f32 %v2688, %v2695
  %v2703 = vadd.f32 %v2689, %v2700
  %2704 = vst [vmem:[%s16] sm:$0xff] %v2702
  %2705 = vst [vmem:[%s16 + $0x8] sm:$0x1] %v2703
  // Predicated region
  $region66: #{tpu_custom_call.1} parent=0 // pred_check
    _
  $region67: #{tpu_custom_call.1} parent=0 // pred_check_branch
    %2707 = sbr.rel (0) target = $region69
  $region68: #{tpu_custom_call.1} parent=0 // pred_region
    _
  $region69: #{tpu_custom_call.1} parent=0 // pred_fallthru
    _
  // Predicated region
  $region70: #{tpu_custom_call.1} parent=0 // pred_check
    _
  $region71: #{tpu_custom_call.1} parent=0 // pred_check_branch
    %2709 = sbr.rel (0) target = $region73
  $region72: #{tpu_custom_call.1} parent=0 // pred_region
    _
  $region73: #{tpu_custom_call.1} parent=0 // pred_fallthru
    _

</llo_original>
